<compile_context>
chip_gen: v6e
topology: v6e:2x2x1
jax: 0.10.0
libtpu: 0.0.40
codegen_flags: <defaults>
</compile_context>

<pallas_src>
import functools

import jax
import jax.numpy as jnp
from jax import lax
from jax.experimental import pallas as pl
from jax.experimental.pallas import tpu as pltpu


# ----------------------------- fused kernel ---------------------------------


def _prenorm_attn_kernel(x_ref, wqkv_ref, bqkv_ref, wout_ref, bout_ref,
                         y_ref, out_scratch, *, heads, dim_head, eps):
    """Per batch element: GroupNorm(1) -> fused QKV -> MHA -> out 1x1 conv.

    x_ref      : (1, C, N)        input, channels on sublanes, N on lanes
    wqkv_ref   : (3*hidden, C)    fused QKV weight (gamma + attn scale folded in)
    bqkv_ref   : (3*hidden, 1)    fused QKV bias  (= Wqkv @ beta)
    wout_ref   : (C, hidden)      output 1x1-conv weight
    bout_ref   : (C, 1)           output 1x1-conv bias
    y_ref      : (1, C, N)        output (lane-dense)
    out_scratch: (hidden, N) f32  VMEM slab holding all heads' attention output
    """
    x = x_ref[0]                                                  # (C, N)

    # --- GroupNorm(num_groups=1): normalize over all (C, N), biased variance.
    #     Affine (gamma, beta) is folded into wqkv/bqkv in the wrapper.
    mean = jnp.mean(x, keepdims=True)                             # (1, 1)
    centered = x - mean
    var = jnp.mean(centered * centered, keepdims=True)            # (1, 1)
    xhat = centered * lax.rsqrt(var + eps)                        # (C, N)

    hidden = heads * dim_head

    # --- fused QKV projection: one lane-dense (3*hidden, C) @ (C, N) matmul --
    qkv = lax.dot_general(wqkv_ref[...], xhat, (((1,), (0,)), ((), ())),
                          preferred_element_type=jnp.float32)     # (3*hidden, N)
    qkv = qkv + bqkv_ref[...]                                     # folded GN beta

    # --- per-head softmax attention (static unrolled loop over heads) --------
    for h in range(heads):
        lo = h * dim_head
        q = qkv[lo:lo + dim_head]                                 # (D, Nq), scaled
        k = qkv[hidden + lo:hidden + lo + dim_head]               # (D, Nk)
        v = qkv[2 * hidden + lo:2 * hidden + lo + dim_head]       # (D, Nk)

        # scores with keys on sublanes / queries on lanes: s[j, i] = k_j . q_i
        s = lax.dot_general(k, q, (((0,), (0,)), ((), ())),
                            preferred_element_type=jnp.float32)   # (Nk, Nq)
        s = s - jnp.max(s, axis=0, keepdims=True)
        e = jnp.exp(s)
        denom = jnp.sum(e, axis=0, keepdims=True)                 # (1, Nq)
        p = e * pl.reciprocal(denom, approx=True)                 # softmax over keys

        # weighted value sum: (D, Nk) @ (Nk, Nq) -> (D, Nq); 8-aligned slab write
        out_scratch[lo:lo + dim_head, :] = jnp.dot(
            v, p, preferred_element_type=jnp.float32)

    # --- fused output 1x1 conv: (C, hidden) @ (hidden, N) + bias -------------
    y = jnp.dot(wout_ref[...], out_scratch[...],
                preferred_element_type=jnp.float32) + bout_ref[...]
    y_ref[0] = y                                                  # lane-dense store


# ------------------------------- wrapper ------------------------------------


def prenorm_attention_forward(x, params, *, heads, dim_head, eps=1e-5):
    """x: (B, C, H, W) float32 NCHW (like PyTorch).  Returns (B, C, H, W)."""
    b, c, h, w = x.shape
    n = h * w
    hidden = heads * dim_head
    scale = dim_head ** (-0.5)

    # NCHW -> (B, C, N): pure reshape, no transpose.
    x_flat = x.reshape(b, c, n)

    # Fold the per-head attention scale into the Q rows of the fused QKV weight,
    # and fold the GroupNorm affine (gamma, beta) into the QKV weight / bias:
    #   Wqkv @ (gamma*xhat + beta) == (Wqkv*gamma) @ xhat + (Wqkv @ beta)
    w_qkv = params["w_qkv"]                                        # (3*hidden, C)
    w_qkv = jnp.concatenate([w_qkv[:hidden] * scale, w_qkv[hidden:]], axis=0)
    gamma = params["gamma"]                                        # (C,)
    beta = params["beta"]                                          # (C,)
    w_qkv_fused = w_qkv * gamma[None, :]                           # (3*hidden, C)
    b_qkv = (w_qkv @ beta).reshape(3 * hidden, 1)                  # (3*hidden, 1)

    w_out = params["w_out"]                                        # (C, hidden)
    b_out = params["b_out"].reshape(c, 1)

    kernel = functools.partial(
        _prenorm_attn_kernel, heads=heads, dim_head=dim_head, eps=eps)

    y_flat = pl.pallas_call(
        kernel,
        out_shape=jax.ShapeDtypeStruct((b, c, n), jnp.float32),
        grid=(b,),
        in_specs=[
            pl.BlockSpec((1, c, n), lambda i: (i, 0, 0)),
            pl.BlockSpec((3 * hidden, c), lambda i: (0, 0)),
            pl.BlockSpec((3 * hidden, 1), lambda i: (0, 0)),
            pl.BlockSpec((c, hidden), lambda i: (0, 0)),
            pl.BlockSpec((c, 1), lambda i: (0, 0)),
        ],
        out_specs=pl.BlockSpec((1, c, n), lambda i: (i, 0, 0)),
        scratch_shapes=[pltpu.VMEM((hidden, n), jnp.float32)],
        compiler_params=pltpu.CompilerParams(
            dimension_semantics=("parallel",)),
    )(x_flat, w_qkv_fused, b_qkv, w_out, b_out)

    # (B, C, N) -> NCHW: pure reshape, no transpose.
    return y_flat.reshape(b, c, h, w)


# --------------------------- pure-JAX reference ------------------------------


def prenorm_attention_reference(x, params, *, heads, dim_head, eps=1e-5):
    b, c, h, w = x.shape
    hidden = heads * dim_head
    scale = dim_head ** (-0.5)

    # GroupNorm(num_groups=1): normalize over (C, H, W) per sample, biased var.
    mean = jnp.mean(x, axis=(1, 2, 3), keepdims=True)
    var = jnp.var(x, axis=(1, 2, 3), keepdims=True)
    xn = (x - mean) / jnp.sqrt(var + eps)
    xn = xn * params["gamma"][None, :, None, None] + params["beta"][None, :, None, None]

    # Attention (matches the PyTorch module).
    qkv = jnp.einsum("oc,bcxy->boxy", params["w_qkv"], xn)
    q, k, v = jnp.split(qkv, 3, axis=1)
    reshape = lambda t: t.reshape(b, heads, dim_head, h * w)
    q, k, v = reshape(q), reshape(k), reshape(v)
    q = q * scale
    sim = jnp.einsum("bhdi,bhdj->bhij", q, k)
    sim = sim - jnp.max(sim, axis=-1, keepdims=True)
    attn = jax.nn.softmax(sim, axis=-1)
    out = jnp.einsum("bhij,bhdj->bhid", attn, v)
    out = out.transpose(0, 1, 3, 2).reshape(b, hidden, h, w)
    y = jnp.einsum("oc,bcxy->boxy", params["w_out"], out)
    return y + params["b_out"][None, :, None, None]


# ------------------------------- main ----------------------------------------


if __name__ == "__main__":
    B, DIM, H, W = 2, 4, 16, 16
    HEADS, DIM_HEAD = 4, 32
    HIDDEN = HEADS * DIM_HEAD

    key = jax.random.PRNGKey(0)
    kx, kq, ko, kb, kg, kbe = jax.random.split(key, 6)

    x = jax.random.normal(kx, (B, DIM, H, W), dtype=jnp.float32)
    params = {
        "gamma": 1.0 + 0.1 * jax.random.normal(kg, (DIM,), dtype=jnp.float32),
        "beta": 0.1 * jax.random.normal(kbe, (DIM,), dtype=jnp.float32),
        "w_qkv": jax.random.normal(kq, (3 * HIDDEN, DIM), dtype=jnp.float32) * 0.1,
        "w_out": jax.random.normal(ko, (DIM, HIDDEN), dtype=jnp.float32) * 0.1,
        "b_out": jax.random.normal(kb, (DIM,), dtype=jnp.float32) * 0.1,
    }

    y = prenorm_attention_forward(x, params, heads=HEADS, dim_head=DIM_HEAD)
    y = jax.block_until_ready(y)

    y_ref = prenorm_attention_reference(x, params, heads=HEADS, dim_head=DIM_HEAD)
    assert y.shape == (B, DIM, H, W)
    max_err = jnp.max(jnp.abs(y - y_ref))
    assert jnp.allclose(y, y_ref, atol=2e-4, rtol=2e-4), \
        f"mismatch vs reference (max abs err {max_err})"

    print("KERNEL_OK")
</pallas_src>

<mosaic_0001>
module attributes {stable_mosaic.version = 11 : i64} {
  func.func @_prenorm_attn_kernel(%arg0: i32, %arg1: memref<1x4x256xf32, #tpu.memory_space<vmem>>, %arg2: memref<384x4xf32, #tpu.memory_space<vmem>>, %arg3: memref<384x1xf32, #tpu.memory_space<vmem>>, %arg4: memref<4x128xf32, #tpu.memory_space<vmem>>, %arg5: memref<4x1xf32, #tpu.memory_space<vmem>>, %arg6: memref<1x4x256xf32, #tpu.memory_space<vmem>>, %arg7: memref<128x256xf32, #tpu.memory_space<vmem>>) attributes {dimension_semantics = [#tpu.dimension_semantics<parallel>], iteration_bounds = array<i64: 2>, scalar_prefetch = 0 : i64, scratch_operands = 1 : i64, tpu.core_type = #tpu.core_type<tc>, window_params = [{transform_indices = @transform_0, window_bounds = array<i64: 1, 4, 256>}, {pipeline_mode = #tpu.pipeline_mode<synchronous>, transform_indices = @transform_1, window_bounds = array<i64: 384, 4>}, {pipeline_mode = #tpu.pipeline_mode<synchronous>, transform_indices = @transform_2, window_bounds = array<i64: 384, 1>}, {pipeline_mode = #tpu.pipeline_mode<synchronous>, transform_indices = @transform_3, window_bounds = array<i64: 4, 128>}, {pipeline_mode = #tpu.pipeline_mode<synchronous>, transform_indices = @transform_4, window_bounds = array<i64: 4, 1>}, {transform_indices = @transform_5, window_bounds = array<i64: 1, 4, 256>}]} {
    %c0 = arith.constant 0 : index
    %c0_0 = arith.constant 0 : index
    %c0_1 = arith.constant 0 : index
    %0 = vector.load %arg1[%c0, %c0_0, %c0_1] : memref<1x4x256xf32, #tpu.memory_space<vmem>>, vector<1x4x256xf32>
    %1 = vector.shape_cast %0 : vector<1x4x256xf32> to vector<4x256xf32>
    %2 = vector.shape_cast %1 : vector<4x256xf32> to vector<1x4x256xf32>
    %cst = arith.constant dense<0.000000e+00> : vector<1xf32>
    %3 = vector.multi_reduction <add>, %2, %cst [1, 2] : vector<1x4x256xf32> to vector<1xf32>
    %4 = vector.shape_cast %3 : vector<1xf32> to vector<1x1x1xf32>
    %5 = vector.extract %4[0, 0, 0] : f32 from vector<1x1x1xf32>
    %6 = vector.broadcast %5 : f32 to vector<1x1xf32>
    %cst_2 = arith.constant 1.024000e+03 : f32
    %7 = vector.broadcast %cst_2 : f32 to vector<1x1xf32>
    %8 = arith.divf %6, %7 : vector<1x1xf32>
    %9 = vector.broadcast %8 : vector<1x1xf32> to vector<4x256xf32>
    %10 = arith.subf %1, %9 : vector<4x256xf32>
    %11 = arith.mulf %10, %10 : vector<4x256xf32>
    %12 = vector.shape_cast %11 : vector<4x256xf32> to vector<1x4x256xf32>
    %cst_3 = arith.constant dense<0.000000e+00> : vector<1xf32>
    %13 = vector.multi_reduction <add>, %12, %cst_3 [1, 2] : vector<1x4x256xf32> to vector<1xf32>
    %14 = vector.shape_cast %13 : vector<1xf32> to vector<1x1x1xf32>
    %15 = vector.extract %14[0, 0, 0] : f32 from vector<1x1x1xf32>
    %16 = vector.broadcast %15 : f32 to vector<1x1xf32>
    %cst_4 = arith.constant 1.024000e+03 : f32
    %17 = vector.broadcast %cst_4 : f32 to vector<1x1xf32>
    %18 = arith.divf %16, %17 : vector<1x1xf32>
    %cst_5 = arith.constant 9.99999974E-6 : f32
    %19 = vector.broadcast %cst_5 : f32 to vector<1x1xf32>
    %20 = arith.addf %18, %19 : vector<1x1xf32>
    %21 = math.rsqrt %20 : vector<1x1xf32>
    %22 = vector.broadcast %21 : vector<1x1xf32> to vector<4x256xf32>
    %23 = arith.mulf %10, %22 : vector<4x256xf32>
    %c0_6 = arith.constant 0 : index
    %c0_7 = arith.constant 0 : index
    %24 = vector.load %arg2[%c0_6, %c0_7] : memref<384x4xf32, #tpu.memory_space<vmem>>, vector<384x4xf32>
    %cst_8 = arith.constant dense<0.000000e+00> : vector<384x256xf32>
    %25 = tpu.matmul %24, %23, %cst_8 {dimension_numbers = #tpu.dot_dimension_numbers<[1], [0], [0], [1], [0, 0, 1, 1], [], []>} : vector<384x4xf32>, vector<4x256xf32>, vector<384x256xf32> -> vector<384x256xf32>
    %c0_9 = arith.constant 0 : index
    %c0_10 = arith.constant 0 : index
    %26 = vector.load %arg3[%c0_9, %c0_10] : memref<384x1xf32, #tpu.memory_space<vmem>>, vector<384x1xf32>
    %27 = vector.broadcast %26 : vector<384x1xf32> to vector<384x256xf32>
    %28 = arith.addf %25, %27 : vector<384x256xf32>
    %29 = vector.extract_strided_slice %28 {offsets = [0, 0], sizes = [32, 256], strides = [1, 1]} : vector<384x256xf32> to vector<32x256xf32>
    %30 = vector.extract_strided_slice %28 {offsets = [128, 0], sizes = [32, 256], strides = [1, 1]} : vector<384x256xf32> to vector<32x256xf32>
    %31 = vector.extract_strided_slice %28 {offsets = [256, 0], sizes = [32, 256], strides = [1, 1]} : vector<384x256xf32> to vector<32x256xf32>
    %cst_11 = arith.constant dense<0.000000e+00> : vector<256x256xf32>
    %32 = tpu.matmul %30, %29, %cst_11 {dimension_numbers = #tpu.dot_dimension_numbers<[0], [0], [1], [1], [0, 1, 1, 1], [], []>} : vector<32x256xf32>, vector<32x256xf32>, vector<256x256xf32> -> vector<256x256xf32>
    %cst_12 = arith.constant dense<0xFF800000> : vector<256xf32>
    %33 = vector.multi_reduction <maximumf>, %32, %cst_12 [0] : vector<256x256xf32> to vector<256xf32>
    %34 = vector.shape_cast %33 : vector<256xf32> to vector<1x256xf32>
    %35 = vector.broadcast %34 : vector<1x256xf32> to vector<256x256xf32>
    %36 = arith.subf %32, %35 : vector<256x256xf32>
    %37 = math.exp %36 : vector<256x256xf32>
    %cst_13 = arith.constant dense<0.000000e+00> : vector<256xf32>
    %38 = vector.multi_reduction <add>, %37, %cst_13 [0] : vector<256x256xf32> to vector<256xf32>
    %39 = vector.shape_cast %38 : vector<256xf32> to vector<1x256xf32>
    %40 = tpu.reciprocal %39 {approx = true} : vector<1x256xf32> -> vector<1x256xf32>
    %41 = vector.broadcast %40 : vector<1x256xf32> to vector<256x256xf32>
    %42 = arith.mulf %37, %41 : vector<256x256xf32>
    %cst_14 = arith.constant dense<0.000000e+00> : vector<32x256xf32>
    %43 = tpu.matmul %31, %42, %cst_14 {dimension_numbers = #tpu.dot_dimension_numbers<[1], [0], [0], [1], [0, 0, 1, 1], [], []>} : vector<32x256xf32>, vector<256x256xf32>, vector<32x256xf32> -> vector<32x256xf32>
    %c0_15 = arith.constant 0 : index
    %c0_16 = arith.constant 0 : index
    %44 = vector.load %arg7[%c0_15, %c0_16] : memref<128x256xf32, #tpu.memory_space<vmem>>, vector<32x256xf32>
    tpu.vector_store %arg7[%c0_15, %c0_16], %43 {strides = array<i32>} : memref<128x256xf32, #tpu.memory_space<vmem>>, vector<32x256xf32>,
    %45 = vector.extract_strided_slice %28 {offsets = [32, 0], sizes = [32, 256], strides = [1, 1]} : vector<384x256xf32> to vector<32x256xf32>
    %46 = vector.extract_strided_slice %28 {offsets = [160, 0], sizes = [32, 256], strides = [1, 1]} : vector<384x256xf32> to vector<32x256xf32>
    %47 = vector.extract_strided_slice %28 {offsets = [288, 0], sizes = [32, 256], strides = [1, 1]} : vector<384x256xf32> to vector<32x256xf32>
    %cst_17 = arith.constant dense<0.000000e+00> : vector<256x256xf32>
    %48 = tpu.matmul %46, %45, %cst_17 {dimension_numbers = #tpu.dot_dimension_numbers<[0], [0], [1], [1], [0, 1, 1, 1], [], []>} : vector<32x256xf32>, vector<32x256xf32>, vector<256x256xf32> -> vector<256x256xf32>
    %cst_18 = arith.constant dense<0xFF800000> : vector<256xf32>
    %49 = vector.multi_reduction <maximumf>, %48, %cst_18 [0] : vector<256x256xf32> to vector<256xf32>
    %50 = vector.shape_cast %49 : vector<256xf32> to vector<1x256xf32>
    %51 = vector.broadcast %50 : vector<1x256xf32> to vector<256x256xf32>
    %52 = arith.subf %48, %51 : vector<256x256xf32>
    %53 = math.exp %52 : vector<256x256xf32>
    %cst_19 = arith.constant dense<0.000000e+00> : vector<256xf32>
    %54 = vector.multi_reduction <add>, %53, %cst_19 [0] : vector<256x256xf32> to vector<256xf32>
    %55 = vector.shape_cast %54 : vector<256xf32> to vector<1x256xf32>
    %56 = tpu.reciprocal %55 {approx = true} : vector<1x256xf32> -> vector<1x256xf32>
    %57 = vector.broadcast %56 : vector<1x256xf32> to vector<256x256xf32>
    %58 = arith.mulf %53, %57 : vector<256x256xf32>
    %cst_20 = arith.constant dense<0.000000e+00> : vector<32x256xf32>
    %59 = tpu.matmul %47, %58, %cst_20 {dimension_numbers = #tpu.dot_dimension_numbers<[1], [0], [0], [1], [0, 0, 1, 1], [], []>} : vector<32x256xf32>, vector<256x256xf32>, vector<32x256xf32> -> vector<32x256xf32>
    %c32 = arith.constant 32 : index
    %c0_21 = arith.constant 0 : index
    %60 = vector.load %arg7[%c32, %c0_21] : memref<128x256xf32, #tpu.memory_space<vmem>>, vector<32x256xf32>
    tpu.vector_store %arg7[%c32, %c0_21], %59 {strides = array<i32>} : memref<128x256xf32, #tpu.memory_space<vmem>>, vector<32x256xf32>,
    %61 = vector.extract_strided_slice %28 {offsets = [64, 0], sizes = [32, 256], strides = [1, 1]} : vector<384x256xf32> to vector<32x256xf32>
    %62 = vector.extract_strided_slice %28 {offsets = [192, 0], sizes = [32, 256], strides = [1, 1]} : vector<384x256xf32> to vector<32x256xf32>
    %63 = vector.extract_strided_slice %28 {offsets = [320, 0], sizes = [32, 256], strides = [1, 1]} : vector<384x256xf32> to vector<32x256xf32>
    %cst_22 = arith.constant dense<0.000000e+00> : vector<256x256xf32>
    %64 = tpu.matmul %62, %61, %cst_22 {dimension_numbers = #tpu.dot_dimension_numbers<[0], [0], [1], [1], [0, 1, 1, 1], [], []>} : vector<32x256xf32>, vector<32x256xf32>, vector<256x256xf32> -> vector<256x256xf32>
    %cst_23 = arith.constant dense<0xFF800000> : vector<256xf32>
    %65 = vector.multi_reduction <maximumf>, %64, %cst_23 [0] : vector<256x256xf32> to vector<256xf32>
    %66 = vector.shape_cast %65 : vector<256xf32> to vector<1x256xf32>
    %67 = vector.broadcast %66 : vector<1x256xf32> to vector<256x256xf32>
    %68 = arith.subf %64, %67 : vector<256x256xf32>
    %69 = math.exp %68 : vector<256x256xf32>
    %cst_24 = arith.constant dense<0.000000e+00> : vector<256xf32>
    %70 = vector.multi_reduction <add>, %69, %cst_24 [0] : vector<256x256xf32> to vector<256xf32>
    %71 = vector.shape_cast %70 : vector<256xf32> to vector<1x256xf32>
    %72 = tpu.reciprocal %71 {approx = true} : vector<1x256xf32> -> vector<1x256xf32>
    %73 = vector.broadcast %72 : vector<1x256xf32> to vector<256x256xf32>
    %74 = arith.mulf %69, %73 : vector<256x256xf32>
    %cst_25 = arith.constant dense<0.000000e+00> : vector<32x256xf32>
    %75 = tpu.matmul %63, %74, %cst_25 {dimension_numbers = #tpu.dot_dimension_numbers<[1], [0], [0], [1], [0, 0, 1, 1], [], []>} : vector<32x256xf32>, vector<256x256xf32>, vector<32x256xf32> -> vector<32x256xf32>
    %c64 = arith.constant 64 : index
    %c0_26 = arith.constant 0 : index
    %76 = vector.load %arg7[%c64, %c0_26] : memref<128x256xf32, #tpu.memory_space<vmem>>, vector<32x256xf32>
    tpu.vector_store %arg7[%c64, %c0_26], %75 {strides = array<i32>} : memref<128x256xf32, #tpu.memory_space<vmem>>, vector<32x256xf32>,
    %77 = vector.extract_strided_slice %28 {offsets = [96, 0], sizes = [32, 256], strides = [1, 1]} : vector<384x256xf32> to vector<32x256xf32>
    %78 = vector.extract_strided_slice %28 {offsets = [224, 0], sizes = [32, 256], strides = [1, 1]} : vector<384x256xf32> to vector<32x256xf32>
    %79 = vector.extract_strided_slice %28 {offsets = [352, 0], sizes = [32, 256], strides = [1, 1]} : vector<384x256xf32> to vector<32x256xf32>
    %cst_27 = arith.constant dense<0.000000e+00> : vector<256x256xf32>
    %80 = tpu.matmul %78, %77, %cst_27 {dimension_numbers = #tpu.dot_dimension_numbers<[0], [0], [1], [1], [0, 1, 1, 1], [], []>} : vector<32x256xf32>, vector<32x256xf32>, vector<256x256xf32> -> vector<256x256xf32>
    %cst_28 = arith.constant dense<0xFF800000> : vector<256xf32>
    %81 = vector.multi_reduction <maximumf>, %80, %cst_28 [0] : vector<256x256xf32> to vector<256xf32>
    %82 = vector.shape_cast %81 : vector<256xf32> to vector<1x256xf32>
    %83 = vector.broadcast %82 : vector<1x256xf32> to vector<256x256xf32>
    %84 = arith.subf %80, %83 : vector<256x256xf32>
    %85 = math.exp %84 : vector<256x256xf32>
    %cst_29 = arith.constant dense<0.000000e+00> : vector<256xf32>
    %86 = vector.multi_reduction <add>, %85, %cst_29 [0] : vector<256x256xf32> to vector<256xf32>
    %87 = vector.shape_cast %86 : vector<256xf32> to vector<1x256xf32>
    %88 = tpu.reciprocal %87 {approx = true} : vector<1x256xf32> -> vector<1x256xf32>
    %89 = vector.broadcast %88 : vector<1x256xf32> to vector<256x256xf32>
    %90 = arith.mulf %85, %89 : vector<256x256xf32>
    %cst_30 = arith.constant dense<0.000000e+00> : vector<32x256xf32>
    %91 = tpu.matmul %79, %90, %cst_30 {dimension_numbers = #tpu.dot_dimension_numbers<[1], [0], [0], [1], [0, 0, 1, 1], [], []>} : vector<32x256xf32>, vector<256x256xf32>, vector<32x256xf32> -> vector<32x256xf32>
    %c96 = arith.constant 96 : index
    %c0_31 = arith.constant 0 : index
    %92 = vector.load %arg7[%c96, %c0_31] : memref<128x256xf32, #tpu.memory_space<vmem>>, vector<32x256xf32>
    tpu.vector_store %arg7[%c96, %c0_31], %91 {strides = array<i32>} : memref<128x256xf32, #tpu.memory_space<vmem>>, vector<32x256xf32>,
    %c0_32 = arith.constant 0 : index
    %c0_33 = arith.constant 0 : index
    %93 = vector.load %arg4[%c0_32, %c0_33] : memref<4x128xf32, #tpu.memory_space<vmem>>, vector<4x128xf32>
    %c0_34 = arith.constant 0 : index
    %c0_35 = arith.constant 0 : index
    %94 = vector.load %arg7[%c0_34, %c0_35] : memref<128x256xf32, #tpu.memory_space<vmem>>, vector<128x256xf32>
    %cst_36 = arith.constant dense<0.000000e+00> : vector<4x256xf32>
    %95 = tpu.matmul %93, %94, %cst_36 {dimension_numbers = #tpu.dot_dimension_numbers<[1], [0], [0], [1], [0, 0, 1, 1], [], []>} : vector<4x128xf32>, vector<128x256xf32>, vector<4x256xf32> -> vector<4x256xf32>
    %c0_37 = arith.constant 0 : index
    %c0_38 = arith.constant 0 : index
    %96 = vector.load %arg5[%c0_37, %c0_38] : memref<4x1xf32, #tpu.memory_space<vmem>>, vector<4x1xf32>
    %97 = vector.broadcast %96 : vector<4x1xf32> to vector<4x256xf32>
    %98 = arith.addf %95, %97 : vector<4x256xf32>
    %c0_39 = arith.constant 0 : index
    %c0_40 = arith.constant 0 : index
    %c0_41 = arith.constant 0 : index
    %99 = vector.load %arg6[%c0_39, %c0_40, %c0_41] : memref<1x4x256xf32, #tpu.memory_space<vmem>>, vector<1x4x256xf32>
    %100 = vector.shape_cast %99 : vector<1x4x256xf32> to vector<4x256xf32>
    %101 = vector.shape_cast %98 : vector<4x256xf32> to vector<1x4x256xf32>
    tpu.vector_store %arg6[%c0_39, %c0_40, %c0_41], %101 {strides = array<i32>} : memref<1x4x256xf32, #tpu.memory_space<vmem>>, vector<1x4x256xf32>,
    return
  }
  func.func @transform_0(%arg0: i32) -> (i32, i32, i32) {
    %c0_i32 = arith.constant 0 : i32
    %c0_i32_0 = arith.constant 0 : i32
    %c0_i32_1 = arith.constant 0 : i32
    return %arg0, %c0_i32, %c0_i32_0 : i32, i32, i32
  }
  func.func @transform_1(%arg0: i32) -> (i32, i32) {
    %c0_i32 = arith.constant 0 : i32
    %c0_i32_0 = arith.constant 0 : i32
    %c0_i32_1 = arith.constant 0 : i32
    return %c0_i32, %c0_i32_0 : i32, i32
  }
  func.func @transform_2(%arg0: i32) -> (i32, i32) {
    %c0_i32 = arith.constant 0 : i32
    %c0_i32_0 = arith.constant 0 : i32
    %c0_i32_1 = arith.constant 0 : i32
    return %c0_i32, %c0_i32_0 : i32, i32
  }
  func.func @transform_3(%arg0: i32) -> (i32, i32) {
    %c0_i32 = arith.constant 0 : i32
    %c0_i32_0 = arith.constant 0 : i32
    %c0_i32_1 = arith.constant 0 : i32
    return %c0_i32, %c0_i32_0 : i32, i32
  }
  func.func @transform_4(%arg0: i32) -> (i32, i32) {
    %c0_i32 = arith.constant 0 : i32
    %c0_i32_0 = arith.constant 0 : i32
    %c0_i32_1 = arith.constant 0 : i32
    return %c0_i32, %c0_i32_0 : i32, i32
  }
  func.func @transform_5(%arg0: i32) -> (i32, i32, i32) {
    %c0_i32 = arith.constant 0 : i32
    %c0_i32_0 = arith.constant 0 : i32
    %c0_i32_1 = arith.constant 0 : i32
    return %arg0, %c0_i32, %c0_i32_0 : i32, i32, i32
  }
}

</mosaic_0001>

<llo_original>
// kernel: tpu_custom_call.1
$region0: #{tpu_custom_call.1}
  #allocation0 [shape = 'u32[]', space=smem, size = 0x4, offset = 0x4, fixed_abs, tag = 'smem constant byte address 0x4 - core index']
  #allocation1 [shape = 'u32[144,128]{1,0:T(1,128)}', space=vmem, size = 0x12000, scoped, tag = 'internal scratch']
  #allocation2 [shape = 'f32[128,256]{1,0:T(8,128)}', space=vmem, size = 0x20000, scoped, tag = 'scratch operand']
  %s0 = inlined_call_operand.vmem [shape: f32[2,4,256], index: 0, kind: input, shape index: {}]
  %s1 = inlined_call_operand.vmem [shape: f32[384,4], index: 1, kind: input, shape index: {}]
  %s2 = inlined_call_operand.vmem [shape: f32[384,1], index: 2, kind: input, shape index: {}]
  %s3 = inlined_call_operand.vmem [shape: f32[4,128], index: 3, kind: input, shape index: {}]
  %s4 = inlined_call_operand.vmem [shape: f32[4,1], index: 4, kind: input, shape index: {}]
  %s5 = inlined_call_operand.hbm [shape: f32[2,4,256], index: 5, kind: output, shape index: {}]
  %s6 = sld [smem:[#allocation0]]
  $region53: #{tpu_custom_call.1} parent=0
    _
  %s8 = ssub.s32 1, %s6
  %s9 = scalar_select 0, %s8, %s6
  $region1: #{tpu_custom_call.1} parent=0
    #allocation3 [shape = 'u8[8192]{0}', space=vmem, size = 0x2000, scoped, tag = 'output window, operand 0']
    #allocation4 [shape = 's32[2]{0}', space=sflag, size = 0x8, scoped, tag = 'scoped memory for tpu_custom_call.1']
    %10 = vsyncpa [#allocation4], 0
    %s11 = scalar_lea.sflag [#allocation4], 1
    %12 = vsyncpa %s11, 0
    loop: start=0, step=1, limit=4
    $region2: #{tpu_custom_call.1} parent=1 // loop_pre_header
      _
    $region3: #{tpu_custom_call.1} parent=1 // loop_header
      %s14 = sphi 0, %s18
      %p15 = scmp.ge.s32.totalorder %s14, 4
      %s24 = sphi 0, %s26
      %s27 = sphi 0, %s24
      %s28 = sphi 0, %s27
      %s44 = sphi 0, %s28
      %s48 = sphi 0, %s48
      %s50 = sphi 0, %s48
      %s51 = sphi 0, %s50
      %s65 = sphi 0, %s51
      %s69 = sphi 0, %s69
      %s71 = sphi 0, %s69
      %s72 = sphi 0, %s71
      %s86 = sphi 0, %s72
      %s90 = sphi 0, %s90
      %s92 = sphi 0, %s90
      %s93 = sphi 0, %s92
      %s107 = sphi 0, %s93
      %s111 = sphi 0, %s111
      %s113 = sphi 0, %s111
      %s114 = sphi 0, %s113
      %s128 = sphi 0, %s114
      %s134 = sphi 0, %s136
      %s137 = sphi 0, %s134
      %s138 = sphi 0, %s137
      %s154 = sphi 0, %s138
    $region4: #{tpu_custom_call.1} parent=1 // loop_header_branch
      %17 = sbr.rel (%p15) target = $region8
    $region5: #{tpu_custom_call.1} parent=1 // loop_body
      %s19 = ssub.s32 %s14, 1
      %s20 = ssub.s32 %s14, 2
      %s21 = sadd.s32 %s14, 1
      %s22 = ssub.s32 %s14, %s21
      %p23 = scmp.eq.s32.totalorder %s22, 0
      %s25 = sadd.s32 %s24, 1
      %s26 = scalar_select %p23, %s24, %s25
      %p29 = pneg %p23
      %p30 = scmp.eq.s32.totalorder %s14, 1
      %p31 = por %p29, %p30
      %p32 = scmp.ne.s32.totalorder %s24, %s27
      %p33 = scmp.eq.s32.totalorder %s14, 0
      %p34 = por %p32, %p33
      %p35 = scmp.ne.s32.totalorder %s24, %s27
      %p36 = scmp.eq.s32.totalorder %s19, 1
      %p37 = por %p35, %p36
      %p38 = scmp.ne.s32.totalorder %s27, %s28
      %p39 = scmp.eq.s32.totalorder %s19, 0
      %p40 = por %p38, %p39
      %p41 = scmp.ne.s32.totalorder %s27, %s28
      %p42 = scmp.eq.s32.totalorder %s20, 1
      %p43 = por %p41, %p42
      %p45 = scmp.ne.s32.totalorder %s28, %s44
      %p46 = scmp.eq.s32.totalorder %s20, 0
      %p47 = por %p45, %p46
      %s49 = sadd.s32 %s48, 1
      %p52 = scmp.eq.s32.totalorder %s14, 1
      %p53 = scmp.ne.s32.totalorder %s48, %s50
      %p54 = scmp.eq.s32.totalorder %s14, 0
      %p55 = por %p53, %p54
      %p56 = scmp.ne.s32.totalorder %s48, %s50
      %p57 = scmp.eq.s32.totalorder %s19, 1
      %p58 = por %p56, %p57
      %p59 = scmp.ne.s32.totalorder %s50, %s51
      %p60 = scmp.eq.s32.totalorder %s19, 0
      %p61 = por %p59, %p60
      %p62 = scmp.ne.s32.totalorder %s50, %s51
      %p63 = scmp.eq.s32.totalorder %s20, 1
      %p64 = por %p62, %p63
      %p66 = scmp.ne.s32.totalorder %s51, %s65
      %p67 = scmp.eq.s32.totalorder %s20, 0
      %p68 = por %p66, %p67
      %s70 = sadd.s32 %s69, 1
      %p73 = scmp.eq.s32.totalorder %s14, 1
      %p74 = scmp.ne.s32.totalorder %s69, %s71
      %p75 = scmp.eq.s32.totalorder %s14, 0
      %p76 = por %p74, %p75
      %p77 = scmp.ne.s32.totalorder %s69, %s71
      %p78 = scmp.eq.s32.totalorder %s19, 1
      %p79 = por %p77, %p78
      %p80 = scmp.ne.s32.totalorder %s71, %s72
      %p81 = scmp.eq.s32.totalorder %s19, 0
      %p82 = por %p80, %p81
      %p83 = scmp.ne.s32.totalorder %s71, %s72
      %p84 = scmp.eq.s32.totalorder %s20, 1
      %p85 = por %p83, %p84
      %p87 = scmp.ne.s32.totalorder %s72, %s86
      %p88 = scmp.eq.s32.totalorder %s20, 0
      %p89 = por %p87, %p88
      %s91 = sadd.s32 %s90, 1
      %p94 = scmp.eq.s32.totalorder %s14, 1
      %p95 = scmp.ne.s32.totalorder %s90, %s92
      %p96 = scmp.eq.s32.totalorder %s14, 0
      %p97 = por %p95, %p96
      %p98 = scmp.ne.s32.totalorder %s90, %s92
      %p99 = scmp.eq.s32.totalorder %s19, 1
      %p100 = por %p98, %p99
      %p101 = scmp.ne.s32.totalorder %s92, %s93
      %p102 = scmp.eq.s32.totalorder %s19, 0
      %p103 = por %p101, %p102
      %p104 = scmp.ne.s32.totalorder %s92, %s93
      %p105 = scmp.eq.s32.totalorder %s20, 1
      %p106 = por %p104, %p105
      %p108 = scmp.ne.s32.totalorder %s93, %s107
      %p109 = scmp.eq.s32.totalorder %s20, 0
      %p110 = por %p108, %p109
      %s112 = sadd.s32 %s111, 1
      %p115 = scmp.eq.s32.totalorder %s14, 1
      %p116 = scmp.ne.s32.totalorder %s111, %s113
      %p117 = scmp.eq.s32.totalorder %s14, 0
      %p118 = por %p116, %p117
      %p119 = scmp.ne.s32.totalorder %s111, %s113
      %p120 = scmp.eq.s32.totalorder %s19, 1
      %p121 = por %p119, %p120
      %p122 = scmp.ne.s32.totalorder %s113, %s114
      %p123 = scmp.eq.s32.totalorder %s19, 0
      %p124 = por %p122, %p123
      %p125 = scmp.ne.s32.totalorder %s113, %s114
      %p126 = scmp.eq.s32.totalorder %s20, 1
      %p127 = por %p125, %p126
      %p129 = scmp.ne.s32.totalorder %s114, %s128
      %p130 = scmp.eq.s32.totalorder %s20, 0
      %p131 = por %p129, %p130
      %s132 = ssub.s32 %s14, %s21
      %p133 = scmp.eq.s32.totalorder %s132, 0
      %s135 = sadd.s32 %s134, 1
      %s136 = scalar_select %p133, %s134, %s135
      %p139 = pneg %p133
      %p140 = scmp.eq.s32.totalorder %s14, 1
      %p141 = por %p139, %p140
      %p142 = scmp.ne.s32.totalorder %s134, %s137
      %p143 = scmp.eq.s32.totalorder %s14, 0
      %p144 = por %p142, %p143
      %p145 = scmp.ne.s32.totalorder %s134, %s137
      %p146 = scmp.eq.s32.totalorder %s19, 1
      %p147 = por %p145, %p146
      %p148 = scmp.ne.s32.totalorder %s137, %s138
      %p149 = scmp.eq.s32.totalorder %s19, 0
      %p150 = por %p148, %p149
      %p151 = scmp.ne.s32.totalorder %s137, %s138
      %p152 = scmp.eq.s32.totalorder %s20, 1
      %p153 = por %p151, %p152
      %p155 = scmp.ne.s32.totalorder %s138, %s154
      %p156 = scmp.eq.s32.totalorder %s20, 0
      %p157 = por %p155, %p156
      %p158 = scmp.le.s32.totalorder 1, %s14
      %p159 = scmp.lt.s32.totalorder %s14, 3
      %p160 = pnand %p158, %p159
      %p161 = pneg %p160
      // Predicated region
      $region9: #{tpu_custom_call.1} parent=5 // pred_check
        _
      $region10: #{tpu_custom_call.1} parent=5 // pred_check_branch
        %163 = sbr.rel (%p160) target = $region12
      $region11: #{tpu_custom_call.1} parent=5 // pred_region
        %s164 = ssub.s32 %s14, 1
        // Predicated region
        $region13: #{tpu_custom_call.1} parent=11 // pred_check
          %p165 = pneg %p61
        $region14: #{tpu_custom_call.1} parent=11 // pred_check_branch
          %167 = sbr.rel (%p165) target = $region16
        $region15: #{tpu_custom_call.1} parent=11 // pred_region
          _
        $region16: #{tpu_custom_call.1} parent=11 // pred_fallthru
          _
        // Predicated region
        $region17: #{tpu_custom_call.1} parent=11 // pred_check
          %p168 = pneg %p82
        $region18: #{tpu_custom_call.1} parent=11 // pred_check_branch
          %170 = sbr.rel (%p168) target = $region20
        $region19: #{tpu_custom_call.1} parent=11 // pred_region
          _
        $region20: #{tpu_custom_call.1} parent=11 // pred_fallthru
          _
        // Predicated region
        $region21: #{tpu_custom_call.1} parent=11 // pred_check
          %p171 = pneg %p103
        $region22: #{tpu_custom_call.1} parent=11 // pred_check_branch
          %173 = sbr.rel (%p171) target = $region24
        $region23: #{tpu_custom_call.1} parent=11 // pred_region
          _
        $region24: #{tpu_custom_call.1} parent=11 // pred_fallthru
          _
        // Predicated region
        $region25: #{tpu_custom_call.1} parent=11 // pred_check
          %p174 = pneg %p124
        $region26: #{tpu_custom_call.1} parent=11 // pred_check_branch
          %176 = sbr.rel (%p174) target = $region28
        $region27: #{tpu_custom_call.1} parent=11 // pred_region
          _
        $region28: #{tpu_custom_call.1} parent=11 // pred_fallthru
          _
      $region12: #{tpu_custom_call.1} parent=5 // pred_fallthru
        _
      %p177 = scmp.lt.s32.totalorder %s14, 2
      // Predicated region
      $region29: #{tpu_custom_call.1} parent=5 // pred_check
        %p178 = pneg %p177
      $region30: #{tpu_custom_call.1} parent=5 // pred_check_branch
        %180 = sbr.rel (%p178) target = $region32
      $region31: #{tpu_custom_call.1} parent=5 // pred_region
        // Predicated region
        $region33: #{tpu_custom_call.1} parent=31 // pred_check
          %p181 = pneg %p34
        $region34: #{tpu_custom_call.1} parent=31 // pred_check_branch
          %183 = sbr.rel (%p181) target = $region36
        $region35: #{tpu_custom_call.1} parent=31 // pred_region
          %p184 = scmp.lt.s32.totalorder %s14, 1
          %s185 = scalar_select %p184, %s14, 1
          %s186 = smul.addr %s185, 2
          %s187 = smul.addr %s186, 4
          %s188 = scalar_lea.vmem %s0, %s187
        $region36: #{tpu_custom_call.1} parent=31 // pred_fallthru
          _
      $region32: #{tpu_custom_call.1} parent=5 // pred_fallthru
        _
      %p189 = scmp.le.s32.totalorder 1, %s14
      %p190 = scmp.lt.s32.totalorder %s14, 3
      %p191 = pnand %p189, %p190
      %p192 = pneg %p191
      // Predicated region
      $region37: #{tpu_custom_call.1} parent=5 // pred_check
        _
      $region38: #{tpu_custom_call.1} parent=5 // pred_check_branch
        %194 = sbr.rel (%p191) target = $region40
      $region39: #{tpu_custom_call.1} parent=5 // pred_region
        %s195 = ssub.s32 %s14, 1
        %p196 = scmp.lt.s32.totalorder %s19, 1
        %s197 = scalar_select %p196, %s19, 1
        %s198 = smul.addr %s197, 2
        %s199 = smul.addr %s198, 4
        %s200 = scalar_lea.vmem %s0, %s199
        %p201 = pneg %p40
        %p202 = pneg %p37
        %p203 = pneg %p61
        %p204 = pneg %p58
        %p205 = pneg %p82
        %p206 = pneg %p79
        %p207 = pneg %p103
        %p208 = pneg %p100
        %p209 = pneg %p124
        %p210 = pneg %p121
        %p211 = pneg %p150
        %p212 = pneg %p147
        %s213 = sand.u32 %s137, 1
        %s214 = scalar_lea.sflag [#allocation4], %s213
        %s215 = sand.u32 %s137, 1
        %s216 = smul.addr %s215, 8
        %s217 = scalar_lea.vmem [#allocation3], %s216
        %p218 = scmp.lt.s32.totalorder %s19, 1
        %s219 = scalar_select %p218, %s19, 1
        %s220 = smul.addr %s219, 2
        %s221 = smul.addr %s220, 4
        %s222 = scalar_lea.vmem %s0, %s221
        %v223 = vld [vmem:[%s222] sm:$0xff]
        %v225 = vcombine.high %v223, %v223
        %vm227 = vcmask 1043456
        %v228 = vsel %vm227, %v223, 0.0
        %v229 = vsel %vm227, %v225, 0.0
        %v230 = vadd.f32 %v228, %v229
        %231 = vadd.xlane.f32.xlu0 %v230
        %v232 = vpop.xlane.xlu0 %231
        %v233 = vrot.slane %v232, 4
        %v234 = vadd.f32 %v232, %v233
        %v235 = vrot.slane %v234, 2
        %v236 = vadd.f32 %v234, %v235
        %v237 = vrot.slane %v236, 1
        %v238 = vadd.f32 %v236, %v237
        %s239 = vtos %v238
        %v240 = vstv %s239
        %v241 = vrcp.pop 1024.0
        %v242 = vmul.f32 %v240, %v241
        %v243 = vsub.f32 %v223, %v242
        %v244 = vmul.f32 %v243, %v243
        %v246 = vcombine.high %v244, %v244
        %v248 = vsel %vm227, %v244, 0.0
        %v249 = vsel %vm227, %v246, 0.0
        %v250 = vadd.f32 %v248, %v249
        %251 = vadd.xlane.f32.xlu0 %v250
        %v252 = vpop.xlane.xlu0 %251
        %v253 = vrot.slane %v252, 4
        %v254 = vadd.f32 %v252, %v253
        %v255 = vrot.slane %v254, 2
        %v256 = vadd.f32 %v254, %v255
        %v257 = vrot.slane %v256, 1
        %v258 = vadd.f32 %v256, %v257
        %s259 = vtos %v258
        %v260 = vstv %s259
        %v261 = vmul.f32 %v260, %v241
        %v262 = vadd.f32 %v261, 1e-05
        %v263 = vrsqrt.pop %v262
        %v264 = vmul.f32 %v243, %v263
        %v265 = vld [vmem:[%s1] sm:$0xff]
        %v266 = vld [vmem:[%s1 + $0x8] sm:$0xff]
        %v267 = vld [vmem:[%s1 + $0x10] sm:$0xff]
        %v268 = vld [vmem:[%s1 + $0x18] sm:$0xff]
        %v269 = vld [vmem:[%s1 + $0x20] sm:$0xff]
        %v270 = vld [vmem:[%s1 + $0x28] sm:$0xff]
        %v271 = vld [vmem:[%s1 + $0x30] sm:$0xff]
        %v272 = vld [vmem:[%s1 + $0x38] sm:$0xff]
        %v273 = vld [vmem:[%s1 + $0x40] sm:$0xff]
        %v274 = vld [vmem:[%s1 + $0x48] sm:$0xff]
        %v275 = vld [vmem:[%s1 + $0x50] sm:$0xff]
        %v276 = vld [vmem:[%s1 + $0x58] sm:$0xff]
        %v277 = vld [vmem:[%s1 + $0x60] sm:$0xff]
        %v278 = vld [vmem:[%s1 + $0x68] sm:$0xff]
        %v279 = vld [vmem:[%s1 + $0x70] sm:$0xff]
        %v280 = vld [vmem:[%s1 + $0x78] sm:$0xff]
        %v281 = vld [vmem:[%s1 + $0x80] sm:$0xff]
        %v282 = vld [vmem:[%s1 + $0x88] sm:$0xff]
        %v283 = vld [vmem:[%s1 + $0x90] sm:$0xff]
        %v284 = vld [vmem:[%s1 + $0x98] sm:$0xff]
        %v285 = vld [vmem:[%s1 + $0xa0] sm:$0xff]
        %v286 = vld [vmem:[%s1 + $0xa8] sm:$0xff]
        %v287 = vld [vmem:[%s1 + $0xb0] sm:$0xff]
        %v288 = vld [vmem:[%s1 + $0xb8] sm:$0xff]
        %v289 = vld [vmem:[%s1 + $0xc0] sm:$0xff]
        %v290 = vld [vmem:[%s1 + $0xc8] sm:$0xff]
        %v291 = vld [vmem:[%s1 + $0xd0] sm:$0xff]
        %v292 = vld [vmem:[%s1 + $0xd8] sm:$0xff]
        %v293 = vld [vmem:[%s1 + $0xe0] sm:$0xff]
        %v294 = vld [vmem:[%s1 + $0xe8] sm:$0xff]
        %v295 = vld [vmem:[%s1 + $0xf0] sm:$0xff]
        %v296 = vld [vmem:[%s1 + $0xf8] sm:$0xff]
        %v297 = vld [vmem:[%s1 + $0x100] sm:$0xff]
        %v298 = vld [vmem:[%s1 + $0x108] sm:$0xff]
        %v299 = vld [vmem:[%s1 + $0x110] sm:$0xff]
        %v300 = vld [vmem:[%s1 + $0x118] sm:$0xff]
        %v301 = vld [vmem:[%s1 + $0x120] sm:$0xff]
        %v302 = vld [vmem:[%s1 + $0x128] sm:$0xff]
        %v303 = vld [vmem:[%s1 + $0x130] sm:$0xff]
        %v304 = vld [vmem:[%s1 + $0x138] sm:$0xff]
        %v305 = vld [vmem:[%s1 + $0x140] sm:$0xff]
        %v306 = vld [vmem:[%s1 + $0x148] sm:$0xff]
        %v307 = vld [vmem:[%s1 + $0x150] sm:$0xff]
        %v308 = vld [vmem:[%s1 + $0x158] sm:$0xff]
        %v309 = vld [vmem:[%s1 + $0x160] sm:$0xff]
        %v310 = vld [vmem:[%s1 + $0x168] sm:$0xff]
        %v311 = vld [vmem:[%s1 + $0x170] sm:$0xff]
        %v312 = vld [vmem:[%s1 + $0x178] sm:$0xff]
        %v313 = vld [vmem:[%s2] sm:$0xff]
        %v314 = vld [vmem:[%s2 + $0x8] sm:$0xff]
        %v315 = vld [vmem:[%s2 + $0x10] sm:$0xff]
        %v316 = vld [vmem:[%s2 + $0x18] sm:$0xff]
        %v317 = vld [vmem:[%s2 + $0x20] sm:$0xff]
        %v318 = vld [vmem:[%s2 + $0x28] sm:$0xff]
        %v319 = vld [vmem:[%s2 + $0x30] sm:$0xff]
        %v320 = vld [vmem:[%s2 + $0x38] sm:$0xff]
        %v321 = vld [vmem:[%s2 + $0x40] sm:$0xff]
        %v322 = vld [vmem:[%s2 + $0x48] sm:$0xff]
        %v323 = vld [vmem:[%s2 + $0x50] sm:$0xff]
        %v324 = vld [vmem:[%s2 + $0x58] sm:$0xff]
        %v325 = vld [vmem:[%s2 + $0x60] sm:$0xff]
        %v326 = vld [vmem:[%s2 + $0x68] sm:$0xff]
        %v327 = vld [vmem:[%s2 + $0x70] sm:$0xff]
        %v328 = vld [vmem:[%s2 + $0x78] sm:$0xff]
        %v329 = vld [vmem:[%s2 + $0x80] sm:$0xff]
        %v330 = vld [vmem:[%s2 + $0x88] sm:$0xff]
        %v331 = vld [vmem:[%s2 + $0x90] sm:$0xff]
        %v332 = vld [vmem:[%s2 + $0x98] sm:$0xff]
        %v333 = vld [vmem:[%s2 + $0xa0] sm:$0xff]
        %v334 = vld [vmem:[%s2 + $0xa8] sm:$0xff]
        %v335 = vld [vmem:[%s2 + $0xb0] sm:$0xff]
        %v336 = vld [vmem:[%s2 + $0xb8] sm:$0xff]
        %v337 = vld [vmem:[%s2 + $0xc0] sm:$0xff]
        %v338 = vld [vmem:[%s2 + $0xc8] sm:$0xff]
        %v339 = vld [vmem:[%s2 + $0xd0] sm:$0xff]
        %v340 = vld [vmem:[%s2 + $0xd8] sm:$0xff]
        %v341 = vld [vmem:[%s2 + $0xe0] sm:$0xff]
        %v342 = vld [vmem:[%s2 + $0xe8] sm:$0xff]
        %v343 = vld [vmem:[%s2 + $0xf0] sm:$0xff]
        %v344 = vld [vmem:[%s2 + $0xf8] sm:$0xff]
        %v345 = vld [vmem:[%s2 + $0x100] sm:$0xff]
        %v346 = vld [vmem:[%s2 + $0x108] sm:$0xff]
        %v347 = vld [vmem:[%s2 + $0x110] sm:$0xff]
        %v348 = vld [vmem:[%s2 + $0x118] sm:$0xff]
        %v349 = vld [vmem:[%s2 + $0x120] sm:$0xff]
        %v350 = vld [vmem:[%s2 + $0x128] sm:$0xff]
        %v351 = vld [vmem:[%s2 + $0x130] sm:$0xff]
        %v352 = vld [vmem:[%s2 + $0x138] sm:$0xff]
        %v353 = vld [vmem:[%s2 + $0x140] sm:$0xff]
        %v354 = vld [vmem:[%s2 + $0x148] sm:$0xff]
        %v355 = vld [vmem:[%s2 + $0x150] sm:$0xff]
        %v356 = vld [vmem:[%s2 + $0x158] sm:$0xff]
        %v357 = vld [vmem:[%s2 + $0x160] sm:$0xff]
        %v358 = vld [vmem:[%s2 + $0x168] sm:$0xff]
        %v359 = vld [vmem:[%s2 + $0x170] sm:$0xff]
        %v360 = vld [vmem:[%s2 + $0x178] sm:$0xff]
        %362 = vset.pattern.permute.xlu0 0
        %363 = vperm.xlu0 %362, %v313
        %v364 = vpop.permute.xlu0 %363
        %367 = vset.pattern.permute.xlu0 0
        %368 = vperm.xlu0 %367, %v314
        %v369 = vpop.permute.xlu0 %368
        %372 = vset.pattern.permute.xlu0 0
        %373 = vperm.xlu0 %372, %v315
        %v374 = vpop.permute.xlu0 %373
        %377 = vset.pattern.permute.xlu0 0
        %378 = vperm.xlu0 %377, %v316
        %v379 = vpop.permute.xlu0 %378
        %382 = vset.pattern.permute.xlu0 0
        %383 = vperm.xlu0 %382, %v317
        %v384 = vpop.permute.xlu0 %383
        %387 = vset.pattern.permute.xlu0 0
        %388 = vperm.xlu0 %387, %v318
        %v389 = vpop.permute.xlu0 %388
        %392 = vset.pattern.permute.xlu0 0
        %393 = vperm.xlu0 %392, %v319
        %v394 = vpop.permute.xlu0 %393
        %397 = vset.pattern.permute.xlu0 0
        %398 = vperm.xlu0 %397, %v320
        %v399 = vpop.permute.xlu0 %398
        %402 = vset.pattern.permute.xlu0 0
        %403 = vperm.xlu0 %402, %v321
        %v404 = vpop.permute.xlu0 %403
        %407 = vset.pattern.permute.xlu0 0
        %408 = vperm.xlu0 %407, %v322
        %v409 = vpop.permute.xlu0 %408
        %412 = vset.pattern.permute.xlu0 0
        %413 = vperm.xlu0 %412, %v323
        %v414 = vpop.permute.xlu0 %413
        %417 = vset.pattern.permute.xlu0 0
        %418 = vperm.xlu0 %417, %v324
        %v419 = vpop.permute.xlu0 %418
        %422 = vset.pattern.permute.xlu0 0
        %423 = vperm.xlu0 %422, %v325
        %v424 = vpop.permute.xlu0 %423
        %427 = vset.pattern.permute.xlu0 0
        %428 = vperm.xlu0 %427, %v326
        %v429 = vpop.permute.xlu0 %428
        %432 = vset.pattern.permute.xlu0 0
        %433 = vperm.xlu0 %432, %v327
        %v434 = vpop.permute.xlu0 %433
        %437 = vset.pattern.permute.xlu0 0
        %438 = vperm.xlu0 %437, %v328
        %v439 = vpop.permute.xlu0 %438
        %442 = vset.pattern.permute.xlu0 0
        %443 = vperm.xlu0 %442, %v329
        %v444 = vpop.permute.xlu0 %443
        %447 = vset.pattern.permute.xlu0 0
        %448 = vperm.xlu0 %447, %v330
        %v449 = vpop.permute.xlu0 %448
        %452 = vset.pattern.permute.xlu0 0
        %453 = vperm.xlu0 %452, %v331
        %v454 = vpop.permute.xlu0 %453
        %457 = vset.pattern.permute.xlu0 0
        %458 = vperm.xlu0 %457, %v332
        %v459 = vpop.permute.xlu0 %458
        %462 = vset.pattern.permute.xlu0 0
        %463 = vperm.xlu0 %462, %v333
        %v464 = vpop.permute.xlu0 %463
        %467 = vset.pattern.permute.xlu0 0
        %468 = vperm.xlu0 %467, %v334
        %v469 = vpop.permute.xlu0 %468
        %472 = vset.pattern.permute.xlu0 0
        %473 = vperm.xlu0 %472, %v335
        %v474 = vpop.permute.xlu0 %473
        %477 = vset.pattern.permute.xlu0 0
        %478 = vperm.xlu0 %477, %v336
        %v479 = vpop.permute.xlu0 %478
        %482 = vset.pattern.permute.xlu0 0
        %483 = vperm.xlu0 %482, %v337
        %v484 = vpop.permute.xlu0 %483
        %487 = vset.pattern.permute.xlu0 0
        %488 = vperm.xlu0 %487, %v338
        %v489 = vpop.permute.xlu0 %488
        %492 = vset.pattern.permute.xlu0 0
        %493 = vperm.xlu0 %492, %v339
        %v494 = vpop.permute.xlu0 %493
        %497 = vset.pattern.permute.xlu0 0
        %498 = vperm.xlu0 %497, %v340
        %v499 = vpop.permute.xlu0 %498
        %502 = vset.pattern.permute.xlu0 0
        %503 = vperm.xlu0 %502, %v341
        %v504 = vpop.permute.xlu0 %503
        %507 = vset.pattern.permute.xlu0 0
        %508 = vperm.xlu0 %507, %v342
        %v509 = vpop.permute.xlu0 %508
        %512 = vset.pattern.permute.xlu0 0
        %513 = vperm.xlu0 %512, %v343
        %v514 = vpop.permute.xlu0 %513
        %517 = vset.pattern.permute.xlu0 0
        %518 = vperm.xlu0 %517, %v344
        %v519 = vpop.permute.xlu0 %518
        %522 = vset.pattern.permute.xlu0 0
        %523 = vperm.xlu0 %522, %v345
        %v524 = vpop.permute.xlu0 %523
        %527 = vset.pattern.permute.xlu0 0
        %528 = vperm.xlu0 %527, %v346
        %v529 = vpop.permute.xlu0 %528
        %532 = vset.pattern.permute.xlu0 0
        %533 = vperm.xlu0 %532, %v347
        %v534 = vpop.permute.xlu0 %533
        %537 = vset.pattern.permute.xlu0 0
        %538 = vperm.xlu0 %537, %v348
        %v539 = vpop.permute.xlu0 %538
        %542 = vset.pattern.permute.xlu0 0
        %543 = vperm.xlu0 %542, %v349
        %v544 = vpop.permute.xlu0 %543
        %547 = vset.pattern.permute.xlu0 0
        %548 = vperm.xlu0 %547, %v350
        %v549 = vpop.permute.xlu0 %548
        %552 = vset.pattern.permute.xlu0 0
        %553 = vperm.xlu0 %552, %v351
        %v554 = vpop.permute.xlu0 %553
        %557 = vset.pattern.permute.xlu0 0
        %558 = vperm.xlu0 %557, %v352
        %v559 = vpop.permute.xlu0 %558
        %562 = vset.pattern.permute.xlu0 0
        %563 = vperm.xlu0 %562, %v353
        %v564 = vpop.permute.xlu0 %563
        %567 = vset.pattern.permute.xlu0 0
        %568 = vperm.xlu0 %567, %v354
        %v569 = vpop.permute.xlu0 %568
        %572 = vset.pattern.permute.xlu0 0
        %573 = vperm.xlu0 %572, %v355
        %v574 = vpop.permute.xlu0 %573
        %577 = vset.pattern.permute.xlu0 0
        %578 = vperm.xlu0 %577, %v356
        %v579 = vpop.permute.xlu0 %578
        %582 = vset.pattern.permute.xlu0 0
        %583 = vperm.xlu0 %582, %v357
        %v584 = vpop.permute.xlu0 %583
        %587 = vset.pattern.permute.xlu0 0
        %588 = vperm.xlu0 %587, %v358
        %v589 = vpop.permute.xlu0 %588
        %592 = vset.pattern.permute.xlu0 0
        %593 = vperm.xlu0 %592, %v359
        %v594 = vpop.permute.xlu0 %593
        %597 = vset.pattern.permute.xlu0 0
        %598 = vperm.xlu0 %597, %v360
        %v599 = vpop.permute.xlu0 %598
        %v602 = vcombine.high %v264, %v264
        %vm603 = vcmask 31744
        %v605 = vsel %vm603, %v265, 0
        %v608 = vsel %vm603, %v266, 0
        %v611 = vsel %vm603, %v267, 0
        %v614 = vsel %vm603, %v268, 0
        %v617 = vsel %vm603, %v269, 0
        %v620 = vsel %vm603, %v270, 0
        %v623 = vsel %vm603, %v271, 0
        %v626 = vsel %vm603, %v272, 0
        %v629 = vsel %vm603, %v273, 0
        %v632 = vsel %vm603, %v274, 0
        %v635 = vsel %vm603, %v275, 0
        %v638 = vsel %vm603, %v276, 0
        %v641 = vsel %vm603, %v277, 0
        %v644 = vsel %vm603, %v278, 0
        %v647 = vsel %vm603, %v279, 0
        %v650 = vsel %vm603, %v280, 0
        %v653 = vsel %vm603, %v281, 0
        %v656 = vsel %vm603, %v282, 0
        %v659 = vsel %vm603, %v283, 0
        %v662 = vsel %vm603, %v284, 0
        %v665 = vsel %vm603, %v285, 0
        %v668 = vsel %vm603, %v286, 0
        %v671 = vsel %vm603, %v287, 0
        %v674 = vsel %vm603, %v288, 0
        %v677 = vsel %vm603, %v289, 0
        %v680 = vsel %vm603, %v290, 0
        %v683 = vsel %vm603, %v291, 0
        %v686 = vsel %vm603, %v292, 0
        %v689 = vsel %vm603, %v293, 0
        %v692 = vsel %vm603, %v294, 0
        %v695 = vsel %vm603, %v295, 0
        %v698 = vsel %vm603, %v296, 0
        %v701 = vsel %vm603, %v297, 0
        %v704 = vsel %vm603, %v298, 0
        %v707 = vsel %vm603, %v299, 0
        %v710 = vsel %vm603, %v300, 0
        %v713 = vsel %vm603, %v301, 0
        %v716 = vsel %vm603, %v302, 0
        %v719 = vsel %vm603, %v303, 0
        %v722 = vsel %vm603, %v304, 0
        %v725 = vsel %vm603, %v305, 0
        %v728 = vsel %vm603, %v306, 0
        %v731 = vsel %vm603, %v307, 0
        %v734 = vsel %vm603, %v308, 0
        %v737 = vsel %vm603, %v309, 0
        %v740 = vsel %vm603, %v310, 0
        %v743 = vsel %vm603, %v311, 0
        %v746 = vsel %vm603, %v312, 0
        %v748 = vsel %vm227, %v264, 0
        %v750 = vsel %vm227, %v602, 0
        %752 = vmatprep.subr.mxu0 0.0
        %753 = vmatpush1.msra.mxu0 0.0
        %754 = vmatprep.subr.mxu0 0.0
        %755 = vmatpush1.msra.mxu0 0.0
        %756 = vmatprep.subr.mxu0 0.0
        %757 = vmatpush1.msra.mxu0 0.0
        %758 = vmatprep.subr.mxu0 0.0
        %759 = vmatpush1.msra.mxu0 0.0
        %760 = vmatprep.subr.mxu0 0.0
        %761 = vmatpush1.msra.mxu0 0.0
        %762 = vmatprep.subr.mxu0 0.0
        %763 = vmatpush1.msra.mxu0 0.0
        %764 = vmatprep.subr.mxu0 0.0
        %765 = vmatpush1.msra.mxu0 0.0
        %766 = vmatprep.subr.mxu0 0.0
        %767 = vmatpush1.msra.mxu0 0.0
        %768 = vmatprep.subr.mxu0 0.0
        %769 = vmatpush1.msra.mxu0 0.0
        %770 = vmatprep.subr.mxu0 0.0
        %771 = vmatpush1.msra.mxu0 0.0
        %772 = vmatprep.subr.mxu0 0.0
        %773 = vmatpush1.msra.mxu0 0.0
        %774 = vmatprep.subr.mxu0 0.0
        %775 = vmatpush1.msra.mxu0 0.0
        %776 = vmatprep.subr.mxu0 0.0
        %777 = vmatpush1.msra.mxu0 0.0
        %778 = vmatprep.subr.mxu0 0.0
        %779 = vmatpush1.msra.mxu0 0.0
        %780 = vmatprep.subr.mxu0 0.0
        %781 = vmatpush1.msra.mxu0 0.0
        %782 = vmatprep.subr.mxu0 %v750
        %783 = vmatpush1.msra.mxu0 %v748
        %784 = vmatprep.subr.mxu0 0.0
        %785 = vmatpush2.msra.mxu0 0.0
        %786 = vmatprep.subr.mxu0 0.0
        %787 = vmatpush2.msra.mxu0 0.0
        %788 = vmatprep.subr.mxu0 0.0
        %789 = vmatpush2.msra.mxu0 0.0
        %790 = vmatprep.subr.mxu0 0.0
        %791 = vmatpush2.msra.mxu0 0.0
        %792 = vmatprep.subr.mxu0 0.0
        %793 = vmatpush2.msra.mxu0 0.0
        %794 = vmatprep.subr.mxu0 0.0
        %795 = vmatpush2.msra.mxu0 0.0
        %796 = vmatprep.subr.mxu0 0.0
        %797 = vmatpush2.msra.mxu0 0.0
        %798 = vmatprep.subr.mxu0 0.0
        %799 = vmatpush2.msra.mxu0 0.0
        %800 = vmatprep.subr.mxu0 0.0
        %801 = vmatpush2.msra.mxu0 0.0
        %802 = vmatprep.subr.mxu0 0.0
        %803 = vmatpush2.msra.mxu0 0.0
        %804 = vmatprep.subr.mxu0 0.0
        %805 = vmatpush2.msra.mxu0 0.0
        %806 = vmatprep.subr.mxu0 0.0
        %807 = vmatpush2.msra.mxu0 0.0
        %808 = vmatprep.subr.mxu0 0.0
        %809 = vmatpush2.msra.mxu0 0.0
        %810 = vmatprep.subr.mxu0 0.0
        %811 = vmatpush2.msra.mxu0 0.0
        %812 = vmatprep.subr.mxu0 0.0
        %813 = vmatpush2.msra.mxu0 0.0
        %814 = vmatprep.subr.mxu0 0.0
        %815 = vmatpush2.msra.mxu0 0.0
        %816 = vmatprep.mubr.f32.mxu0 0.0
        %817 = vmatmul.mubr.f32.gmra.mxu0 %v605
        %v818 = vpop.f32.mrf.mxu0
        %v819 = vadd.f32 %v364, %v818
        %v820 = vpop.f32.mrf.mxu0
        %v821 = vadd.f32 %v364, %v820
        %822 = vmatprep.mubr.f32.mxu0 0.0
        %823 = vmatmul.mubr.f32.gmra.mxu0 %v608
        %v824 = vpop.f32.mrf.mxu0
        %v825 = vadd.f32 %v369, %v824
        %v826 = vpop.f32.mrf.mxu0
        %v827 = vadd.f32 %v369, %v826
        %828 = vmatprep.mubr.f32.mxu0 0.0
        %829 = vmatmul.mubr.f32.gmra.mxu0 %v611
        %v830 = vpop.f32.mrf.mxu0
        %v831 = vadd.f32 %v374, %v830
        %v832 = vpop.f32.mrf.mxu0
        %v833 = vadd.f32 %v374, %v832
        %834 = vmatprep.mubr.f32.mxu0 0.0
        %835 = vmatmul.mubr.f32.gmra.mxu0 %v614
        %v836 = vpop.f32.mrf.mxu0
        %v837 = vadd.f32 %v379, %v836
        %v838 = vpop.f32.mrf.mxu0
        %v839 = vadd.f32 %v379, %v838
        %840 = vmatprep.mubr.f32.mxu0 0.0
        %841 = vmatmul.mubr.f32.gmra.mxu0 %v617
        %v842 = vpop.f32.mrf.mxu0
        %v843 = vadd.f32 %v384, %v842
        %v844 = vpop.f32.mrf.mxu0
        %v845 = vadd.f32 %v384, %v844
        %846 = vmatprep.mubr.f32.mxu0 0.0
        %847 = vmatmul.mubr.f32.gmra.mxu0 %v620
        %v848 = vpop.f32.mrf.mxu0
        %v849 = vadd.f32 %v389, %v848
        %v850 = vpop.f32.mrf.mxu0
        %v851 = vadd.f32 %v389, %v850
        %852 = vmatprep.mubr.f32.mxu0 0.0
        %853 = vmatmul.mubr.f32.gmra.mxu0 %v623
        %v854 = vpop.f32.mrf.mxu0
        %v855 = vadd.f32 %v394, %v854
        %v856 = vpop.f32.mrf.mxu0
        %v857 = vadd.f32 %v394, %v856
        %858 = vmatprep.mubr.f32.mxu0 0.0
        %859 = vmatmul.mubr.f32.gmra.mxu0 %v626
        %v860 = vpop.f32.mrf.mxu0
        %v861 = vadd.f32 %v399, %v860
        %v862 = vpop.f32.mrf.mxu0
        %v863 = vadd.f32 %v399, %v862
        %864 = vmatprep.mubr.f32.mxu0 0.0
        %865 = vmatmul.mubr.f32.gmra.mxu0 %v629
        %v866 = vpop.f32.mrf.mxu0
        %v867 = vadd.f32 %v404, %v866
        %v868 = vpop.f32.mrf.mxu0
        %v869 = vadd.f32 %v404, %v868
        %870 = vmatprep.mubr.f32.mxu0 0.0
        %871 = vmatmul.mubr.f32.gmra.mxu0 %v632
        %v872 = vpop.f32.mrf.mxu0
        %v873 = vadd.f32 %v409, %v872
        %v874 = vpop.f32.mrf.mxu0
        %v875 = vadd.f32 %v409, %v874
        %876 = vmatprep.mubr.f32.mxu0 0.0
        %877 = vmatmul.mubr.f32.gmra.mxu0 %v635
        %v878 = vpop.f32.mrf.mxu0
        %v879 = vadd.f32 %v414, %v878
        %v880 = vpop.f32.mrf.mxu0
        %v881 = vadd.f32 %v414, %v880
        %882 = vmatprep.mubr.f32.mxu0 0.0
        %883 = vmatmul.mubr.f32.gmra.mxu0 %v638
        %v884 = vpop.f32.mrf.mxu0
        %v885 = vadd.f32 %v419, %v884
        %v886 = vpop.f32.mrf.mxu0
        %v887 = vadd.f32 %v419, %v886
        %888 = vmatprep.mubr.f32.mxu0 0.0
        %889 = vmatmul.mubr.f32.gmra.mxu0 %v641
        %v890 = vpop.f32.mrf.mxu0
        %v891 = vadd.f32 %v424, %v890
        %v892 = vpop.f32.mrf.mxu0
        %v893 = vadd.f32 %v424, %v892
        %894 = vmatprep.mubr.f32.mxu0 0.0
        %895 = vmatmul.mubr.f32.gmra.mxu0 %v644
        %v896 = vpop.f32.mrf.mxu0
        %v897 = vadd.f32 %v429, %v896
        %v898 = vpop.f32.mrf.mxu0
        %v899 = vadd.f32 %v429, %v898
        %900 = vmatprep.mubr.f32.mxu0 0.0
        %901 = vmatmul.mubr.f32.gmra.mxu0 %v647
        %v902 = vpop.f32.mrf.mxu0
        %v903 = vadd.f32 %v434, %v902
        %v904 = vpop.f32.mrf.mxu0
        %v905 = vadd.f32 %v434, %v904
        %906 = vmatprep.mubr.f32.mxu0 0.0
        %907 = vmatmul.mubr.f32.gmra.mxu0 %v650
        %v908 = vpop.f32.mrf.mxu0
        %v909 = vadd.f32 %v439, %v908
        %v910 = vpop.f32.mrf.mxu0
        %v911 = vadd.f32 %v439, %v910
        %912 = vmatprep.mubr.f32.mxu0 0.0
        %913 = vmatmul.mubr.f32.gmra.mxu0 %v653
        %v914 = vpop.f32.mrf.mxu0
        %v915 = vadd.f32 %v444, %v914
        %v916 = vpop.f32.mrf.mxu0
        %v917 = vadd.f32 %v444, %v916
        %918 = vmatprep.mubr.f32.mxu0 0.0
        %919 = vmatmul.mubr.f32.gmra.mxu0 %v656
        %v920 = vpop.f32.mrf.mxu0
        %v921 = vadd.f32 %v449, %v920
        %v922 = vpop.f32.mrf.mxu0
        %v923 = vadd.f32 %v449, %v922
        %924 = vmatprep.mubr.f32.mxu0 0.0
        %925 = vmatmul.mubr.f32.gmra.mxu0 %v659
        %v926 = vpop.f32.mrf.mxu0
        %v927 = vadd.f32 %v454, %v926
        %v928 = vpop.f32.mrf.mxu0
        %v929 = vadd.f32 %v454, %v928
        %930 = vmatprep.mubr.f32.mxu0 0.0
        %931 = vmatmul.mubr.f32.gmra.mxu0 %v662
        %v932 = vpop.f32.mrf.mxu0
        %v933 = vadd.f32 %v459, %v932
        %v934 = vpop.f32.mrf.mxu0
        %v935 = vadd.f32 %v459, %v934
        %936 = vmatprep.mubr.f32.mxu0 0.0
        %937 = vmatmul.mubr.f32.gmra.mxu0 %v665
        %v938 = vpop.f32.mrf.mxu0
        %v939 = vadd.f32 %v464, %v938
        %v940 = vpop.f32.mrf.mxu0
        %v941 = vadd.f32 %v464, %v940
        %942 = vmatprep.mubr.f32.mxu0 0.0
        %943 = vmatmul.mubr.f32.gmra.mxu0 %v668
        %v944 = vpop.f32.mrf.mxu0
        %v945 = vadd.f32 %v469, %v944
        %v946 = vpop.f32.mrf.mxu0
        %v947 = vadd.f32 %v469, %v946
        %948 = vmatprep.mubr.f32.mxu0 0.0
        %949 = vmatmul.mubr.f32.gmra.mxu0 %v671
        %v950 = vpop.f32.mrf.mxu0
        %v951 = vadd.f32 %v474, %v950
        %v952 = vpop.f32.mrf.mxu0
        %v953 = vadd.f32 %v474, %v952
        %954 = vmatprep.mubr.f32.mxu0 0.0
        %955 = vmatmul.mubr.f32.gmra.mxu0 %v674
        %v956 = vpop.f32.mrf.mxu0
        %v957 = vadd.f32 %v479, %v956
        %v958 = vpop.f32.mrf.mxu0
        %v959 = vadd.f32 %v479, %v958
        %960 = vmatprep.mubr.f32.mxu0 0.0
        %961 = vmatmul.mubr.f32.gmra.mxu0 %v677
        %v962 = vpop.f32.mrf.mxu0
        %v963 = vadd.f32 %v484, %v962
        %v964 = vpop.f32.mrf.mxu0
        %v965 = vadd.f32 %v484, %v964
        %966 = vmatprep.mubr.f32.mxu0 0.0
        %967 = vmatmul.mubr.f32.gmra.mxu0 %v680
        %v968 = vpop.f32.mrf.mxu0
        %v969 = vadd.f32 %v489, %v968
        %v970 = vpop.f32.mrf.mxu0
        %v971 = vadd.f32 %v489, %v970
        %972 = vmatprep.mubr.f32.mxu0 0.0
        %973 = vmatmul.mubr.f32.gmra.mxu0 %v683
        %v974 = vpop.f32.mrf.mxu0
        %v975 = vadd.f32 %v494, %v974
        %v976 = vpop.f32.mrf.mxu0
        %v977 = vadd.f32 %v494, %v976
        %978 = vmatprep.mubr.f32.mxu0 0.0
        %979 = vmatmul.mubr.f32.gmra.mxu0 %v686
        %v980 = vpop.f32.mrf.mxu0
        %v981 = vadd.f32 %v499, %v980
        %v982 = vpop.f32.mrf.mxu0
        %v983 = vadd.f32 %v499, %v982
        %984 = vmatprep.mubr.f32.mxu0 0.0
        %985 = vmatmul.mubr.f32.gmra.mxu0 %v689
        %v986 = vpop.f32.mrf.mxu0
        %v987 = vadd.f32 %v504, %v986
        %v988 = vpop.f32.mrf.mxu0
        %v989 = vadd.f32 %v504, %v988
        %990 = vmatprep.mubr.f32.mxu0 0.0
        %991 = vmatmul.mubr.f32.gmra.mxu0 %v692
        %v992 = vpop.f32.mrf.mxu0
        %v993 = vadd.f32 %v509, %v992
        %v994 = vpop.f32.mrf.mxu0
        %v995 = vadd.f32 %v509, %v994
        %996 = vmatprep.mubr.f32.mxu0 0.0
        %997 = vmatmul.mubr.f32.gmra.mxu0 %v695
        %v998 = vpop.f32.mrf.mxu0
        %v999 = vadd.f32 %v514, %v998
        %v1000 = vpop.f32.mrf.mxu0
        %v1001 = vadd.f32 %v514, %v1000
        %1002 = vmatprep.mubr.f32.mxu0 0.0
        %1003 = vmatmul.mubr.f32.gmra.mxu0 %v698
        %v1004 = vpop.f32.mrf.mxu0
        %v1005 = vadd.f32 %v519, %v1004
        %v1006 = vpop.f32.mrf.mxu0
        %v1007 = vadd.f32 %v519, %v1006
        %1008 = vmatprep.mubr.f32.mxu0 0.0
        %1009 = vmatmul.mubr.f32.gmra.mxu0 %v701
        %v1010 = vpop.f32.mrf.mxu0
        %v1011 = vadd.f32 %v524, %v1010
        %v1012 = vpop.f32.mrf.mxu0
        %v1013 = vadd.f32 %v524, %v1012
        %1014 = vmatprep.mubr.f32.mxu0 0.0
        %1015 = vmatmul.mubr.f32.gmra.mxu0 %v704
        %v1016 = vpop.f32.mrf.mxu0
        %v1017 = vadd.f32 %v529, %v1016
        %v1018 = vpop.f32.mrf.mxu0
        %v1019 = vadd.f32 %v529, %v1018
        %1020 = vmatprep.mubr.f32.mxu0 0.0
        %1021 = vmatmul.mubr.f32.gmra.mxu0 %v707
        %v1022 = vpop.f32.mrf.mxu0
        %v1023 = vadd.f32 %v534, %v1022
        %v1024 = vpop.f32.mrf.mxu0
        %v1025 = vadd.f32 %v534, %v1024
        %1026 = vmatprep.mubr.f32.mxu0 0.0
        %1027 = vmatmul.mubr.f32.gmra.mxu0 %v710
        %v1028 = vpop.f32.mrf.mxu0
        %v1029 = vadd.f32 %v539, %v1028
        %v1030 = vpop.f32.mrf.mxu0
        %v1031 = vadd.f32 %v539, %v1030
        %1032 = vmatprep.mubr.f32.mxu0 0.0
        %1033 = vmatmul.mubr.f32.gmra.mxu0 %v713
        %v1034 = vpop.f32.mrf.mxu0
        %v1035 = vadd.f32 %v544, %v1034
        %v1036 = vpop.f32.mrf.mxu0
        %v1037 = vadd.f32 %v544, %v1036
        %1038 = vmatprep.mubr.f32.mxu0 0.0
        %1039 = vmatmul.mubr.f32.gmra.mxu0 %v716
        %v1040 = vpop.f32.mrf.mxu0
        %v1041 = vadd.f32 %v549, %v1040
        %v1042 = vpop.f32.mrf.mxu0
        %v1043 = vadd.f32 %v549, %v1042
        %1044 = vmatprep.mubr.f32.mxu0 0.0
        %1045 = vmatmul.mubr.f32.gmra.mxu0 %v719
        %v1046 = vpop.f32.mrf.mxu0
        %v1047 = vadd.f32 %v554, %v1046
        %v1048 = vpop.f32.mrf.mxu0
        %v1049 = vadd.f32 %v554, %v1048
        %1050 = vmatprep.mubr.f32.mxu0 0.0
        %1051 = vmatmul.mubr.f32.gmra.mxu0 %v722
        %v1052 = vpop.f32.mrf.mxu0
        %v1053 = vadd.f32 %v559, %v1052
        %v1054 = vpop.f32.mrf.mxu0
        %v1055 = vadd.f32 %v559, %v1054
        %1056 = vmatprep.mubr.f32.mxu0 0.0
        %1057 = vmatmul.mubr.f32.gmra.mxu0 %v725
        %v1058 = vpop.f32.mrf.mxu0
        %v1059 = vadd.f32 %v564, %v1058
        %v1060 = vpop.f32.mrf.mxu0
        %v1061 = vadd.f32 %v564, %v1060
        %1062 = vmatprep.mubr.f32.mxu0 0.0
        %1063 = vmatmul.mubr.f32.gmra.mxu0 %v728
        %v1064 = vpop.f32.mrf.mxu0
        %v1065 = vadd.f32 %v569, %v1064
        %v1066 = vpop.f32.mrf.mxu0
        %v1067 = vadd.f32 %v569, %v1066
        %1068 = vmatprep.mubr.f32.mxu0 0.0
        %1069 = vmatmul.mubr.f32.gmra.mxu0 %v731
        %v1070 = vpop.f32.mrf.mxu0
        %v1071 = vadd.f32 %v574, %v1070
        %v1072 = vpop.f32.mrf.mxu0
        %v1073 = vadd.f32 %v574, %v1072
        %1074 = vmatprep.mubr.f32.mxu0 0.0
        %1075 = vmatmul.mubr.f32.gmra.mxu0 %v734
        %v1076 = vpop.f32.mrf.mxu0
        %v1077 = vadd.f32 %v579, %v1076
        %v1078 = vpop.f32.mrf.mxu0
        %v1079 = vadd.f32 %v579, %v1078
        %1080 = vmatprep.mubr.f32.mxu0 0.0
        %1081 = vmatmul.mubr.f32.gmra.mxu0 %v737
        %v1082 = vpop.f32.mrf.mxu0
        %v1083 = vadd.f32 %v584, %v1082
        %v1084 = vpop.f32.mrf.mxu0
        %v1085 = vadd.f32 %v584, %v1084
        %1086 = vmatprep.mubr.f32.mxu0 0.0
        %1087 = vmatmul.mubr.f32.gmra.mxu0 %v740
        %v1088 = vpop.f32.mrf.mxu0
        %v1089 = vadd.f32 %v589, %v1088
        %v1090 = vpop.f32.mrf.mxu0
        %v1091 = vadd.f32 %v589, %v1090
        %1092 = vmatprep.mubr.f32.mxu0 0.0
        %1093 = vmatmul.mubr.f32.gmra.mxu0 %v743
        %v1094 = vpop.f32.mrf.mxu0
        %v1095 = vadd.f32 %v594, %v1094
        %v1096 = vpop.f32.mrf.mxu0
        %v1097 = vadd.f32 %v594, %v1096
        %1098 = vmatprep.mubr.f32.mxu0 0.0
        %1099 = vmatmul.mubr.f32.gmra.mxu0 %v746
        %v1100 = vpop.f32.mrf.mxu0
        %v1101 = vadd.f32 %v599, %v1100
        %v1102 = vpop.f32.mrf.mxu0
        %v1103 = vadd.f32 %v599, %v1102
        %1104 = vdwg.mxu0
        %1105 = vxpose.xlu0.b32.start [1/16] %v915, 128
        %1106 = vxpose.xlu0.b32.cont [2/16] %v921, 128
        %1107 = vxpose.xlu0.b32.cont [3/16] %v927, 128
        %1108 = vxpose.xlu0.b32.cont [4/16] %v933, 128
        %1109 = vxpose.xlu0.b32.cont [5/16] 0.0, 128
        %1110 = vxpose.xlu0.b32.cont [6/16] 0.0, 128
        %1111 = vxpose.xlu0.b32.cont [7/16] 0.0, 128
        %1112 = vxpose.xlu0.b32.cont [8/16] 0.0, 128
        %1113 = vxpose.xlu0.b32.cont [9/16] 0.0, 128
        %1114 = vxpose.xlu0.b32.cont [10/16] 0.0, 128
        %1115 = vxpose.xlu0.b32.cont [11/16] 0.0, 128
        %1116 = vxpose.xlu0.b32.cont [12/16] 0.0, 128
        %1117 = vxpose.xlu0.b32.cont [13/16] 0.0, 128
        %1118 = vxpose.xlu0.b32.cont [14/16] 0.0, 128
        %1119 = vxpose.xlu0.b32.cont [15/16] 0.0, 128
        %1120 = vxpose.xlu0.b32.end [16/16] 0.0, 128
        %v1121 = vpop.trf.xlu0
        %v1122 = vpop.trf.xlu0
        %v1123 = vpop.trf.xlu0
        %v1124 = vpop.trf.xlu0
        %v1125 = vpop.trf.xlu0
        %v1126 = vpop.trf.xlu0
        %v1127 = vpop.trf.xlu0
        %v1128 = vpop.trf.xlu0
        %v1129 = vpop.trf.xlu0
        %v1130 = vpop.trf.xlu0
        %v1131 = vpop.trf.xlu0
        %v1132 = vpop.trf.xlu0
        %v1133 = vpop.trf.xlu0
        %v1134 = vpop.trf.xlu0
        %v1135 = vpop.trf.xlu0
        %v1136 = vpop.trf.xlu0
        %1137 = vxpose.xlu0.b32.start [1/16] %v917, 128
        %1138 = vxpose.xlu0.b32.cont [2/16] %v923, 128
        %1139 = vxpose.xlu0.b32.cont [3/16] %v929, 128
        %1140 = vxpose.xlu0.b32.cont [4/16] %v935, 128
        %1141 = vxpose.xlu0.b32.cont [5/16] 0.0, 128
        %1142 = vxpose.xlu0.b32.cont [6/16] 0.0, 128
        %1143 = vxpose.xlu0.b32.cont [7/16] 0.0, 128
        %1144 = vxpose.xlu0.b32.cont [8/16] 0.0, 128
        %1145 = vxpose.xlu0.b32.cont [9/16] 0.0, 128
        %1146 = vxpose.xlu0.b32.cont [10/16] 0.0, 128
        %1147 = vxpose.xlu0.b32.cont [11/16] 0.0, 128
        %1148 = vxpose.xlu0.b32.cont [12/16] 0.0, 128
        %1149 = vxpose.xlu0.b32.cont [13/16] 0.0, 128
        %1150 = vxpose.xlu0.b32.cont [14/16] 0.0, 128
        %1151 = vxpose.xlu0.b32.cont [15/16] 0.0, 128
        %1152 = vxpose.xlu0.b32.end [16/16] 0.0, 128
        %v1153 = vpop.trf.xlu0
        %v1154 = vpop.trf.xlu0
        %v1155 = vpop.trf.xlu0
        %v1156 = vpop.trf.xlu0
        %v1157 = vpop.trf.xlu0
        %v1158 = vpop.trf.xlu0
        %v1159 = vpop.trf.xlu0
        %v1160 = vpop.trf.xlu0
        %v1161 = vpop.trf.xlu0
        %v1162 = vpop.trf.xlu0
        %v1163 = vpop.trf.xlu0
        %v1164 = vpop.trf.xlu0
        %v1165 = vpop.trf.xlu0
        %v1166 = vpop.trf.xlu0
        %v1167 = vpop.trf.xlu0
        %v1168 = vpop.trf.xlu0
        %vm1169 = vcmask 261120
        %v1171 = vsel %vm1169, %v1121, 0
        %v1174 = vsel %vm1169, %v1122, 0
        %v1177 = vsel %vm1169, %v1123, 0
        %v1180 = vsel %vm1169, %v1124, 0
        %v1183 = vsel %vm1169, %v1125, 0
        %v1186 = vsel %vm1169, %v1126, 0
        %v1189 = vsel %vm1169, %v1127, 0
        %v1192 = vsel %vm1169, %v1128, 0
        %v1195 = vsel %vm1169, %v1129, 0
        %v1198 = vsel %vm1169, %v1130, 0
        %v1201 = vsel %vm1169, %v1131, 0
        %v1204 = vsel %vm1169, %v1132, 0
        %v1207 = vsel %vm1169, %v1133, 0
        %v1210 = vsel %vm1169, %v1134, 0
        %v1213 = vsel %vm1169, %v1135, 0
        %v1216 = vsel %vm1169, %v1136, 0
        %v1219 = vsel %vm1169, %v1153, 0
        %v1222 = vsel %vm1169, %v1154, 0
        %v1225 = vsel %vm1169, %v1155, 0
        %v1228 = vsel %vm1169, %v1156, 0
        %v1231 = vsel %vm1169, %v1157, 0
        %v1234 = vsel %vm1169, %v1158, 0
        %v1237 = vsel %vm1169, %v1159, 0
        %v1240 = vsel %vm1169, %v1160, 0
        %v1243 = vsel %vm1169, %v1161, 0
        %v1246 = vsel %vm1169, %v1162, 0
        %v1249 = vsel %vm1169, %v1163, 0
        %v1252 = vsel %vm1169, %v1164, 0
        %v1255 = vsel %vm1169, %v1165, 0
        %v1258 = vsel %vm1169, %v1166, 0
        %v1261 = vsel %vm1169, %v1167, 0
        %v1264 = vsel %vm1169, %v1168, 0
        %1266 = vmatprep.subr.mxu0 0.0
        %1267 = vmatpush1.msra.mxu0 0.0
        %1268 = vmatprep.subr.mxu0 0.0
        %1269 = vmatpush1.msra.mxu0 0.0
        %1270 = vmatprep.subr.mxu0 0.0
        %1271 = vmatpush1.msra.mxu0 0.0
        %1272 = vmatprep.subr.mxu0 0.0
        %1273 = vmatpush1.msra.mxu0 0.0
        %1274 = vmatprep.subr.mxu0 0.0
        %1275 = vmatpush1.msra.mxu0 0.0
        %1276 = vmatprep.subr.mxu0 0.0
        %1277 = vmatpush1.msra.mxu0 0.0
        %1278 = vmatprep.subr.mxu0 0.0
        %1279 = vmatpush1.msra.mxu0 0.0
        %1280 = vmatprep.subr.mxu0 0.0
        %1281 = vmatpush1.msra.mxu0 0.0
        %1282 = vmatprep.subr.mxu0 0.0
        %1283 = vmatpush1.msra.mxu0 0.0
        %1284 = vmatprep.subr.mxu0 0.0
        %1285 = vmatpush1.msra.mxu0 0.0
        %1286 = vmatprep.subr.mxu0 0.0
        %1287 = vmatpush1.msra.mxu0 0.0
        %1288 = vmatprep.subr.mxu0 0.0
        %1289 = vmatpush1.msra.mxu0 0.0
        %1290 = vmatprep.subr.mxu0 %v839
        %1291 = vmatpush1.msra.mxu0 %v837
        %1292 = vmatprep.subr.mxu0 %v833
        %1293 = vmatpush1.msra.mxu0 %v831
        %1294 = vmatprep.subr.mxu0 %v827
        %1295 = vmatpush1.msra.mxu0 %v825
        %1296 = vmatprep.subr.mxu0 %v821
        %1297 = vmatpush1.msra.mxu0 %v819
        %1298 = vmatprep.subr.mxu0 0.0
        %1299 = vmatpush2.msra.mxu0 0.0
        %1300 = vmatprep.subr.mxu0 0.0
        %1301 = vmatpush2.msra.mxu0 0.0
        %1302 = vmatprep.subr.mxu0 0.0
        %1303 = vmatpush2.msra.mxu0 0.0
        %1304 = vmatprep.subr.mxu0 0.0
        %1305 = vmatpush2.msra.mxu0 0.0
        %1306 = vmatprep.subr.mxu0 0.0
        %1307 = vmatpush2.msra.mxu0 0.0
        %1308 = vmatprep.subr.mxu0 0.0
        %1309 = vmatpush2.msra.mxu0 0.0
        %1310 = vmatprep.subr.mxu0 0.0
        %1311 = vmatpush2.msra.mxu0 0.0
        %1312 = vmatprep.subr.mxu0 0.0
        %1313 = vmatpush2.msra.mxu0 0.0
        %1314 = vmatprep.subr.mxu0 0.0
        %1315 = vmatpush2.msra.mxu0 0.0
        %1316 = vmatprep.subr.mxu0 0.0
        %1317 = vmatpush2.msra.mxu0 0.0
        %1318 = vmatprep.subr.mxu0 0.0
        %1319 = vmatpush2.msra.mxu0 0.0
        %1320 = vmatprep.subr.mxu0 0.0
        %1321 = vmatpush2.msra.mxu0 0.0
        %1322 = vmatprep.subr.mxu0 0.0
        %1323 = vmatpush2.msra.mxu0 0.0
        %1324 = vmatprep.subr.mxu0 0.0
        %1325 = vmatpush2.msra.mxu0 0.0
        %1326 = vmatprep.subr.mxu0 0.0
        %1327 = vmatpush2.msra.mxu0 0.0
        %1328 = vmatprep.subr.mxu0 0.0
        %1329 = vmatpush2.msra.mxu0 0.0
        %1330 = vmatprep.mubr.f32.mxu0 0.0
        %1331 = vmatmul.mubr.f32.gmra.mxu0 %v1171
        %v1332 = vpop.f32.mrf.mxu0
        %v1333 = vadd.f32 0.0, %v1332
        %v1334 = vpop.f32.mrf.mxu0
        %v1335 = vadd.f32 0.0, %v1334
        %1336 = vmatprep.mubr.f32.mxu0 0.0
        %1337 = vmatmul.mubr.f32.gmra.mxu0 %v1174
        %v1338 = vpop.f32.mrf.mxu0
        %v1339 = vadd.f32 0.0, %v1338
        %v1340 = vpop.f32.mrf.mxu0
        %v1341 = vadd.f32 0.0, %v1340
        %1342 = vmatprep.mubr.f32.mxu0 0.0
        %1343 = vmatmul.mubr.f32.gmra.mxu0 %v1177
        %v1344 = vpop.f32.mrf.mxu0
        %v1345 = vadd.f32 0.0, %v1344
        %v1346 = vpop.f32.mrf.mxu0
        %v1347 = vadd.f32 0.0, %v1346
        %1348 = vmatprep.mubr.f32.mxu0 0.0
        %1349 = vmatmul.mubr.f32.gmra.mxu0 %v1180
        %v1350 = vpop.f32.mrf.mxu0
        %v1351 = vadd.f32 0.0, %v1350
        %v1352 = vpop.f32.mrf.mxu0
        %v1353 = vadd.f32 0.0, %v1352
        %1354 = vmatprep.mubr.f32.mxu0 0.0
        %1355 = vmatmul.mubr.f32.gmra.mxu0 %v1183
        %v1356 = vpop.f32.mrf.mxu0
        %v1357 = vadd.f32 0.0, %v1356
        %v1358 = vpop.f32.mrf.mxu0
        %v1359 = vadd.f32 0.0, %v1358
        %1360 = vmatprep.mubr.f32.mxu0 0.0
        %1361 = vmatmul.mubr.f32.gmra.mxu0 %v1186
        %v1362 = vpop.f32.mrf.mxu0
        %v1363 = vadd.f32 0.0, %v1362
        %v1364 = vpop.f32.mrf.mxu0
        %v1365 = vadd.f32 0.0, %v1364
        %1366 = vmatprep.mubr.f32.mxu0 0.0
        %1367 = vmatmul.mubr.f32.gmra.mxu0 %v1189
        %v1368 = vpop.f32.mrf.mxu0
        %v1369 = vadd.f32 0.0, %v1368
        %v1370 = vpop.f32.mrf.mxu0
        %v1371 = vadd.f32 0.0, %v1370
        %1372 = vmatprep.mubr.f32.mxu0 0.0
        %1373 = vmatmul.mubr.f32.gmra.mxu0 %v1192
        %v1374 = vpop.f32.mrf.mxu0
        %v1375 = vadd.f32 0.0, %v1374
        %v1376 = vpop.f32.mrf.mxu0
        %v1377 = vadd.f32 0.0, %v1376
        %1378 = vmatprep.mubr.f32.mxu0 0.0
        %1379 = vmatmul.mubr.f32.gmra.mxu0 %v1195
        %v1380 = vpop.f32.mrf.mxu0
        %v1381 = vadd.f32 0.0, %v1380
        %v1382 = vpop.f32.mrf.mxu0
        %v1383 = vadd.f32 0.0, %v1382
        %1384 = vmatprep.mubr.f32.mxu0 0.0
        %1385 = vmatmul.mubr.f32.gmra.mxu0 %v1198
        %v1386 = vpop.f32.mrf.mxu0
        %v1387 = vadd.f32 0.0, %v1386
        %v1388 = vpop.f32.mrf.mxu0
        %v1389 = vadd.f32 0.0, %v1388
        %1390 = vmatprep.mubr.f32.mxu0 0.0
        %1391 = vmatmul.mubr.f32.gmra.mxu0 %v1201
        %v1392 = vpop.f32.mrf.mxu0
        %v1393 = vadd.f32 0.0, %v1392
        %v1394 = vpop.f32.mrf.mxu0
        %v1395 = vadd.f32 0.0, %v1394
        %1396 = vmatprep.mubr.f32.mxu0 0.0
        %1397 = vmatmul.mubr.f32.gmra.mxu0 %v1204
        %v1398 = vpop.f32.mrf.mxu0
        %v1399 = vadd.f32 0.0, %v1398
        %v1400 = vpop.f32.mrf.mxu0
        %v1401 = vadd.f32 0.0, %v1400
        %1402 = vmatprep.mubr.f32.mxu0 0.0
        %1403 = vmatmul.mubr.f32.gmra.mxu0 %v1207
        %v1404 = vpop.f32.mrf.mxu0
        %v1405 = vadd.f32 0.0, %v1404
        %v1406 = vpop.f32.mrf.mxu0
        %v1407 = vadd.f32 0.0, %v1406
        %1408 = vmatprep.mubr.f32.mxu0 0.0
        %1409 = vmatmul.mubr.f32.gmra.mxu0 %v1210
        %v1410 = vpop.f32.mrf.mxu0
        %v1411 = vadd.f32 0.0, %v1410
        %v1412 = vpop.f32.mrf.mxu0
        %v1413 = vadd.f32 0.0, %v1412
        %1414 = vmatprep.mubr.f32.mxu0 0.0
        %1415 = vmatmul.mubr.f32.gmra.mxu0 %v1213
        %v1416 = vpop.f32.mrf.mxu0
        %v1417 = vadd.f32 0.0, %v1416
        %v1418 = vpop.f32.mrf.mxu0
        %v1419 = vadd.f32 0.0, %v1418
        %1420 = vmatprep.mubr.f32.mxu0 0.0
        %1421 = vmatmul.mubr.f32.gmra.mxu0 %v1216
        %v1422 = vpop.f32.mrf.mxu0
        %v1423 = vadd.f32 0.0, %v1422
        %v1424 = vpop.f32.mrf.mxu0
        %v1425 = vadd.f32 0.0, %v1424
        %1426 = vmatprep.mubr.f32.mxu0 0.0
        %1427 = vmatmul.mubr.f32.gmra.mxu0 %v1219
        %v1428 = vpop.f32.mrf.mxu0
        %v1429 = vadd.f32 0.0, %v1428
        %v1430 = vpop.f32.mrf.mxu0
        %v1431 = vadd.f32 0.0, %v1430
        %1432 = vmatprep.mubr.f32.mxu0 0.0
        %1433 = vmatmul.mubr.f32.gmra.mxu0 %v1222
        %v1434 = vpop.f32.mrf.mxu0
        %v1435 = vadd.f32 0.0, %v1434
        %v1436 = vpop.f32.mrf.mxu0
        %v1437 = vadd.f32 0.0, %v1436
        %1438 = vmatprep.mubr.f32.mxu0 0.0
        %1439 = vmatmul.mubr.f32.gmra.mxu0 %v1225
        %v1440 = vpop.f32.mrf.mxu0
        %v1441 = vadd.f32 0.0, %v1440
        %v1442 = vpop.f32.mrf.mxu0
        %v1443 = vadd.f32 0.0, %v1442
        %1444 = vmatprep.mubr.f32.mxu0 0.0
        %1445 = vmatmul.mubr.f32.gmra.mxu0 %v1228
        %v1446 = vpop.f32.mrf.mxu0
        %v1447 = vadd.f32 0.0, %v1446
        %v1448 = vpop.f32.mrf.mxu0
        %v1449 = vadd.f32 0.0, %v1448
        %1450 = vmatprep.mubr.f32.mxu0 0.0
        %1451 = vmatmul.mubr.f32.gmra.mxu0 %v1231
        %v1452 = vpop.f32.mrf.mxu0
        %v1453 = vadd.f32 0.0, %v1452
        %v1454 = vpop.f32.mrf.mxu0
        %v1455 = vadd.f32 0.0, %v1454
        %1456 = vmatprep.mubr.f32.mxu0 0.0
        %1457 = vmatmul.mubr.f32.gmra.mxu0 %v1234
        %v1458 = vpop.f32.mrf.mxu0
        %v1459 = vadd.f32 0.0, %v1458
        %v1460 = vpop.f32.mrf.mxu0
        %v1461 = vadd.f32 0.0, %v1460
        %1462 = vmatprep.mubr.f32.mxu0 0.0
        %1463 = vmatmul.mubr.f32.gmra.mxu0 %v1237
        %v1464 = vpop.f32.mrf.mxu0
        %v1465 = vadd.f32 0.0, %v1464
        %v1466 = vpop.f32.mrf.mxu0
        %v1467 = vadd.f32 0.0, %v1466
        %1468 = vmatprep.mubr.f32.mxu0 0.0
        %1469 = vmatmul.mubr.f32.gmra.mxu0 %v1240
        %v1470 = vpop.f32.mrf.mxu0
        %v1471 = vadd.f32 0.0, %v1470
        %v1472 = vpop.f32.mrf.mxu0
        %v1473 = vadd.f32 0.0, %v1472
        %1474 = vmatprep.mubr.f32.mxu0 0.0
        %1475 = vmatmul.mubr.f32.gmra.mxu0 %v1243
        %v1476 = vpop.f32.mrf.mxu0
        %v1477 = vadd.f32 0.0, %v1476
        %v1478 = vpop.f32.mrf.mxu0
        %v1479 = vadd.f32 0.0, %v1478
        %1480 = vmatprep.mubr.f32.mxu0 0.0
        %1481 = vmatmul.mubr.f32.gmra.mxu0 %v1246
        %v1482 = vpop.f32.mrf.mxu0
        %v1483 = vadd.f32 0.0, %v1482
        %v1484 = vpop.f32.mrf.mxu0
        %v1485 = vadd.f32 0.0, %v1484
        %1486 = vmatprep.mubr.f32.mxu0 0.0
        %1487 = vmatmul.mubr.f32.gmra.mxu0 %v1249
        %v1488 = vpop.f32.mrf.mxu0
        %v1489 = vadd.f32 0.0, %v1488
        %v1490 = vpop.f32.mrf.mxu0
        %v1491 = vadd.f32 0.0, %v1490
        %1492 = vmatprep.mubr.f32.mxu0 0.0
        %1493 = vmatmul.mubr.f32.gmra.mxu0 %v1252
        %v1494 = vpop.f32.mrf.mxu0
        %v1495 = vadd.f32 0.0, %v1494
        %v1496 = vpop.f32.mrf.mxu0
        %v1497 = vadd.f32 0.0, %v1496
        %1498 = vmatprep.mubr.f32.mxu0 0.0
        %1499 = vmatmul.mubr.f32.gmra.mxu0 %v1255
        %v1500 = vpop.f32.mrf.mxu0
        %v1501 = vadd.f32 0.0, %v1500
        %v1502 = vpop.f32.mrf.mxu0
        %v1503 = vadd.f32 0.0, %v1502
        %1504 = vmatprep.mubr.f32.mxu0 0.0
        %1505 = vmatmul.mubr.f32.gmra.mxu0 %v1258
        %v1506 = vpop.f32.mrf.mxu0
        %v1507 = vadd.f32 0.0, %v1506
        %v1508 = vpop.f32.mrf.mxu0
        %v1509 = vadd.f32 0.0, %v1508
        %1510 = vmatprep.mubr.f32.mxu0 0.0
        %1511 = vmatmul.mubr.f32.gmra.mxu0 %v1261
        %v1512 = vpop.f32.mrf.mxu0
        %v1513 = vadd.f32 0.0, %v1512
        %v1514 = vpop.f32.mrf.mxu0
        %v1515 = vadd.f32 0.0, %v1514
        %1516 = vmatprep.mubr.f32.mxu0 0.0
        %1517 = vmatmul.mubr.f32.gmra.mxu0 %v1264
        %v1518 = vpop.f32.mrf.mxu0
        %v1519 = vadd.f32 0.0, %v1518
        %v1520 = vpop.f32.mrf.mxu0
        %v1521 = vadd.f32 0.0, %v1520
        %1522 = vdwg.mxu0
        %v1523 = vmax.f32 %v1333, %v1345
        %v1524 = vmax.f32 %v1339, %v1351
        %v1525 = vmax.f32 %v1523, %v1357
        %v1526 = vmax.f32 %v1524, %v1363
        %v1527 = vmax.f32 %v1525, %v1369
        %v1528 = vmax.f32 %v1526, %v1375
        %v1529 = vmax.f32 %v1527, %v1381
        %v1530 = vmax.f32 %v1528, %v1387
        %v1531 = vmax.f32 %v1529, %v1393
        %v1532 = vmax.f32 %v1530, %v1399
        %v1533 = vmax.f32 %v1531, %v1405
        %v1534 = vmax.f32 %v1532, %v1411
        %v1535 = vmax.f32 %v1533, %v1417
        %v1536 = vmax.f32 %v1534, %v1423
        %v1537 = vmax.f32 %v1535, %v1429
        %v1538 = vmax.f32 %v1536, %v1435
        %v1539 = vmax.f32 %v1537, %v1441
        %v1540 = vmax.f32 %v1538, %v1447
        %v1541 = vmax.f32 %v1539, %v1453
        %v1542 = vmax.f32 %v1540, %v1459
        %v1543 = vmax.f32 %v1541, %v1465
        %v1544 = vmax.f32 %v1542, %v1471
        %v1545 = vmax.f32 %v1543, %v1477
        %v1546 = vmax.f32 %v1544, %v1483
        %v1547 = vmax.f32 %v1545, %v1489
        %v1548 = vmax.f32 %v1546, %v1495
        %v1549 = vmax.f32 %v1547, %v1501
        %v1550 = vmax.f32 %v1548, %v1507
        %v1551 = vmax.f32 %v1549, %v1513
        %v1552 = vmax.f32 %v1550, %v1519
        %v1553 = vmax.f32 %v1551, %v1552
        %v1554 = vrot.slane %v1553, 4
        %v1555 = vmax.f32 %v1553, %v1554
        %v1556 = vrot.slane %v1555, 2
        %v1557 = vmax.f32 %v1555, %v1556
        %v1558 = vrot.slane %v1557, 1
        %v1559 = vmax.f32 %v1557, %v1558
        %v1560 = vmax.f32 %v1335, %v1347
        %v1561 = vmax.f32 %v1341, %v1353
        %v1562 = vmax.f32 %v1560, %v1359
        %v1563 = vmax.f32 %v1561, %v1365
        %v1564 = vmax.f32 %v1562, %v1371
        %v1565 = vmax.f32 %v1563, %v1377
        %v1566 = vmax.f32 %v1564, %v1383
        %v1567 = vmax.f32 %v1565, %v1389
        %v1568 = vmax.f32 %v1566, %v1395
        %v1569 = vmax.f32 %v1567, %v1401
        %v1570 = vmax.f32 %v1568, %v1407
        %v1571 = vmax.f32 %v1569, %v1413
        %v1572 = vmax.f32 %v1570, %v1419
        %v1573 = vmax.f32 %v1571, %v1425
        %v1574 = vmax.f32 %v1572, %v1431
        %v1575 = vmax.f32 %v1573, %v1437
        %v1576 = vmax.f32 %v1574, %v1443
        %v1577 = vmax.f32 %v1575, %v1449
        %v1578 = vmax.f32 %v1576, %v1455
        %v1579 = vmax.f32 %v1577, %v1461
        %v1580 = vmax.f32 %v1578, %v1467
        %v1581 = vmax.f32 %v1579, %v1473
        %v1582 = vmax.f32 %v1580, %v1479
        %v1583 = vmax.f32 %v1581, %v1485
        %v1584 = vmax.f32 %v1582, %v1491
        %v1585 = vmax.f32 %v1583, %v1497
        %v1586 = vmax.f32 %v1584, %v1503
        %v1587 = vmax.f32 %v1585, %v1509
        %v1588 = vmax.f32 %v1586, %v1515
        %v1589 = vmax.f32 %v1587, %v1521
        %v1590 = vmax.f32 %v1588, %v1589
        %v1591 = vrot.slane %v1590, 4
        %v1592 = vmax.f32 %v1590, %v1591
        %v1593 = vrot.slane %v1592, 2
        %v1594 = vmax.f32 %v1592, %v1593
        %v1595 = vrot.slane %v1594, 1
        %v1596 = vmax.f32 %v1594, %v1595
        %v1597 = vsub.f32 %v1333, %v1559
        %v1598 = vsub.f32 %v1335, %v1596
        %v1599 = vsub.f32 %v1339, %v1559
        %v1600 = vsub.f32 %v1341, %v1596
        %v1601 = vsub.f32 %v1345, %v1559
        %v1602 = vsub.f32 %v1347, %v1596
        %v1603 = vsub.f32 %v1351, %v1559
        %v1604 = vsub.f32 %v1353, %v1596
        %v1605 = vsub.f32 %v1357, %v1559
        %v1606 = vsub.f32 %v1359, %v1596
        %v1607 = vsub.f32 %v1363, %v1559
        %v1608 = vsub.f32 %v1365, %v1596
        %v1609 = vsub.f32 %v1369, %v1559
        %v1610 = vsub.f32 %v1371, %v1596
        %v1611 = vsub.f32 %v1375, %v1559
        %v1612 = vsub.f32 %v1377, %v1596
        %v1613 = vsub.f32 %v1381, %v1559
        %v1614 = vsub.f32 %v1383, %v1596
        %v1615 = vsub.f32 %v1387, %v1559
        %v1616 = vsub.f32 %v1389, %v1596
        %v1617 = vsub.f32 %v1393, %v1559
        %v1618 = vsub.f32 %v1395, %v1596
        %v1619 = vsub.f32 %v1399, %v1559
        %v1620 = vsub.f32 %v1401, %v1596
        %v1621 = vsub.f32 %v1405, %v1559
        %v1622 = vsub.f32 %v1407, %v1596
        %v1623 = vsub.f32 %v1411, %v1559
        %v1624 = vsub.f32 %v1413, %v1596
        %v1625 = vsub.f32 %v1417, %v1559
        %v1626 = vsub.f32 %v1419, %v1596
        %v1627 = vsub.f32 %v1423, %v1559
        %v1628 = vsub.f32 %v1425, %v1596
        %v1629 = vsub.f32 %v1429, %v1559
        %v1630 = vsub.f32 %v1431, %v1596
        %v1631 = vsub.f32 %v1435, %v1559
        %v1632 = vsub.f32 %v1437, %v1596
        %v1633 = vsub.f32 %v1441, %v1559
        %v1634 = vsub.f32 %v1443, %v1596
        %v1635 = vsub.f32 %v1447, %v1559
        %v1636 = vsub.f32 %v1449, %v1596
        %v1637 = vsub.f32 %v1453, %v1559
        %v1638 = vsub.f32 %v1455, %v1596
        %v1639 = vsub.f32 %v1459, %v1559
        %v1640 = vsub.f32 %v1461, %v1596
        %v1641 = vsub.f32 %v1465, %v1559
        %v1642 = vsub.f32 %v1467, %v1596
        %v1643 = vsub.f32 %v1471, %v1559
        %v1644 = vsub.f32 %v1473, %v1596
        %v1645 = vsub.f32 %v1477, %v1559
        %v1646 = vsub.f32 %v1479, %v1596
        %v1647 = vsub.f32 %v1483, %v1559
        %v1648 = vsub.f32 %v1485, %v1596
        %v1649 = vsub.f32 %v1489, %v1559
        %v1650 = vsub.f32 %v1491, %v1596
        %v1651 = vsub.f32 %v1495, %v1559
        %v1652 = vsub.f32 %v1497, %v1596
        %v1653 = vsub.f32 %v1501, %v1559
        %v1654 = vsub.f32 %v1503, %v1596
        %v1655 = vsub.f32 %v1507, %v1559
        %v1656 = vsub.f32 %v1509, %v1596
        %v1657 = vsub.f32 %v1513, %v1559
        %v1658 = vsub.f32 %v1515, %v1596
        %v1659 = vsub.f32 %v1519, %v1559
        %v1660 = vsub.f32 %v1521, %v1596
        %v1661 = vmul.f32 %v1597, 1.442695
        %v1662 = vpow.pop %v1661
        %v1663 = vmul.f32 %v1598, 1.442695
        %v1664 = vpow.pop %v1663
        %v1665 = vmul.f32 %v1599, 1.442695
        %v1666 = vpow.pop %v1665
        %v1667 = vmul.f32 %v1600, 1.442695
        %v1668 = vpow.pop %v1667
        %v1669 = vmul.f32 %v1601, 1.442695
        %v1670 = vpow.pop %v1669
        %v1671 = vmul.f32 %v1602, 1.442695
        %v1672 = vpow.pop %v1671
        %v1673 = vmul.f32 %v1603, 1.442695
        %v1674 = vpow.pop %v1673
        %v1675 = vmul.f32 %v1604, 1.442695
        %v1676 = vpow.pop %v1675
        %v1677 = vmul.f32 %v1605, 1.442695
        %v1678 = vpow.pop %v1677
        %v1679 = vmul.f32 %v1606, 1.442695
        %v1680 = vpow.pop %v1679
        %v1681 = vmul.f32 %v1607, 1.442695
        %v1682 = vpow.pop %v1681
        %v1683 = vmul.f32 %v1608, 1.442695
        %v1684 = vpow.pop %v1683
        %v1685 = vmul.f32 %v1609, 1.442695
        %v1686 = vpow.pop %v1685
        %v1687 = vmul.f32 %v1610, 1.442695
        %v1688 = vpow.pop %v1687
        %v1689 = vmul.f32 %v1611, 1.442695
        %v1690 = vpow.pop %v1689
        %v1691 = vmul.f32 %v1612, 1.442695
        %v1692 = vpow.pop %v1691
        %v1693 = vmul.f32 %v1613, 1.442695
        %v1694 = vpow.pop %v1693
        %v1695 = vmul.f32 %v1614, 1.442695
        %v1696 = vpow.pop %v1695
        %v1697 = vmul.f32 %v1615, 1.442695
        %v1698 = vpow.pop %v1697
        %v1699 = vmul.f32 %v1616, 1.442695
        %v1700 = vpow.pop %v1699
        %v1701 = vmul.f32 %v1617, 1.442695
        %v1702 = vpow.pop %v1701
        %v1703 = vmul.f32 %v1618, 1.442695
        %v1704 = vpow.pop %v1703
        %v1705 = vmul.f32 %v1619, 1.442695
        %v1706 = vpow.pop %v1705
        %v1707 = vmul.f32 %v1620, 1.442695
        %v1708 = vpow.pop %v1707
        %v1709 = vmul.f32 %v1621, 1.442695
        %v1710 = vpow.pop %v1709
        %v1711 = vmul.f32 %v1622, 1.442695
        %v1712 = vpow.pop %v1711
        %v1713 = vmul.f32 %v1623, 1.442695
        %v1714 = vpow.pop %v1713
        %v1715 = vmul.f32 %v1624, 1.442695
        %v1716 = vpow.pop %v1715
        %v1717 = vmul.f32 %v1625, 1.442695
        %v1718 = vpow.pop %v1717
        %v1719 = vmul.f32 %v1626, 1.442695
        %v1720 = vpow.pop %v1719
        %v1721 = vmul.f32 %v1627, 1.442695
        %v1722 = vpow.pop %v1721
        %v1723 = vmul.f32 %v1628, 1.442695
        %v1724 = vpow.pop %v1723
        %v1725 = vmul.f32 %v1629, 1.442695
        %v1726 = vpow.pop %v1725
        %v1727 = vmul.f32 %v1630, 1.442695
        %v1728 = vpow.pop %v1727
        %v1729 = vmul.f32 %v1631, 1.442695
        %v1730 = vpow.pop %v1729
        %v1731 = vmul.f32 %v1632, 1.442695
        %v1732 = vpow.pop %v1731
        %v1733 = vmul.f32 %v1633, 1.442695
        %v1734 = vpow.pop %v1733
        %v1735 = vmul.f32 %v1634, 1.442695
        %v1736 = vpow.pop %v1735
        %v1737 = vmul.f32 %v1635, 1.442695
        %v1738 = vpow.pop %v1737
        %v1739 = vmul.f32 %v1636, 1.442695
        %v1740 = vpow.pop %v1739
        %v1741 = vmul.f32 %v1637, 1.442695
        %v1742 = vpow.pop %v1741
        %v1743 = vmul.f32 %v1638, 1.442695
        %v1744 = vpow.pop %v1743
        %v1745 = vmul.f32 %v1639, 1.442695
        %v1746 = vpow.pop %v1745
        %v1747 = vmul.f32 %v1640, 1.442695
        %v1748 = vpow.pop %v1747
        %v1749 = vmul.f32 %v1641, 1.442695
        %v1750 = vpow.pop %v1749
        %v1751 = vmul.f32 %v1642, 1.442695
        %v1752 = vpow.pop %v1751
        %v1753 = vmul.f32 %v1643, 1.442695
        %v1754 = vpow.pop %v1753
        %v1755 = vmul.f32 %v1644, 1.442695
        %v1756 = vpow.pop %v1755
        %v1757 = vmul.f32 %v1645, 1.442695
        %v1758 = vpow.pop %v1757
        %v1759 = vmul.f32 %v1646, 1.442695
        %v1760 = vpow.pop %v1759
        %v1761 = vmul.f32 %v1647, 1.442695
        %v1762 = vpow.pop %v1761
        %v1763 = vmul.f32 %v1648, 1.442695
        %v1764 = vpow.pop %v1763
        %v1765 = vmul.f32 %v1649, 1.442695
        %v1766 = vpow.pop %v1765
        %v1767 = vmul.f32 %v1650, 1.442695
        %v1768 = vpow.pop %v1767
        %v1769 = vmul.f32 %v1651, 1.442695
        %v1770 = vpow.pop %v1769
        %v1771 = vmul.f32 %v1652, 1.442695
        %v1772 = vpow.pop %v1771
        %v1773 = vmul.f32 %v1653, 1.442695
        %v1774 = vpow.pop %v1773
        %v1775 = vmul.f32 %v1654, 1.442695
        %v1776 = vpow.pop %v1775
        %v1777 = vmul.f32 %v1655, 1.442695
        %v1778 = vpow.pop %v1777
        %v1779 = vmul.f32 %v1656, 1.442695
        %v1780 = vpow.pop %v1779
        %v1781 = vmul.f32 %v1657, 1.442695
        %v1782 = vpow.pop %v1781
        %v1783 = vmul.f32 %v1658, 1.442695
        %v1784 = vpow.pop %v1783
        %v1785 = vmul.f32 %v1659, 1.442695
        %v1786 = vpow.pop %v1785
        %v1787 = vmul.f32 %v1660, 1.442695
        %v1788 = vpow.pop %v1787
        %v1789 = vadd.f32 %v1662, %v1666
        %v1790 = vadd.f32 %v1789, %v1670
        %v1791 = vadd.f32 %v1790, %v1674
        %v1792 = vadd.f32 %v1791, %v1678
        %v1793 = vadd.f32 %v1792, %v1682
        %v1794 = vadd.f32 %v1793, %v1686
        %v1795 = vadd.f32 %v1794, %v1690
        %v1796 = vadd.f32 %v1795, %v1694
        %v1797 = vadd.f32 %v1796, %v1698
        %v1798 = vadd.f32 %v1797, %v1702
        %v1799 = vadd.f32 %v1798, %v1706
        %v1800 = vadd.f32 %v1799, %v1710
        %v1801 = vadd.f32 %v1800, %v1714
        %v1802 = vadd.f32 %v1801, %v1718
        %v1803 = vadd.f32 %v1802, %v1722
        %v1804 = vadd.f32 %v1803, %v1726
        %v1805 = vadd.f32 %v1804, %v1730
        %v1806 = vadd.f32 %v1805, %v1734
        %v1807 = vadd.f32 %v1806, %v1738
        %v1808 = vadd.f32 %v1807, %v1742
        %v1809 = vadd.f32 %v1808, %v1746
        %v1810 = vadd.f32 %v1809, %v1750
        %v1811 = vadd.f32 %v1810, %v1754
        %v1812 = vadd.f32 %v1811, %v1758
        %v1813 = vadd.f32 %v1812, %v1762
        %v1814 = vadd.f32 %v1813, %v1766
        %v1815 = vadd.f32 %v1814, %v1770
        %v1816 = vadd.f32 %v1815, %v1774
        %v1817 = vadd.f32 %v1816, %v1778
        %v1818 = vadd.f32 %v1817, %v1782
        %v1819 = vadd.f32 %v1818, %v1786
        %v1820 = vrot.slane %v1819, 4
        %v1821 = vadd.f32 %v1819, %v1820
        %v1822 = vrot.slane %v1821, 2
        %v1823 = vadd.f32 %v1821, %v1822
        %v1824 = vrot.slane %v1823, 1
        %v1825 = vadd.f32 %v1823, %v1824
        %v1826 = vadd.f32 %v1664, %v1668
        %v1827 = vadd.f32 %v1826, %v1672
        %v1828 = vadd.f32 %v1827, %v1676
        %v1829 = vadd.f32 %v1828, %v1680
        %v1830 = vadd.f32 %v1829, %v1684
        %v1831 = vadd.f32 %v1830, %v1688
        %v1832 = vadd.f32 %v1831, %v1692
        %v1833 = vadd.f32 %v1832, %v1696
        %v1834 = vadd.f32 %v1833, %v1700
        %v1835 = vadd.f32 %v1834, %v1704
        %v1836 = vadd.f32 %v1835, %v1708
        %v1837 = vadd.f32 %v1836, %v1712
        %v1838 = vadd.f32 %v1837, %v1716
        %v1839 = vadd.f32 %v1838, %v1720
        %v1840 = vadd.f32 %v1839, %v1724
        %v1841 = vadd.f32 %v1840, %v1728
        %v1842 = vadd.f32 %v1841, %v1732
        %v1843 = vadd.f32 %v1842, %v1736
        %v1844 = vadd.f32 %v1843, %v1740
        %v1845 = vadd.f32 %v1844, %v1744
        %v1846 = vadd.f32 %v1845, %v1748
        %v1847 = vadd.f32 %v1846, %v1752
        %v1848 = vadd.f32 %v1847, %v1756
        %v1849 = vadd.f32 %v1848, %v1760
        %v1850 = vadd.f32 %v1849, %v1764
        %v1851 = vadd.f32 %v1850, %v1768
        %v1852 = vadd.f32 %v1851, %v1772
        %v1853 = vadd.f32 %v1852, %v1776
        %v1854 = vadd.f32 %v1853, %v1780
        %v1855 = vadd.f32 %v1854, %v1784
        %v1856 = vadd.f32 %v1855, %v1788
        %v1857 = vrot.slane %v1856, 4
        %v1858 = vadd.f32 %v1856, %v1857
        %v1859 = vrot.slane %v1858, 2
        %v1860 = vadd.f32 %v1858, %v1859
        %v1861 = vrot.slane %v1860, 1
        %v1862 = vadd.f32 %v1860, %v1861
        %v1863 = vrcp.pop %v1825
        %v1864 = vrcp.pop %v1862
        %v1865 = vmul.f32 %v1662, %v1863
        %v1866 = vmul.f32 %v1664, %v1864
        %v1867 = vmul.f32 %v1666, %v1863
        %v1868 = vmul.f32 %v1668, %v1864
        %v1869 = vmul.f32 %v1670, %v1863
        %v1870 = vmul.f32 %v1672, %v1864
        %v1871 = vmul.f32 %v1674, %v1863
        %v1872 = vmul.f32 %v1676, %v1864
        %v1873 = vmul.f32 %v1678, %v1863
        %v1874 = vmul.f32 %v1680, %v1864
        %v1875 = vmul.f32 %v1682, %v1863
        %v1876 = vmul.f32 %v1684, %v1864
        %v1877 = vmul.f32 %v1686, %v1863
        %v1878 = vmul.f32 %v1688, %v1864
        %v1879 = vmul.f32 %v1690, %v1863
        %v1880 = vmul.f32 %v1692, %v1864
        %v1881 = vmul.f32 %v1694, %v1863
        %v1882 = vmul.f32 %v1696, %v1864
        %v1883 = vmul.f32 %v1698, %v1863
        %v1884 = vmul.f32 %v1700, %v1864
        %v1885 = vmul.f32 %v1702, %v1863
        %v1886 = vmul.f32 %v1704, %v1864
        %v1887 = vmul.f32 %v1706, %v1863
        %v1888 = vmul.f32 %v1708, %v1864
        %v1889 = vmul.f32 %v1710, %v1863
        %v1890 = vmul.f32 %v1712, %v1864
        %v1891 = vmul.f32 %v1714, %v1863
        %v1892 = vmul.f32 %v1716, %v1864
        %v1893 = vmul.f32 %v1718, %v1863
        %v1894 = vmul.f32 %v1720, %v1864
        %v1895 = vmul.f32 %v1722, %v1863
        %v1896 = vmul.f32 %v1724, %v1864
        %v1897 = vmul.f32 %v1726, %v1863
        %v1898 = vmul.f32 %v1728, %v1864
        %v1899 = vmul.f32 %v1730, %v1863
        %v1900 = vmul.f32 %v1732, %v1864
        %v1901 = vmul.f32 %v1734, %v1863
        %v1902 = vmul.f32 %v1736, %v1864
        %v1903 = vmul.f32 %v1738, %v1863
        %v1904 = vmul.f32 %v1740, %v1864
        %v1905 = vmul.f32 %v1742, %v1863
        %v1906 = vmul.f32 %v1744, %v1864
        %v1907 = vmul.f32 %v1746, %v1863
        %v1908 = vmul.f32 %v1748, %v1864
        %v1909 = vmul.f32 %v1750, %v1863
        %v1910 = vmul.f32 %v1752, %v1864
        %v1911 = vmul.f32 %v1754, %v1863
        %v1912 = vmul.f32 %v1756, %v1864
        %v1913 = vmul.f32 %v1758, %v1863
        %v1914 = vmul.f32 %v1760, %v1864
        %v1915 = vmul.f32 %v1762, %v1863
        %v1916 = vmul.f32 %v1764, %v1864
        %v1917 = vmul.f32 %v1766, %v1863
        %v1918 = vmul.f32 %v1768, %v1864
        %v1919 = vmul.f32 %v1770, %v1863
        %v1920 = vmul.f32 %v1772, %v1864
        %v1921 = vmul.f32 %v1774, %v1863
        %v1922 = vmul.f32 %v1776, %v1864
        %v1923 = vmul.f32 %v1778, %v1863
        %v1924 = vmul.f32 %v1780, %v1864
        %v1925 = vmul.f32 %v1782, %v1863
        %v1926 = vmul.f32 %v1784, %v1864
        %v1927 = vmul.f32 %v1786, %v1863
        %v1928 = vmul.f32 %v1788, %v1864
        %1929 = vmatprep.subr.mxu0 %v1896
        %1930 = vmatpush1.msra.mxu0 %v1895
        %1931 = vmatprep.subr.mxu0 %v1894
        %1932 = vmatpush1.msra.mxu0 %v1893
        %1933 = vmatprep.subr.mxu0 %v1892
        %1934 = vmatpush1.msra.mxu0 %v1891
        %1935 = vmatprep.subr.mxu0 %v1890
        %1936 = vmatpush1.msra.mxu0 %v1889
        %1937 = vmatprep.subr.mxu0 %v1888
        %1938 = vmatpush1.msra.mxu0 %v1887
        %1939 = vmatprep.subr.mxu0 %v1886
        %1940 = vmatpush1.msra.mxu0 %v1885
        %1941 = vmatprep.subr.mxu0 %v1884
        %1942 = vmatpush1.msra.mxu0 %v1883
        %1943 = vmatprep.subr.mxu0 %v1882
        %1944 = vmatpush1.msra.mxu0 %v1881
        %1945 = vmatprep.subr.mxu0 %v1880
        %1946 = vmatpush1.msra.mxu0 %v1879
        %1947 = vmatprep.subr.mxu0 %v1878
        %1948 = vmatpush1.msra.mxu0 %v1877
        %1949 = vmatprep.subr.mxu0 %v1876
        %1950 = vmatpush1.msra.mxu0 %v1875
        %1951 = vmatprep.subr.mxu0 %v1874
        %1952 = vmatpush1.msra.mxu0 %v1873
        %1953 = vmatprep.subr.mxu0 %v1872
        %1954 = vmatpush1.msra.mxu0 %v1871
        %1955 = vmatprep.subr.mxu0 %v1870
        %1956 = vmatpush1.msra.mxu0 %v1869
        %1957 = vmatprep.subr.mxu0 %v1868
        %1958 = vmatpush1.msra.mxu0 %v1867
        %1959 = vmatprep.subr.mxu0 %v1866
        %1960 = vmatpush1.msra.mxu0 %v1865
        %1961 = vmatprep.subr.mxu0 %v1928
        %1962 = vmatpush2.msra.mxu0 %v1927
        %1963 = vmatprep.subr.mxu0 %v1926
        %1964 = vmatpush2.msra.mxu0 %v1925
        %1965 = vmatprep.subr.mxu0 %v1924
        %1966 = vmatpush2.msra.mxu0 %v1923
        %1967 = vmatprep.subr.mxu0 %v1922
        %1968 = vmatpush2.msra.mxu0 %v1921
        %1969 = vmatprep.subr.mxu0 %v1920
        %1970 = vmatpush2.msra.mxu0 %v1919
        %1971 = vmatprep.subr.mxu0 %v1918
        %1972 = vmatpush2.msra.mxu0 %v1917
        %1973 = vmatprep.subr.mxu0 %v1916
        %1974 = vmatpush2.msra.mxu0 %v1915
        %1975 = vmatprep.subr.mxu0 %v1914
        %1976 = vmatpush2.msra.mxu0 %v1913
        %1977 = vmatprep.subr.mxu0 %v1912
        %1978 = vmatpush2.msra.mxu0 %v1911
        %1979 = vmatprep.subr.mxu0 %v1910
        %1980 = vmatpush2.msra.mxu0 %v1909
        %1981 = vmatprep.subr.mxu0 %v1908
        %1982 = vmatpush2.msra.mxu0 %v1907
        %1983 = vmatprep.subr.mxu0 %v1906
        %1984 = vmatpush2.msra.mxu0 %v1905
        %1985 = vmatprep.subr.mxu0 %v1904
        %1986 = vmatpush2.msra.mxu0 %v1903
        %1987 = vmatprep.subr.mxu0 %v1902
        %1988 = vmatpush2.msra.mxu0 %v1901
        %1989 = vmatprep.subr.mxu0 %v1900
        %1990 = vmatpush2.msra.mxu0 %v1899
        %1991 = vmatprep.subr.mxu0 %v1898
        %1992 = vmatpush2.msra.mxu0 %v1897
        %1993 = vmatprep.mubr.f32.mxu0 %v1013
        %1994 = vmatmul.mubr.f32.gmra.mxu0 %v1011
        %v1995 = vpop.f32.mrf.mxu0
        %v1996 = vadd.f32 0.0, %v1995
        %v1997 = vpop.f32.mrf.mxu0
        %v1998 = vadd.f32 0.0, %v1997
        %1999 = vmatprep.mubr.f32.mxu0 %v1019
        %2000 = vmatmul.mubr.f32.gmra.mxu0 %v1017
        %v2001 = vpop.f32.mrf.mxu0
        %v2002 = vadd.f32 0.0, %v2001
        %v2003 = vpop.f32.mrf.mxu0
        %v2004 = vadd.f32 0.0, %v2003
        %2005 = vmatprep.mubr.f32.mxu0 %v1025
        %2006 = vmatmul.mubr.f32.gmra.mxu0 %v1023
        %v2007 = vpop.f32.mrf.mxu0
        %v2008 = vadd.f32 0.0, %v2007
        %v2009 = vpop.f32.mrf.mxu0
        %v2010 = vadd.f32 0.0, %v2009
        %2011 = vmatprep.mubr.f32.mxu0 %v1031
        %2012 = vmatmul.mubr.f32.gmra.mxu0 %v1029
        %v2013 = vpop.f32.mrf.mxu0
        %v2014 = vadd.f32 0.0, %v2013
        %v2015 = vpop.f32.mrf.mxu0
        %v2016 = vadd.f32 0.0, %v2015
        %2017 = vdwg.mxu0
        %2018 = vst [vmem:[#allocation2] sm:$0xff] %v1996
        %2019 = vst [vmem:[#allocation2 + $0x8] sm:$0xff] %v1998
        %2020 = vst [vmem:[#allocation2 + $0x10] sm:$0xff] %v2002
        %2021 = vst [vmem:[#allocation2 + $0x18] sm:$0xff] %v2004
        %2022 = vst [vmem:[#allocation2 + $0x20] sm:$0xff] %v2008
        %2023 = vst [vmem:[#allocation2 + $0x28] sm:$0xff] %v2010
        %2024 = vst [vmem:[#allocation2 + $0x30] sm:$0xff] %v2014
        %2025 = vst [vmem:[#allocation2 + $0x38] sm:$0xff] %v2016
        %2026 = vxpose.xlu0.b32.start [1/16] %v939, 128
        %2027 = vxpose.xlu0.b32.cont [2/16] %v945, 128
        %2028 = vxpose.xlu0.b32.cont [3/16] %v951, 128
        %2029 = vxpose.xlu0.b32.cont [4/16] %v957, 128
        %2030 = vxpose.xlu0.b32.cont [5/16] 0.0, 128
        %2031 = vxpose.xlu0.b32.cont [6/16] 0.0, 128
        %2032 = vxpose.xlu0.b32.cont [7/16] 0.0, 128
        %2033 = vxpose.xlu0.b32.cont [8/16] 0.0, 128
        %2034 = vxpose.xlu0.b32.cont [9/16] 0.0, 128
        %2035 = vxpose.xlu0.b32.cont [10/16] 0.0, 128
        %2036 = vxpose.xlu0.b32.cont [11/16] 0.0, 128
        %2037 = vxpose.xlu0.b32.cont [12/16] 0.0, 128
        %2038 = vxpose.xlu0.b32.cont [13/16] 0.0, 128
        %2039 = vxpose.xlu0.b32.cont [14/16] 0.0, 128
        %2040 = vxpose.xlu0.b32.cont [15/16] 0.0, 128
        %2041 = vxpose.xlu0.b32.end [16/16] 0.0, 128
        %v2042 = vpop.trf.xlu0
        %v2043 = vpop.trf.xlu0
        %v2044 = vpop.trf.xlu0
        %v2045 = vpop.trf.xlu0
        %v2046 = vpop.trf.xlu0
        %v2047 = vpop.trf.xlu0
        %v2048 = vpop.trf.xlu0
        %v2049 = vpop.trf.xlu0
        %v2050 = vpop.trf.xlu0
        %v2051 = vpop.trf.xlu0
        %v2052 = vpop.trf.xlu0
        %v2053 = vpop.trf.xlu0
        %v2054 = vpop.trf.xlu0
        %v2055 = vpop.trf.xlu0
        %v2056 = vpop.trf.xlu0
        %v2057 = vpop.trf.xlu0
        %2058 = vxpose.xlu0.b32.start [1/16] %v941, 128
        %2059 = vxpose.xlu0.b32.cont [2/16] %v947, 128
        %2060 = vxpose.xlu0.b32.cont [3/16] %v953, 128
        %2061 = vxpose.xlu0.b32.cont [4/16] %v959, 128
        %2062 = vxpose.xlu0.b32.cont [5/16] 0.0, 128
        %2063 = vxpose.xlu0.b32.cont [6/16] 0.0, 128
        %2064 = vxpose.xlu0.b32.cont [7/16] 0.0, 128
        %2065 = vxpose.xlu0.b32.cont [8/16] 0.0, 128
        %2066 = vxpose.xlu0.b32.cont [9/16] 0.0, 128
        %2067 = vxpose.xlu0.b32.cont [10/16] 0.0, 128
        %2068 = vxpose.xlu0.b32.cont [11/16] 0.0, 128
        %2069 = vxpose.xlu0.b32.cont [12/16] 0.0, 128
        %2070 = vxpose.xlu0.b32.cont [13/16] 0.0, 128
        %2071 = vxpose.xlu0.b32.cont [14/16] 0.0, 128
        %2072 = vxpose.xlu0.b32.cont [15/16] 0.0, 128
        %2073 = vxpose.xlu0.b32.end [16/16] 0.0, 128
        %v2074 = vpop.trf.xlu0
        %v2075 = vpop.trf.xlu0
        %v2076 = vpop.trf.xlu0
        %v2077 = vpop.trf.xlu0
        %v2078 = vpop.trf.xlu0
        %v2079 = vpop.trf.xlu0
        %v2080 = vpop.trf.xlu0
        %v2081 = vpop.trf.xlu0
        %v2082 = vpop.trf.xlu0
        %v2083 = vpop.trf.xlu0
        %v2084 = vpop.trf.xlu0
        %v2085 = vpop.trf.xlu0
        %v2086 = vpop.trf.xlu0
        %v2087 = vpop.trf.xlu0
        %v2088 = vpop.trf.xlu0
        %v2089 = vpop.trf.xlu0
        %v2091 = vsel %vm1169, %v2042, 0
        %v2094 = vsel %vm1169, %v2043, 0
        %v2097 = vsel %vm1169, %v2044, 0
        %v2100 = vsel %vm1169, %v2045, 0
        %v2103 = vsel %vm1169, %v2046, 0
        %v2106 = vsel %vm1169, %v2047, 0
        %v2109 = vsel %vm1169, %v2048, 0
        %v2112 = vsel %vm1169, %v2049, 0
        %v2115 = vsel %vm1169, %v2050, 0
        %v2118 = vsel %vm1169, %v2051, 0
        %v2121 = vsel %vm1169, %v2052, 0
        %v2124 = vsel %vm1169, %v2053, 0
        %v2127 = vsel %vm1169, %v2054, 0
        %v2130 = vsel %vm1169, %v2055, 0
        %v2133 = vsel %vm1169, %v2056, 0
        %v2136 = vsel %vm1169, %v2057, 0
        %v2139 = vsel %vm1169, %v2074, 0
        %v2142 = vsel %vm1169, %v2075, 0
        %v2145 = vsel %vm1169, %v2076, 0
        %v2148 = vsel %vm1169, %v2077, 0
        %v2151 = vsel %vm1169, %v2078, 0
        %v2154 = vsel %vm1169, %v2079, 0
        %v2157 = vsel %vm1169, %v2080, 0
        %v2160 = vsel %vm1169, %v2081, 0
        %v2163 = vsel %vm1169, %v2082, 0
        %v2166 = vsel %vm1169, %v2083, 0
        %v2169 = vsel %vm1169, %v2084, 0
        %v2172 = vsel %vm1169, %v2085, 0
        %v2175 = vsel %vm1169, %v2086, 0
        %v2178 = vsel %vm1169, %v2087, 0
        %v2181 = vsel %vm1169, %v2088, 0
        %v2184 = vsel %vm1169, %v2089, 0
        %2186 = vmatprep.subr.mxu0 0.0
        %2187 = vmatpush1.msra.mxu0 0.0
        %2188 = vmatprep.subr.mxu0 0.0
        %2189 = vmatpush1.msra.mxu0 0.0
        %2190 = vmatprep.subr.mxu0 0.0
        %2191 = vmatpush1.msra.mxu0 0.0
        %2192 = vmatprep.subr.mxu0 0.0
        %2193 = vmatpush1.msra.mxu0 0.0
        %2194 = vmatprep.subr.mxu0 0.0
        %2195 = vmatpush1.msra.mxu0 0.0
        %2196 = vmatprep.subr.mxu0 0.0
        %2197 = vmatpush1.msra.mxu0 0.0
        %2198 = vmatprep.subr.mxu0 0.0
        %2199 = vmatpush1.msra.mxu0 0.0
        %2200 = vmatprep.subr.mxu0 0.0
        %2201 = vmatpush1.msra.mxu0 0.0
        %2202 = vmatprep.subr.mxu0 0.0
        %2203 = vmatpush1.msra.mxu0 0.0
        %2204 = vmatprep.subr.mxu0 0.0
        %2205 = vmatpush1.msra.mxu0 0.0
        %2206 = vmatprep.subr.mxu0 0.0
        %2207 = vmatpush1.msra.mxu0 0.0
        %2208 = vmatprep.subr.mxu0 0.0
        %2209 = vmatpush1.msra.mxu0 0.0
        %2210 = vmatprep.subr.mxu0 %v863
        %2211 = vmatpush1.msra.mxu0 %v861
        %2212 = vmatprep.subr.mxu0 %v857
        %2213 = vmatpush1.msra.mxu0 %v855
        %2214 = vmatprep.subr.mxu0 %v851
        %2215 = vmatpush1.msra.mxu0 %v849
        %2216 = vmatprep.subr.mxu0 %v845
        %2217 = vmatpush1.msra.mxu0 %v843
        %2218 = vmatprep.subr.mxu0 0.0
        %2219 = vmatpush2.msra.mxu0 0.0
        %2220 = vmatprep.subr.mxu0 0.0
        %2221 = vmatpush2.msra.mxu0 0.0
        %2222 = vmatprep.subr.mxu0 0.0
        %2223 = vmatpush2.msra.mxu0 0.0
        %2224 = vmatprep.subr.mxu0 0.0
        %2225 = vmatpush2.msra.mxu0 0.0
        %2226 = vmatprep.subr.mxu0 0.0
        %2227 = vmatpush2.msra.mxu0 0.0
        %2228 = vmatprep.subr.mxu0 0.0
        %2229 = vmatpush2.msra.mxu0 0.0
        %2230 = vmatprep.subr.mxu0 0.0
        %2231 = vmatpush2.msra.mxu0 0.0
        %2232 = vmatprep.subr.mxu0 0.0
        %2233 = vmatpush2.msra.mxu0 0.0
        %2234 = vmatprep.subr.mxu0 0.0
        %2235 = vmatpush2.msra.mxu0 0.0
        %2236 = vmatprep.subr.mxu0 0.0
        %2237 = vmatpush2.msra.mxu0 0.0
        %2238 = vmatprep.subr.mxu0 0.0
        %2239 = vmatpush2.msra.mxu0 0.0
        %2240 = vmatprep.subr.mxu0 0.0
        %2241 = vmatpush2.msra.mxu0 0.0
        %2242 = vmatprep.subr.mxu0 0.0
        %2243 = vmatpush2.msra.mxu0 0.0
        %2244 = vmatprep.subr.mxu0 0.0
        %2245 = vmatpush2.msra.mxu0 0.0
        %2246 = vmatprep.subr.mxu0 0.0
        %2247 = vmatpush2.msra.mxu0 0.0
        %2248 = vmatprep.subr.mxu0 0.0
        %2249 = vmatpush2.msra.mxu0 0.0
        %2250 = vmatprep.mubr.f32.mxu0 0.0
        %2251 = vmatmul.mubr.f32.gmra.mxu0 %v2091
        %v2252 = vpop.f32.mrf.mxu0
        %v2253 = vadd.f32 0.0, %v2252
        %v2254 = vpop.f32.mrf.mxu0
        %v2255 = vadd.f32 0.0, %v2254
        %2256 = vmatprep.mubr.f32.mxu0 0.0
        %2257 = vmatmul.mubr.f32.gmra.mxu0 %v2094
        %v2258 = vpop.f32.mrf.mxu0
        %v2259 = vadd.f32 0.0, %v2258
        %v2260 = vpop.f32.mrf.mxu0
        %v2261 = vadd.f32 0.0, %v2260
        %2262 = vmatprep.mubr.f32.mxu0 0.0
        %2263 = vmatmul.mubr.f32.gmra.mxu0 %v2097
        %v2264 = vpop.f32.mrf.mxu0
        %v2265 = vadd.f32 0.0, %v2264
        %v2266 = vpop.f32.mrf.mxu0
        %v2267 = vadd.f32 0.0, %v2266
        %2268 = vmatprep.mubr.f32.mxu0 0.0
        %2269 = vmatmul.mubr.f32.gmra.mxu0 %v2100
        %v2270 = vpop.f32.mrf.mxu0
        %v2271 = vadd.f32 0.0, %v2270
        %v2272 = vpop.f32.mrf.mxu0
        %v2273 = vadd.f32 0.0, %v2272
        %2274 = vmatprep.mubr.f32.mxu0 0.0
        %2275 = vmatmul.mubr.f32.gmra.mxu0 %v2103
        %v2276 = vpop.f32.mrf.mxu0
        %v2277 = vadd.f32 0.0, %v2276
        %v2278 = vpop.f32.mrf.mxu0
        %v2279 = vadd.f32 0.0, %v2278
        %2280 = vmatprep.mubr.f32.mxu0 0.0
        %2281 = vmatmul.mubr.f32.gmra.mxu0 %v2106
        %v2282 = vpop.f32.mrf.mxu0
        %v2283 = vadd.f32 0.0, %v2282
        %v2284 = vpop.f32.mrf.mxu0
        %v2285 = vadd.f32 0.0, %v2284
        %2286 = vmatprep.mubr.f32.mxu0 0.0
        %2287 = vmatmul.mubr.f32.gmra.mxu0 %v2109
        %v2288 = vpop.f32.mrf.mxu0
        %v2289 = vadd.f32 0.0, %v2288
        %v2290 = vpop.f32.mrf.mxu0
        %v2291 = vadd.f32 0.0, %v2290
        %2292 = vmatprep.mubr.f32.mxu0 0.0
        %2293 = vmatmul.mubr.f32.gmra.mxu0 %v2112
        %v2294 = vpop.f32.mrf.mxu0
        %v2295 = vadd.f32 0.0, %v2294
        %v2296 = vpop.f32.mrf.mxu0
        %v2297 = vadd.f32 0.0, %v2296
        %2298 = vmatprep.mubr.f32.mxu0 0.0
        %2299 = vmatmul.mubr.f32.gmra.mxu0 %v2115
        %v2300 = vpop.f32.mrf.mxu0
        %v2301 = vadd.f32 0.0, %v2300
        %v2302 = vpop.f32.mrf.mxu0
        %v2303 = vadd.f32 0.0, %v2302
        %2304 = vmatprep.mubr.f32.mxu0 0.0
        %2305 = vmatmul.mubr.f32.gmra.mxu0 %v2118
        %v2306 = vpop.f32.mrf.mxu0
        %v2307 = vadd.f32 0.0, %v2306
        %v2308 = vpop.f32.mrf.mxu0
        %v2309 = vadd.f32 0.0, %v2308
        %2310 = vmatprep.mubr.f32.mxu0 0.0
        %2311 = vmatmul.mubr.f32.gmra.mxu0 %v2121
        %v2312 = vpop.f32.mrf.mxu0
        %v2313 = vadd.f32 0.0, %v2312
        %v2314 = vpop.f32.mrf.mxu0
        %v2315 = vadd.f32 0.0, %v2314
        %2316 = vmatprep.mubr.f32.mxu0 0.0
        %2317 = vmatmul.mubr.f32.gmra.mxu0 %v2124
        %v2318 = vpop.f32.mrf.mxu0
        %v2319 = vadd.f32 0.0, %v2318
        %v2320 = vpop.f32.mrf.mxu0
        %v2321 = vadd.f32 0.0, %v2320
        %2322 = vmatprep.mubr.f32.mxu0 0.0
        %2323 = vmatmul.mubr.f32.gmra.mxu0 %v2127
        %v2324 = vpop.f32.mrf.mxu0
        %v2325 = vadd.f32 0.0, %v2324
        %v2326 = vpop.f32.mrf.mxu0
        %v2327 = vadd.f32 0.0, %v2326
        %2328 = vmatprep.mubr.f32.mxu0 0.0
        %2329 = vmatmul.mubr.f32.gmra.mxu0 %v2130
        %v2330 = vpop.f32.mrf.mxu0
        %v2331 = vadd.f32 0.0, %v2330
        %v2332 = vpop.f32.mrf.mxu0
        %v2333 = vadd.f32 0.0, %v2332
        %2334 = vmatprep.mubr.f32.mxu0 0.0
        %2335 = vmatmul.mubr.f32.gmra.mxu0 %v2133
        %v2336 = vpop.f32.mrf.mxu0
        %v2337 = vadd.f32 0.0, %v2336
        %v2338 = vpop.f32.mrf.mxu0
        %v2339 = vadd.f32 0.0, %v2338
        %2340 = vmatprep.mubr.f32.mxu0 0.0
        %2341 = vmatmul.mubr.f32.gmra.mxu0 %v2136
        %v2342 = vpop.f32.mrf.mxu0
        %v2343 = vadd.f32 0.0, %v2342
        %v2344 = vpop.f32.mrf.mxu0
        %v2345 = vadd.f32 0.0, %v2344
        %2346 = vmatprep.mubr.f32.mxu0 0.0
        %2347 = vmatmul.mubr.f32.gmra.mxu0 %v2139
        %v2348 = vpop.f32.mrf.mxu0
        %v2349 = vadd.f32 0.0, %v2348
        %v2350 = vpop.f32.mrf.mxu0
        %v2351 = vadd.f32 0.0, %v2350
        %2352 = vmatprep.mubr.f32.mxu0 0.0
        %2353 = vmatmul.mubr.f32.gmra.mxu0 %v2142
        %v2354 = vpop.f32.mrf.mxu0
        %v2355 = vadd.f32 0.0, %v2354
        %v2356 = vpop.f32.mrf.mxu0
        %v2357 = vadd.f32 0.0, %v2356
        %2358 = vmatprep.mubr.f32.mxu0 0.0
        %2359 = vmatmul.mubr.f32.gmra.mxu0 %v2145
        %v2360 = vpop.f32.mrf.mxu0
        %v2361 = vadd.f32 0.0, %v2360
        %v2362 = vpop.f32.mrf.mxu0
        %v2363 = vadd.f32 0.0, %v2362
        %2364 = vmatprep.mubr.f32.mxu0 0.0
        %2365 = vmatmul.mubr.f32.gmra.mxu0 %v2148
        %v2366 = vpop.f32.mrf.mxu0
        %v2367 = vadd.f32 0.0, %v2366
        %v2368 = vpop.f32.mrf.mxu0
        %v2369 = vadd.f32 0.0, %v2368
        %2370 = vmatprep.mubr.f32.mxu0 0.0
        %2371 = vmatmul.mubr.f32.gmra.mxu0 %v2151
        %v2372 = vpop.f32.mrf.mxu0
        %v2373 = vadd.f32 0.0, %v2372
        %v2374 = vpop.f32.mrf.mxu0
        %v2375 = vadd.f32 0.0, %v2374
        %2376 = vmatprep.mubr.f32.mxu0 0.0
        %2377 = vmatmul.mubr.f32.gmra.mxu0 %v2154
        %v2378 = vpop.f32.mrf.mxu0
        %v2379 = vadd.f32 0.0, %v2378
        %v2380 = vpop.f32.mrf.mxu0
        %v2381 = vadd.f32 0.0, %v2380
        %2382 = vmatprep.mubr.f32.mxu0 0.0
        %2383 = vmatmul.mubr.f32.gmra.mxu0 %v2157
        %v2384 = vpop.f32.mrf.mxu0
        %v2385 = vadd.f32 0.0, %v2384
        %v2386 = vpop.f32.mrf.mxu0
        %v2387 = vadd.f32 0.0, %v2386
        %2388 = vmatprep.mubr.f32.mxu0 0.0
        %2389 = vmatmul.mubr.f32.gmra.mxu0 %v2160
        %v2390 = vpop.f32.mrf.mxu0
        %v2391 = vadd.f32 0.0, %v2390
        %v2392 = vpop.f32.mrf.mxu0
        %v2393 = vadd.f32 0.0, %v2392
        %2394 = vmatprep.mubr.f32.mxu0 0.0
        %2395 = vmatmul.mubr.f32.gmra.mxu0 %v2163
        %v2396 = vpop.f32.mrf.mxu0
        %v2397 = vadd.f32 0.0, %v2396
        %v2398 = vpop.f32.mrf.mxu0
        %v2399 = vadd.f32 0.0, %v2398
        %2400 = vmatprep.mubr.f32.mxu0 0.0
        %2401 = vmatmul.mubr.f32.gmra.mxu0 %v2166
        %v2402 = vpop.f32.mrf.mxu0
        %v2403 = vadd.f32 0.0, %v2402
        %v2404 = vpop.f32.mrf.mxu0
        %v2405 = vadd.f32 0.0, %v2404
        %2406 = vmatprep.mubr.f32.mxu0 0.0
        %2407 = vmatmul.mubr.f32.gmra.mxu0 %v2169
        %v2408 = vpop.f32.mrf.mxu0
        %v2409 = vadd.f32 0.0, %v2408
        %v2410 = vpop.f32.mrf.mxu0
        %v2411 = vadd.f32 0.0, %v2410
        %2412 = vmatprep.mubr.f32.mxu0 0.0
        %2413 = vmatmul.mubr.f32.gmra.mxu0 %v2172
        %v2414 = vpop.f32.mrf.mxu0
        %v2415 = vadd.f32 0.0, %v2414
        %v2416 = vpop.f32.mrf.mxu0
        %v2417 = vadd.f32 0.0, %v2416
        %2418 = vmatprep.mubr.f32.mxu0 0.0
        %2419 = vmatmul.mubr.f32.gmra.mxu0 %v2175
        %v2420 = vpop.f32.mrf.mxu0
        %v2421 = vadd.f32 0.0, %v2420
        %v2422 = vpop.f32.mrf.mxu0
        %v2423 = vadd.f32 0.0, %v2422
        %2424 = vmatprep.mubr.f32.mxu0 0.0
        %2425 = vmatmul.mubr.f32.gmra.mxu0 %v2178
        %v2426 = vpop.f32.mrf.mxu0
        %v2427 = vadd.f32 0.0, %v2426
        %v2428 = vpop.f32.mrf.mxu0
        %v2429 = vadd.f32 0.0, %v2428
        %2430 = vmatprep.mubr.f32.mxu0 0.0
        %2431 = vmatmul.mubr.f32.gmra.mxu0 %v2181
        %v2432 = vpop.f32.mrf.mxu0
        %v2433 = vadd.f32 0.0, %v2432
        %v2434 = vpop.f32.mrf.mxu0
        %v2435 = vadd.f32 0.0, %v2434
        %2436 = vmatprep.mubr.f32.mxu0 0.0
        %2437 = vmatmul.mubr.f32.gmra.mxu0 %v2184
        %v2438 = vpop.f32.mrf.mxu0
        %v2439 = vadd.f32 0.0, %v2438
        %v2440 = vpop.f32.mrf.mxu0
        %v2441 = vadd.f32 0.0, %v2440
        %2442 = vdwg.mxu0
        %v2443 = vmax.f32 %v2253, %v2265
        %v2444 = vmax.f32 %v2259, %v2271
        %v2445 = vmax.f32 %v2443, %v2277
        %v2446 = vmax.f32 %v2444, %v2283
        %v2447 = vmax.f32 %v2445, %v2289
        %v2448 = vmax.f32 %v2446, %v2295
        %v2449 = vmax.f32 %v2447, %v2301
        %v2450 = vmax.f32 %v2448, %v2307
        %v2451 = vmax.f32 %v2449, %v2313
        %v2452 = vmax.f32 %v2450, %v2319
        %v2453 = vmax.f32 %v2451, %v2325
        %v2454 = vmax.f32 %v2452, %v2331
        %v2455 = vmax.f32 %v2453, %v2337
        %v2456 = vmax.f32 %v2454, %v2343
        %v2457 = vmax.f32 %v2455, %v2349
        %v2458 = vmax.f32 %v2456, %v2355
        %v2459 = vmax.f32 %v2457, %v2361
        %v2460 = vmax.f32 %v2458, %v2367
        %v2461 = vmax.f32 %v2459, %v2373
        %v2462 = vmax.f32 %v2460, %v2379
        %v2463 = vmax.f32 %v2461, %v2385
        %v2464 = vmax.f32 %v2462, %v2391
        %v2465 = vmax.f32 %v2463, %v2397
        %v2466 = vmax.f32 %v2464, %v2403
        %v2467 = vmax.f32 %v2465, %v2409
        %v2468 = vmax.f32 %v2466, %v2415
        %v2469 = vmax.f32 %v2467, %v2421
        %v2470 = vmax.f32 %v2468, %v2427
        %v2471 = vmax.f32 %v2469, %v2433
        %v2472 = vmax.f32 %v2470, %v2439
        %v2473 = vmax.f32 %v2471, %v2472
        %v2474 = vrot.slane %v2473, 4
        %v2475 = vmax.f32 %v2473, %v2474
        %v2476 = vrot.slane %v2475, 2
        %v2477 = vmax.f32 %v2475, %v2476
        %v2478 = vrot.slane %v2477, 1
        %v2479 = vmax.f32 %v2477, %v2478
        %v2480 = vmax.f32 %v2255, %v2267
        %v2481 = vmax.f32 %v2261, %v2273
        %v2482 = vmax.f32 %v2480, %v2279
        %v2483 = vmax.f32 %v2481, %v2285
        %v2484 = vmax.f32 %v2482, %v2291
        %v2485 = vmax.f32 %v2483, %v2297
        %v2486 = vmax.f32 %v2484, %v2303
        %v2487 = vmax.f32 %v2485, %v2309
        %v2488 = vmax.f32 %v2486, %v2315
        %v2489 = vmax.f32 %v2487, %v2321
        %v2490 = vmax.f32 %v2488, %v2327
        %v2491 = vmax.f32 %v2489, %v2333
        %v2492 = vmax.f32 %v2490, %v2339
        %v2493 = vmax.f32 %v2491, %v2345
        %v2494 = vmax.f32 %v2492, %v2351
        %v2495 = vmax.f32 %v2493, %v2357
        %v2496 = vmax.f32 %v2494, %v2363
        %v2497 = vmax.f32 %v2495, %v2369
        %v2498 = vmax.f32 %v2496, %v2375
        %v2499 = vmax.f32 %v2497, %v2381
        %v2500 = vmax.f32 %v2498, %v2387
        %v2501 = vmax.f32 %v2499, %v2393
        %v2502 = vmax.f32 %v2500, %v2399
        %v2503 = vmax.f32 %v2501, %v2405
        %v2504 = vmax.f32 %v2502, %v2411
        %v2505 = vmax.f32 %v2503, %v2417
        %v2506 = vmax.f32 %v2504, %v2423
        %v2507 = vmax.f32 %v2505, %v2429
        %v2508 = vmax.f32 %v2506, %v2435
        %v2509 = vmax.f32 %v2507, %v2441
        %v2510 = vmax.f32 %v2508, %v2509
        %v2511 = vrot.slane %v2510, 4
        %v2512 = vmax.f32 %v2510, %v2511
        %v2513 = vrot.slane %v2512, 2
        %v2514 = vmax.f32 %v2512, %v2513
        %v2515 = vrot.slane %v2514, 1
        %v2516 = vmax.f32 %v2514, %v2515
        %v2517 = vsub.f32 %v2253, %v2479
        %v2518 = vsub.f32 %v2255, %v2516
        %v2519 = vsub.f32 %v2259, %v2479
        %v2520 = vsub.f32 %v2261, %v2516
        %v2521 = vsub.f32 %v2265, %v2479
        %v2522 = vsub.f32 %v2267, %v2516
        %v2523 = vsub.f32 %v2271, %v2479
        %v2524 = vsub.f32 %v2273, %v2516
        %v2525 = vsub.f32 %v2277, %v2479
        %v2526 = vsub.f32 %v2279, %v2516
        %v2527 = vsub.f32 %v2283, %v2479
        %v2528 = vsub.f32 %v2285, %v2516
        %v2529 = vsub.f32 %v2289, %v2479
        %v2530 = vsub.f32 %v2291, %v2516
        %v2531 = vsub.f32 %v2295, %v2479
        %v2532 = vsub.f32 %v2297, %v2516
        %v2533 = vsub.f32 %v2301, %v2479
        %v2534 = vsub.f32 %v2303, %v2516
        %v2535 = vsub.f32 %v2307, %v2479
        %v2536 = vsub.f32 %v2309, %v2516
        %v2537 = vsub.f32 %v2313, %v2479
        %v2538 = vsub.f32 %v2315, %v2516
        %v2539 = vsub.f32 %v2319, %v2479
        %v2540 = vsub.f32 %v2321, %v2516
        %v2541 = vsub.f32 %v2325, %v2479
        %v2542 = vsub.f32 %v2327, %v2516
        %v2543 = vsub.f32 %v2331, %v2479
        %v2544 = vsub.f32 %v2333, %v2516
        %v2545 = vsub.f32 %v2337, %v2479
        %v2546 = vsub.f32 %v2339, %v2516
        %v2547 = vsub.f32 %v2343, %v2479
        %v2548 = vsub.f32 %v2345, %v2516
        %v2549 = vsub.f32 %v2349, %v2479
        %v2550 = vsub.f32 %v2351, %v2516
        %v2551 = vsub.f32 %v2355, %v2479
        %v2552 = vsub.f32 %v2357, %v2516
        %v2553 = vsub.f32 %v2361, %v2479
        %v2554 = vsub.f32 %v2363, %v2516
        %v2555 = vsub.f32 %v2367, %v2479
        %v2556 = vsub.f32 %v2369, %v2516
        %v2557 = vsub.f32 %v2373, %v2479
        %v2558 = vsub.f32 %v2375, %v2516
        %v2559 = vsub.f32 %v2379, %v2479
        %v2560 = vsub.f32 %v2381, %v2516
        %v2561 = vsub.f32 %v2385, %v2479
        %v2562 = vsub.f32 %v2387, %v2516
        %v2563 = vsub.f32 %v2391, %v2479
        %v2564 = vsub.f32 %v2393, %v2516
        %v2565 = vsub.f32 %v2397, %v2479
        %v2566 = vsub.f32 %v2399, %v2516
        %v2567 = vsub.f32 %v2403, %v2479
        %v2568 = vsub.f32 %v2405, %v2516
        %v2569 = vsub.f32 %v2409, %v2479
        %v2570 = vsub.f32 %v2411, %v2516
        %v2571 = vsub.f32 %v2415, %v2479
        %v2572 = vsub.f32 %v2417, %v2516
        %v2573 = vsub.f32 %v2421, %v2479
        %v2574 = vsub.f32 %v2423, %v2516
        %v2575 = vsub.f32 %v2427, %v2479
        %v2576 = vsub.f32 %v2429, %v2516
        %v2577 = vsub.f32 %v2433, %v2479
        %v2578 = vsub.f32 %v2435, %v2516
        %v2579 = vsub.f32 %v2439, %v2479
        %v2580 = vsub.f32 %v2441, %v2516
        %v2581 = vmul.f32 %v2517, 1.442695
        %v2582 = vpow.pop %v2581
        %v2583 = vmul.f32 %v2518, 1.442695
        %v2584 = vpow.pop %v2583
        %v2585 = vmul.f32 %v2519, 1.442695
        %v2586 = vpow.pop %v2585
        %v2587 = vmul.f32 %v2520, 1.442695
        %v2588 = vpow.pop %v2587
        %v2589 = vmul.f32 %v2521, 1.442695
        %v2590 = vpow.pop %v2589
        %v2591 = vmul.f32 %v2522, 1.442695
        %v2592 = vpow.pop %v2591
        %v2593 = vmul.f32 %v2523, 1.442695
        %v2594 = vpow.pop %v2593
        %v2595 = vmul.f32 %v2524, 1.442695
        %v2596 = vpow.pop %v2595
        %v2597 = vmul.f32 %v2525, 1.442695
        %v2598 = vpow.pop %v2597
        %v2599 = vmul.f32 %v2526, 1.442695
        %v2600 = vpow.pop %v2599
        %v2601 = vmul.f32 %v2527, 1.442695
        %v2602 = vpow.pop %v2601
        %v2603 = vmul.f32 %v2528, 1.442695
        %v2604 = vpow.pop %v2603
        %v2605 = vmul.f32 %v2529, 1.442695
        %v2606 = vpow.pop %v2605
        %v2607 = vmul.f32 %v2530, 1.442695
        %v2608 = vpow.pop %v2607
        %v2609 = vmul.f32 %v2531, 1.442695
        %v2610 = vpow.pop %v2609
        %v2611 = vmul.f32 %v2532, 1.442695
        %v2612 = vpow.pop %v2611
        %v2613 = vmul.f32 %v2533, 1.442695
        %v2614 = vpow.pop %v2613
        %v2615 = vmul.f32 %v2534, 1.442695
        %v2616 = vpow.pop %v2615
        %v2617 = vmul.f32 %v2535, 1.442695
        %v2618 = vpow.pop %v2617
        %v2619 = vmul.f32 %v2536, 1.442695
        %v2620 = vpow.pop %v2619
        %v2621 = vmul.f32 %v2537, 1.442695
        %v2622 = vpow.pop %v2621
        %v2623 = vmul.f32 %v2538, 1.442695
        %v2624 = vpow.pop %v2623
        %v2625 = vmul.f32 %v2539, 1.442695
        %v2626 = vpow.pop %v2625
        %v2627 = vmul.f32 %v2540, 1.442695
        %v2628 = vpow.pop %v2627
        %v2629 = vmul.f32 %v2541, 1.442695
        %v2630 = vpow.pop %v2629
        %v2631 = vmul.f32 %v2542, 1.442695
        %v2632 = vpow.pop %v2631
        %v2633 = vmul.f32 %v2543, 1.442695
        %v2634 = vpow.pop %v2633
        %v2635 = vmul.f32 %v2544, 1.442695
        %v2636 = vpow.pop %v2635
        %v2637 = vmul.f32 %v2545, 1.442695
        %v2638 = vpow.pop %v2637
        %v2639 = vmul.f32 %v2546, 1.442695
        %v2640 = vpow.pop %v2639
        %v2641 = vmul.f32 %v2547, 1.442695
        %v2642 = vpow.pop %v2641
        %v2643 = vmul.f32 %v2548, 1.442695
        %v2644 = vpow.pop %v2643
        %v2645 = vmul.f32 %v2549, 1.442695
        %v2646 = vpow.pop %v2645
        %v2647 = vmul.f32 %v2550, 1.442695
        %v2648 = vpow.pop %v2647
        %v2649 = vmul.f32 %v2551, 1.442695
        %v2650 = vpow.pop %v2649
        %v2651 = vmul.f32 %v2552, 1.442695
        %v2652 = vpow.pop %v2651
        %v2653 = vmul.f32 %v2553, 1.442695
        %v2654 = vpow.pop %v2653
        %v2655 = vmul.f32 %v2554, 1.442695
        %v2656 = vpow.pop %v2655
        %v2657 = vmul.f32 %v2555, 1.442695
        %v2658 = vpow.pop %v2657
        %v2659 = vmul.f32 %v2556, 1.442695
        %v2660 = vpow.pop %v2659
        %v2661 = vmul.f32 %v2557, 1.442695
        %v2662 = vpow.pop %v2661
        %v2663 = vmul.f32 %v2558, 1.442695
        %v2664 = vpow.pop %v2663
        %v2665 = vmul.f32 %v2559, 1.442695
        %v2666 = vpow.pop %v2665
        %v2667 = vmul.f32 %v2560, 1.442695
        %v2668 = vpow.pop %v2667
        %v2669 = vmul.f32 %v2561, 1.442695
        %v2670 = vpow.pop %v2669
        %v2671 = vmul.f32 %v2562, 1.442695
        %v2672 = vpow.pop %v2671
        %v2673 = vmul.f32 %v2563, 1.442695
        %v2674 = vpow.pop %v2673
        %v2675 = vmul.f32 %v2564, 1.442695
        %v2676 = vpow.pop %v2675
        %v2677 = vmul.f32 %v2565, 1.442695
        %v2678 = vpow.pop %v2677
        %v2679 = vmul.f32 %v2566, 1.442695
        %v2680 = vpow.pop %v2679
        %v2681 = vmul.f32 %v2567, 1.442695
        %v2682 = vpow.pop %v2681
        %v2683 = vmul.f32 %v2568, 1.442695
        %v2684 = vpow.pop %v2683
        %v2685 = vmul.f32 %v2569, 1.442695
        %v2686 = vpow.pop %v2685
        %v2687 = vmul.f32 %v2570, 1.442695
        %v2688 = vpow.pop %v2687
        %v2689 = vmul.f32 %v2571, 1.442695
        %v2690 = vpow.pop %v2689
        %v2691 = vmul.f32 %v2572, 1.442695
        %v2692 = vpow.pop %v2691
        %v2693 = vmul.f32 %v2573, 1.442695
        %v2694 = vpow.pop %v2693
        %v2695 = vmul.f32 %v2574, 1.442695
        %v2696 = vpow.pop %v2695
        %v2697 = vmul.f32 %v2575, 1.442695
        %v2698 = vpow.pop %v2697
        %v2699 = vmul.f32 %v2576, 1.442695
        %v2700 = vpow.pop %v2699
        %v2701 = vmul.f32 %v2577, 1.442695
        %v2702 = vpow.pop %v2701
        %v2703 = vmul.f32 %v2578, 1.442695
        %v2704 = vpow.pop %v2703
        %v2705 = vmul.f32 %v2579, 1.442695
        %v2706 = vpow.pop %v2705
        %v2707 = vmul.f32 %v2580, 1.442695
        %v2708 = vpow.pop %v2707
        %v2709 = vadd.f32 %v2582, %v2586
        %v2710 = vadd.f32 %v2709, %v2590
        %v2711 = vadd.f32 %v2710, %v2594
        %v2712 = vadd.f32 %v2711, %v2598
        %v2713 = vadd.f32 %v2712, %v2602
        %v2714 = vadd.f32 %v2713, %v2606
        %v2715 = vadd.f32 %v2714, %v2610
        %v2716 = vadd.f32 %v2715, %v2614
        %v2717 = vadd.f32 %v2716, %v2618
        %v2718 = vadd.f32 %v2717, %v2622
        %v2719 = vadd.f32 %v2718, %v2626
        %v2720 = vadd.f32 %v2719, %v2630
        %v2721 = vadd.f32 %v2720, %v2634
        %v2722 = vadd.f32 %v2721, %v2638
        %v2723 = vadd.f32 %v2722, %v2642
        %v2724 = vadd.f32 %v2723, %v2646
        %v2725 = vadd.f32 %v2724, %v2650
        %v2726 = vadd.f32 %v2725, %v2654
        %v2727 = vadd.f32 %v2726, %v2658
        %v2728 = vadd.f32 %v2727, %v2662
        %v2729 = vadd.f32 %v2728, %v2666
        %v2730 = vadd.f32 %v2729, %v2670
        %v2731 = vadd.f32 %v2730, %v2674
        %v2732 = vadd.f32 %v2731, %v2678
        %v2733 = vadd.f32 %v2732, %v2682
        %v2734 = vadd.f32 %v2733, %v2686
        %v2735 = vadd.f32 %v2734, %v2690
        %v2736 = vadd.f32 %v2735, %v2694
        %v2737 = vadd.f32 %v2736, %v2698
        %v2738 = vadd.f32 %v2737, %v2702
        %v2739 = vadd.f32 %v2738, %v2706
        %v2740 = vrot.slane %v2739, 4
        %v2741 = vadd.f32 %v2739, %v2740
        %v2742 = vrot.slane %v2741, 2
        %v2743 = vadd.f32 %v2741, %v2742
        %v2744 = vrot.slane %v2743, 1
        %v2745 = vadd.f32 %v2743, %v2744
        %v2746 = vadd.f32 %v2584, %v2588
        %v2747 = vadd.f32 %v2746, %v2592
        %v2748 = vadd.f32 %v2747, %v2596
        %v2749 = vadd.f32 %v2748, %v2600
        %v2750 = vadd.f32 %v2749, %v2604
        %v2751 = vadd.f32 %v2750, %v2608
        %v2752 = vadd.f32 %v2751, %v2612
        %v2753 = vadd.f32 %v2752, %v2616
        %v2754 = vadd.f32 %v2753, %v2620
        %v2755 = vadd.f32 %v2754, %v2624
        %v2756 = vadd.f32 %v2755, %v2628
        %v2757 = vadd.f32 %v2756, %v2632
        %v2758 = vadd.f32 %v2757, %v2636
        %v2759 = vadd.f32 %v2758, %v2640
        %v2760 = vadd.f32 %v2759, %v2644
        %v2761 = vadd.f32 %v2760, %v2648
        %v2762 = vadd.f32 %v2761, %v2652
        %v2763 = vadd.f32 %v2762, %v2656
        %v2764 = vadd.f32 %v2763, %v2660
        %v2765 = vadd.f32 %v2764, %v2664
        %v2766 = vadd.f32 %v2765, %v2668
        %v2767 = vadd.f32 %v2766, %v2672
        %v2768 = vadd.f32 %v2767, %v2676
        %v2769 = vadd.f32 %v2768, %v2680
        %v2770 = vadd.f32 %v2769, %v2684
        %v2771 = vadd.f32 %v2770, %v2688
        %v2772 = vadd.f32 %v2771, %v2692
        %v2773 = vadd.f32 %v2772, %v2696
        %v2774 = vadd.f32 %v2773, %v2700
        %v2775 = vadd.f32 %v2774, %v2704
        %v2776 = vadd.f32 %v2775, %v2708
        %v2777 = vrot.slane %v2776, 4
        %v2778 = vadd.f32 %v2776, %v2777
        %v2779 = vrot.slane %v2778, 2
        %v2780 = vadd.f32 %v2778, %v2779
        %v2781 = vrot.slane %v2780, 1
        %v2782 = vadd.f32 %v2780, %v2781
        %v2783 = vrcp.pop %v2745
        %v2784 = vrcp.pop %v2782
        %v2785 = vmul.f32 %v2582, %v2783
        %v2786 = vmul.f32 %v2584, %v2784
        %v2787 = vmul.f32 %v2586, %v2783
        %v2788 = vmul.f32 %v2588, %v2784
        %v2789 = vmul.f32 %v2590, %v2783
        %v2790 = vmul.f32 %v2592, %v2784
        %v2791 = vmul.f32 %v2594, %v2783
        %v2792 = vmul.f32 %v2596, %v2784
        %v2793 = vmul.f32 %v2598, %v2783
        %v2794 = vmul.f32 %v2600, %v2784
        %v2795 = vmul.f32 %v2602, %v2783
        %v2796 = vmul.f32 %v2604, %v2784
        %v2797 = vmul.f32 %v2606, %v2783
        %v2798 = vmul.f32 %v2608, %v2784
        %v2799 = vmul.f32 %v2610, %v2783
        %v2800 = vmul.f32 %v2612, %v2784
        %v2801 = vmul.f32 %v2614, %v2783
        %v2802 = vmul.f32 %v2616, %v2784
        %v2803 = vmul.f32 %v2618, %v2783
        %v2804 = vmul.f32 %v2620, %v2784
        %v2805 = vmul.f32 %v2622, %v2783
        %v2806 = vmul.f32 %v2624, %v2784
        %v2807 = vmul.f32 %v2626, %v2783
        %v2808 = vmul.f32 %v2628, %v2784
        %v2809 = vmul.f32 %v2630, %v2783
        %v2810 = vmul.f32 %v2632, %v2784
        %v2811 = vmul.f32 %v2634, %v2783
        %v2812 = vmul.f32 %v2636, %v2784
        %v2813 = vmul.f32 %v2638, %v2783
        %v2814 = vmul.f32 %v2640, %v2784
        %v2815 = vmul.f32 %v2642, %v2783
        %v2816 = vmul.f32 %v2644, %v2784
        %v2817 = vmul.f32 %v2646, %v2783
        %v2818 = vmul.f32 %v2648, %v2784
        %v2819 = vmul.f32 %v2650, %v2783
        %v2820 = vmul.f32 %v2652, %v2784
        %v2821 = vmul.f32 %v2654, %v2783
        %v2822 = vmul.f32 %v2656, %v2784
        %v2823 = vmul.f32 %v2658, %v2783
        %v2824 = vmul.f32 %v2660, %v2784
        %v2825 = vmul.f32 %v2662, %v2783
        %v2826 = vmul.f32 %v2664, %v2784
        %v2827 = vmul.f32 %v2666, %v2783
        %v2828 = vmul.f32 %v2668, %v2784
        %v2829 = vmul.f32 %v2670, %v2783
        %v2830 = vmul.f32 %v2672, %v2784
        %v2831 = vmul.f32 %v2674, %v2783
        %v2832 = vmul.f32 %v2676, %v2784
        %v2833 = vmul.f32 %v2678, %v2783
        %v2834 = vmul.f32 %v2680, %v2784
        %v2835 = vmul.f32 %v2682, %v2783
        %v2836 = vmul.f32 %v2684, %v2784
        %v2837 = vmul.f32 %v2686, %v2783
        %v2838 = vmul.f32 %v2688, %v2784
        %v2839 = vmul.f32 %v2690, %v2783
        %v2840 = vmul.f32 %v2692, %v2784
        %v2841 = vmul.f32 %v2694, %v2783
        %v2842 = vmul.f32 %v2696, %v2784
        %v2843 = vmul.f32 %v2698, %v2783
        %v2844 = vmul.f32 %v2700, %v2784
        %v2845 = vmul.f32 %v2702, %v2783
        %v2846 = vmul.f32 %v2704, %v2784
        %v2847 = vmul.f32 %v2706, %v2783
        %v2848 = vmul.f32 %v2708, %v2784
        %2849 = vmatprep.subr.mxu0 %v2816
        %2850 = vmatpush1.msra.mxu0 %v2815
        %2851 = vmatprep.subr.mxu0 %v2814
        %2852 = vmatpush1.msra.mxu0 %v2813
        %2853 = vmatprep.subr.mxu0 %v2812
        %2854 = vmatpush1.msra.mxu0 %v2811
        %2855 = vmatprep.subr.mxu0 %v2810
        %2856 = vmatpush1.msra.mxu0 %v2809
        %2857 = vmatprep.subr.mxu0 %v2808
        %2858 = vmatpush1.msra.mxu0 %v2807
        %2859 = vmatprep.subr.mxu0 %v2806
        %2860 = vmatpush1.msra.mxu0 %v2805
        %2861 = vmatprep.subr.mxu0 %v2804
        %2862 = vmatpush1.msra.mxu0 %v2803
        %2863 = vmatprep.subr.mxu0 %v2802
        %2864 = vmatpush1.msra.mxu0 %v2801
        %2865 = vmatprep.subr.mxu0 %v2800
        %2866 = vmatpush1.msra.mxu0 %v2799
        %2867 = vmatprep.subr.mxu0 %v2798
        %2868 = vmatpush1.msra.mxu0 %v2797
        %2869 = vmatprep.subr.mxu0 %v2796
        %2870 = vmatpush1.msra.mxu0 %v2795
        %2871 = vmatprep.subr.mxu0 %v2794
        %2872 = vmatpush1.msra.mxu0 %v2793
        %2873 = vmatprep.subr.mxu0 %v2792
        %2874 = vmatpush1.msra.mxu0 %v2791
        %2875 = vmatprep.subr.mxu0 %v2790
        %2876 = vmatpush1.msra.mxu0 %v2789
        %2877 = vmatprep.subr.mxu0 %v2788
        %2878 = vmatpush1.msra.mxu0 %v2787
        %2879 = vmatprep.subr.mxu0 %v2786
        %2880 = vmatpush1.msra.mxu0 %v2785
        %2881 = vmatprep.subr.mxu0 %v2848
        %2882 = vmatpush2.msra.mxu0 %v2847
        %2883 = vmatprep.subr.mxu0 %v2846
        %2884 = vmatpush2.msra.mxu0 %v2845
        %2885 = vmatprep.subr.mxu0 %v2844
        %2886 = vmatpush2.msra.mxu0 %v2843
        %2887 = vmatprep.subr.mxu0 %v2842
        %2888 = vmatpush2.msra.mxu0 %v2841
        %2889 = vmatprep.subr.mxu0 %v2840
        %2890 = vmatpush2.msra.mxu0 %v2839
        %2891 = vmatprep.subr.mxu0 %v2838
        %2892 = vmatpush2.msra.mxu0 %v2837
        %2893 = vmatprep.subr.mxu0 %v2836
        %2894 = vmatpush2.msra.mxu0 %v2835
        %2895 = vmatprep.subr.mxu0 %v2834
        %2896 = vmatpush2.msra.mxu0 %v2833
        %2897 = vmatprep.subr.mxu0 %v2832
        %2898 = vmatpush2.msra.mxu0 %v2831
        %2899 = vmatprep.subr.mxu0 %v2830
        %2900 = vmatpush2.msra.mxu0 %v2829
        %2901 = vmatprep.subr.mxu0 %v2828
        %2902 = vmatpush2.msra.mxu0 %v2827
        %2903 = vmatprep.subr.mxu0 %v2826
        %2904 = vmatpush2.msra.mxu0 %v2825
        %2905 = vmatprep.subr.mxu0 %v2824
        %2906 = vmatpush2.msra.mxu0 %v2823
        %2907 = vmatprep.subr.mxu0 %v2822
        %2908 = vmatpush2.msra.mxu0 %v2821
        %2909 = vmatprep.subr.mxu0 %v2820
        %2910 = vmatpush2.msra.mxu0 %v2819
        %2911 = vmatprep.subr.mxu0 %v2818
        %2912 = vmatpush2.msra.mxu0 %v2817
        %2913 = vmatprep.mubr.f32.mxu0 %v1037
        %2914 = vmatmul.mubr.f32.gmra.mxu0 %v1035
        %v2915 = vpop.f32.mrf.mxu0
        %v2916 = vadd.f32 0.0, %v2915
        %v2917 = vpop.f32.mrf.mxu0
        %v2918 = vadd.f32 0.0, %v2917
        %2919 = vmatprep.mubr.f32.mxu0 %v1043
        %2920 = vmatmul.mubr.f32.gmra.mxu0 %v1041
        %v2921 = vpop.f32.mrf.mxu0
        %v2922 = vadd.f32 0.0, %v2921
        %v2923 = vpop.f32.mrf.mxu0
        %v2924 = vadd.f32 0.0, %v2923
        %2925 = vmatprep.mubr.f32.mxu0 %v1049
        %2926 = vmatmul.mubr.f32.gmra.mxu0 %v1047
        %v2927 = vpop.f32.mrf.mxu0
        %v2928 = vadd.f32 0.0, %v2927
        %v2929 = vpop.f32.mrf.mxu0
        %v2930 = vadd.f32 0.0, %v2929
        %2931 = vmatprep.mubr.f32.mxu0 %v1055
        %2932 = vmatmul.mubr.f32.gmra.mxu0 %v1053
        %v2933 = vpop.f32.mrf.mxu0
        %v2934 = vadd.f32 0.0, %v2933
        %v2935 = vpop.f32.mrf.mxu0
        %v2936 = vadd.f32 0.0, %v2935
        %2937 = vdwg.mxu0
        %2938 = vst [vmem:[#allocation2 + $0x40] sm:$0xff] %v2916
        %2939 = vst [vmem:[#allocation2 + $0x48] sm:$0xff] %v2918
        %2940 = vst [vmem:[#allocation2 + $0x50] sm:$0xff] %v2922
        %2941 = vst [vmem:[#allocation2 + $0x58] sm:$0xff] %v2924
        %2942 = vst [vmem:[#allocation2 + $0x60] sm:$0xff] %v2928
        %2943 = vst [vmem:[#allocation2 + $0x68] sm:$0xff] %v2930
        %2944 = vst [vmem:[#allocation2 + $0x70] sm:$0xff] %v2934
        %2945 = vst [vmem:[#allocation2 + $0x78] sm:$0xff] %v2936
        %2946 = vxpose.xlu0.b32.start [1/16] %v963, 128
        %2947 = vxpose.xlu0.b32.cont [2/16] %v969, 128
        %2948 = vxpose.xlu0.b32.cont [3/16] %v975, 128
        %2949 = vxpose.xlu0.b32.cont [4/16] %v981, 128
        %2950 = vxpose.xlu0.b32.cont [5/16] 0.0, 128
        %2951 = vxpose.xlu0.b32.cont [6/16] 0.0, 128
        %2952 = vxpose.xlu0.b32.cont [7/16] 0.0, 128
        %2953 = vxpose.xlu0.b32.cont [8/16] 0.0, 128
        %2954 = vxpose.xlu0.b32.cont [9/16] 0.0, 128
        %2955 = vxpose.xlu0.b32.cont [10/16] 0.0, 128
        %2956 = vxpose.xlu0.b32.cont [11/16] 0.0, 128
        %2957 = vxpose.xlu0.b32.cont [12/16] 0.0, 128
        %2958 = vxpose.xlu0.b32.cont [13/16] 0.0, 128
        %2959 = vxpose.xlu0.b32.cont [14/16] 0.0, 128
        %2960 = vxpose.xlu0.b32.cont [15/16] 0.0, 128
        %2961 = vxpose.xlu0.b32.end [16/16] 0.0, 128
        %v2962 = vpop.trf.xlu0
        %v2963 = vpop.trf.xlu0
        %v2964 = vpop.trf.xlu0
        %v2965 = vpop.trf.xlu0
        %v2966 = vpop.trf.xlu0
        %v2967 = vpop.trf.xlu0
        %v2968 = vpop.trf.xlu0
        %v2969 = vpop.trf.xlu0
        %v2970 = vpop.trf.xlu0
        %v2971 = vpop.trf.xlu0
        %v2972 = vpop.trf.xlu0
        %v2973 = vpop.trf.xlu0
        %v2974 = vpop.trf.xlu0
        %v2975 = vpop.trf.xlu0
        %v2976 = vpop.trf.xlu0
        %v2977 = vpop.trf.xlu0
        %2978 = vxpose.xlu0.b32.start [1/16] %v965, 128
        %2979 = vxpose.xlu0.b32.cont [2/16] %v971, 128
        %2980 = vxpose.xlu0.b32.cont [3/16] %v977, 128
        %2981 = vxpose.xlu0.b32.cont [4/16] %v983, 128
        %2982 = vxpose.xlu0.b32.cont [5/16] 0.0, 128
        %2983 = vxpose.xlu0.b32.cont [6/16] 0.0, 128
        %2984 = vxpose.xlu0.b32.cont [7/16] 0.0, 128
        %2985 = vxpose.xlu0.b32.cont [8/16] 0.0, 128
        %2986 = vxpose.xlu0.b32.cont [9/16] 0.0, 128
        %2987 = vxpose.xlu0.b32.cont [10/16] 0.0, 128
        %2988 = vxpose.xlu0.b32.cont [11/16] 0.0, 128
        %2989 = vxpose.xlu0.b32.cont [12/16] 0.0, 128
        %2990 = vxpose.xlu0.b32.cont [13/16] 0.0, 128
        %2991 = vxpose.xlu0.b32.cont [14/16] 0.0, 128
        %2992 = vxpose.xlu0.b32.cont [15/16] 0.0, 128
        %2993 = vxpose.xlu0.b32.end [16/16] 0.0, 128
        %v2994 = vpop.trf.xlu0
        %v2995 = vpop.trf.xlu0
        %v2996 = vpop.trf.xlu0
        %v2997 = vpop.trf.xlu0
        %v2998 = vpop.trf.xlu0
        %v2999 = vpop.trf.xlu0
        %v3000 = vpop.trf.xlu0
        %v3001 = vpop.trf.xlu0
        %v3002 = vpop.trf.xlu0
        %v3003 = vpop.trf.xlu0
        %v3004 = vpop.trf.xlu0
        %v3005 = vpop.trf.xlu0
        %v3006 = vpop.trf.xlu0
        %v3007 = vpop.trf.xlu0
        %v3008 = vpop.trf.xlu0
        %v3009 = vpop.trf.xlu0
        %v3011 = vsel %vm1169, %v2962, 0
        %v3014 = vsel %vm1169, %v2963, 0
        %v3017 = vsel %vm1169, %v2964, 0
        %v3020 = vsel %vm1169, %v2965, 0
        %v3023 = vsel %vm1169, %v2966, 0
        %v3026 = vsel %vm1169, %v2967, 0
        %v3029 = vsel %vm1169, %v2968, 0
        %v3032 = vsel %vm1169, %v2969, 0
        %v3035 = vsel %vm1169, %v2970, 0
        %v3038 = vsel %vm1169, %v2971, 0
        %v3041 = vsel %vm1169, %v2972, 0
        %v3044 = vsel %vm1169, %v2973, 0
        %v3047 = vsel %vm1169, %v2974, 0
        %v3050 = vsel %vm1169, %v2975, 0
        %v3053 = vsel %vm1169, %v2976, 0
        %v3056 = vsel %vm1169, %v2977, 0
        %v3059 = vsel %vm1169, %v2994, 0
        %v3062 = vsel %vm1169, %v2995, 0
        %v3065 = vsel %vm1169, %v2996, 0
        %v3068 = vsel %vm1169, %v2997, 0
        %v3071 = vsel %vm1169, %v2998, 0
        %v3074 = vsel %vm1169, %v2999, 0
        %v3077 = vsel %vm1169, %v3000, 0
        %v3080 = vsel %vm1169, %v3001, 0
        %v3083 = vsel %vm1169, %v3002, 0
        %v3086 = vsel %vm1169, %v3003, 0
        %v3089 = vsel %vm1169, %v3004, 0
        %v3092 = vsel %vm1169, %v3005, 0
        %v3095 = vsel %vm1169, %v3006, 0
        %v3098 = vsel %vm1169, %v3007, 0
        %v3101 = vsel %vm1169, %v3008, 0
        %v3104 = vsel %vm1169, %v3009, 0
        %3106 = vmatprep.subr.mxu0 0.0
        %3107 = vmatpush1.msra.mxu0 0.0
        %3108 = vmatprep.subr.mxu0 0.0
        %3109 = vmatpush1.msra.mxu0 0.0
        %3110 = vmatprep.subr.mxu0 0.0
        %3111 = vmatpush1.msra.mxu0 0.0
        %3112 = vmatprep.subr.mxu0 0.0
        %3113 = vmatpush1.msra.mxu0 0.0
        %3114 = vmatprep.subr.mxu0 0.0
        %3115 = vmatpush1.msra.mxu0 0.0
        %3116 = vmatprep.subr.mxu0 0.0
        %3117 = vmatpush1.msra.mxu0 0.0
        %3118 = vmatprep.subr.mxu0 0.0
        %3119 = vmatpush1.msra.mxu0 0.0
        %3120 = vmatprep.subr.mxu0 0.0
        %3121 = vmatpush1.msra.mxu0 0.0
        %3122 = vmatprep.subr.mxu0 0.0
        %3123 = vmatpush1.msra.mxu0 0.0
        %3124 = vmatprep.subr.mxu0 0.0
        %3125 = vmatpush1.msra.mxu0 0.0
        %3126 = vmatprep.subr.mxu0 0.0
        %3127 = vmatpush1.msra.mxu0 0.0
        %3128 = vmatprep.subr.mxu0 0.0
        %3129 = vmatpush1.msra.mxu0 0.0
        %3130 = vmatprep.subr.mxu0 %v887
        %3131 = vmatpush1.msra.mxu0 %v885
        %3132 = vmatprep.subr.mxu0 %v881
        %3133 = vmatpush1.msra.mxu0 %v879
        %3134 = vmatprep.subr.mxu0 %v875
        %3135 = vmatpush1.msra.mxu0 %v873
        %3136 = vmatprep.subr.mxu0 %v869
        %3137 = vmatpush1.msra.mxu0 %v867
        %3138 = vmatprep.subr.mxu0 0.0
        %3139 = vmatpush2.msra.mxu0 0.0
        %3140 = vmatprep.subr.mxu0 0.0
        %3141 = vmatpush2.msra.mxu0 0.0
        %3142 = vmatprep.subr.mxu0 0.0
        %3143 = vmatpush2.msra.mxu0 0.0
        %3144 = vmatprep.subr.mxu0 0.0
        %3145 = vmatpush2.msra.mxu0 0.0
        %3146 = vmatprep.subr.mxu0 0.0
        %3147 = vmatpush2.msra.mxu0 0.0
        %3148 = vmatprep.subr.mxu0 0.0
        %3149 = vmatpush2.msra.mxu0 0.0
        %3150 = vmatprep.subr.mxu0 0.0
        %3151 = vmatpush2.msra.mxu0 0.0
        %3152 = vmatprep.subr.mxu0 0.0
        %3153 = vmatpush2.msra.mxu0 0.0
        %3154 = vmatprep.subr.mxu0 0.0
        %3155 = vmatpush2.msra.mxu0 0.0
        %3156 = vmatprep.subr.mxu0 0.0
        %3157 = vmatpush2.msra.mxu0 0.0
        %3158 = vmatprep.subr.mxu0 0.0
        %3159 = vmatpush2.msra.mxu0 0.0
        %3160 = vmatprep.subr.mxu0 0.0
        %3161 = vmatpush2.msra.mxu0 0.0
        %3162 = vmatprep.subr.mxu0 0.0
        %3163 = vmatpush2.msra.mxu0 0.0
        %3164 = vmatprep.subr.mxu0 0.0
        %3165 = vmatpush2.msra.mxu0 0.0
        %3166 = vmatprep.subr.mxu0 0.0
        %3167 = vmatpush2.msra.mxu0 0.0
        %3168 = vmatprep.subr.mxu0 0.0
        %3169 = vmatpush2.msra.mxu0 0.0
        %3170 = vmatprep.mubr.f32.mxu0 0.0
        %3171 = vmatmul.mubr.f32.gmra.mxu0 %v3011
        %v3172 = vpop.f32.mrf.mxu0
        %v3173 = vadd.f32 0.0, %v3172
        %v3174 = vpop.f32.mrf.mxu0
        %v3175 = vadd.f32 0.0, %v3174
        %3176 = vmatprep.mubr.f32.mxu0 0.0
        %3177 = vmatmul.mubr.f32.gmra.mxu0 %v3014
        %v3178 = vpop.f32.mrf.mxu0
        %v3179 = vadd.f32 0.0, %v3178
        %v3180 = vpop.f32.mrf.mxu0
        %v3181 = vadd.f32 0.0, %v3180
        %3182 = vmatprep.mubr.f32.mxu0 0.0
        %3183 = vmatmul.mubr.f32.gmra.mxu0 %v3017
        %v3184 = vpop.f32.mrf.mxu0
        %v3185 = vadd.f32 0.0, %v3184
        %v3186 = vpop.f32.mrf.mxu0
        %v3187 = vadd.f32 0.0, %v3186
        %3188 = vmatprep.mubr.f32.mxu0 0.0
        %3189 = vmatmul.mubr.f32.gmra.mxu0 %v3020
        %v3190 = vpop.f32.mrf.mxu0
        %v3191 = vadd.f32 0.0, %v3190
        %v3192 = vpop.f32.mrf.mxu0
        %v3193 = vadd.f32 0.0, %v3192
        %3194 = vmatprep.mubr.f32.mxu0 0.0
        %3195 = vmatmul.mubr.f32.gmra.mxu0 %v3023
        %v3196 = vpop.f32.mrf.mxu0
        %v3197 = vadd.f32 0.0, %v3196
        %v3198 = vpop.f32.mrf.mxu0
        %v3199 = vadd.f32 0.0, %v3198
        %3200 = vmatprep.mubr.f32.mxu0 0.0
        %3201 = vmatmul.mubr.f32.gmra.mxu0 %v3026
        %v3202 = vpop.f32.mrf.mxu0
        %v3203 = vadd.f32 0.0, %v3202
        %v3204 = vpop.f32.mrf.mxu0
        %v3205 = vadd.f32 0.0, %v3204
        %3206 = vmatprep.mubr.f32.mxu0 0.0
        %3207 = vmatmul.mubr.f32.gmra.mxu0 %v3029
        %v3208 = vpop.f32.mrf.mxu0
        %v3209 = vadd.f32 0.0, %v3208
        %v3210 = vpop.f32.mrf.mxu0
        %v3211 = vadd.f32 0.0, %v3210
        %3212 = vmatprep.mubr.f32.mxu0 0.0
        %3213 = vmatmul.mubr.f32.gmra.mxu0 %v3032
        %v3214 = vpop.f32.mrf.mxu0
        %v3215 = vadd.f32 0.0, %v3214
        %v3216 = vpop.f32.mrf.mxu0
        %v3217 = vadd.f32 0.0, %v3216
        %3218 = vmatprep.mubr.f32.mxu0 0.0
        %3219 = vmatmul.mubr.f32.gmra.mxu0 %v3035
        %v3220 = vpop.f32.mrf.mxu0
        %v3221 = vadd.f32 0.0, %v3220
        %v3222 = vpop.f32.mrf.mxu0
        %v3223 = vadd.f32 0.0, %v3222
        %3224 = vmatprep.mubr.f32.mxu0 0.0
        %3225 = vmatmul.mubr.f32.gmra.mxu0 %v3038
        %v3226 = vpop.f32.mrf.mxu0
        %v3227 = vadd.f32 0.0, %v3226
        %v3228 = vpop.f32.mrf.mxu0
        %v3229 = vadd.f32 0.0, %v3228
        %3230 = vmatprep.mubr.f32.mxu0 0.0
        %3231 = vmatmul.mubr.f32.gmra.mxu0 %v3041
        %v3232 = vpop.f32.mrf.mxu0
        %v3233 = vadd.f32 0.0, %v3232
        %v3234 = vpop.f32.mrf.mxu0
        %v3235 = vadd.f32 0.0, %v3234
        %3236 = vmatprep.mubr.f32.mxu0 0.0
        %3237 = vmatmul.mubr.f32.gmra.mxu0 %v3044
        %v3238 = vpop.f32.mrf.mxu0
        %v3239 = vadd.f32 0.0, %v3238
        %v3240 = vpop.f32.mrf.mxu0
        %v3241 = vadd.f32 0.0, %v3240
        %3242 = vmatprep.mubr.f32.mxu0 0.0
        %3243 = vmatmul.mubr.f32.gmra.mxu0 %v3047
        %v3244 = vpop.f32.mrf.mxu0
        %v3245 = vadd.f32 0.0, %v3244
        %v3246 = vpop.f32.mrf.mxu0
        %v3247 = vadd.f32 0.0, %v3246
        %3248 = vmatprep.mubr.f32.mxu0 0.0
        %3249 = vmatmul.mubr.f32.gmra.mxu0 %v3050
        %v3250 = vpop.f32.mrf.mxu0
        %v3251 = vadd.f32 0.0, %v3250
        %v3252 = vpop.f32.mrf.mxu0
        %v3253 = vadd.f32 0.0, %v3252
        %3254 = vmatprep.mubr.f32.mxu0 0.0
        %3255 = vmatmul.mubr.f32.gmra.mxu0 %v3053
        %v3256 = vpop.f32.mrf.mxu0
        %v3257 = vadd.f32 0.0, %v3256
        %v3258 = vpop.f32.mrf.mxu0
        %v3259 = vadd.f32 0.0, %v3258
        %3260 = vmatprep.mubr.f32.mxu0 0.0
        %3261 = vmatmul.mubr.f32.gmra.mxu0 %v3056
        %v3262 = vpop.f32.mrf.mxu0
        %v3263 = vadd.f32 0.0, %v3262
        %v3264 = vpop.f32.mrf.mxu0
        %v3265 = vadd.f32 0.0, %v3264
        %3266 = vmatprep.mubr.f32.mxu0 0.0
        %3267 = vmatmul.mubr.f32.gmra.mxu0 %v3059
        %v3268 = vpop.f32.mrf.mxu0
        %v3269 = vadd.f32 0.0, %v3268
        %v3270 = vpop.f32.mrf.mxu0
        %v3271 = vadd.f32 0.0, %v3270
        %3272 = vmatprep.mubr.f32.mxu0 0.0
        %3273 = vmatmul.mubr.f32.gmra.mxu0 %v3062
        %v3274 = vpop.f32.mrf.mxu0
        %v3275 = vadd.f32 0.0, %v3274
        %v3276 = vpop.f32.mrf.mxu0
        %v3277 = vadd.f32 0.0, %v3276
        %3278 = vmatprep.mubr.f32.mxu0 0.0
        %3279 = vmatmul.mubr.f32.gmra.mxu0 %v3065
        %v3280 = vpop.f32.mrf.mxu0
        %v3281 = vadd.f32 0.0, %v3280
        %v3282 = vpop.f32.mrf.mxu0
        %v3283 = vadd.f32 0.0, %v3282
        %3284 = vmatprep.mubr.f32.mxu0 0.0
        %3285 = vmatmul.mubr.f32.gmra.mxu0 %v3068
        %v3286 = vpop.f32.mrf.mxu0
        %v3287 = vadd.f32 0.0, %v3286
        %v3288 = vpop.f32.mrf.mxu0
        %v3289 = vadd.f32 0.0, %v3288
        %3290 = vmatprep.mubr.f32.mxu0 0.0
        %3291 = vmatmul.mubr.f32.gmra.mxu0 %v3071
        %v3292 = vpop.f32.mrf.mxu0
        %v3293 = vadd.f32 0.0, %v3292
        %v3294 = vpop.f32.mrf.mxu0
        %v3295 = vadd.f32 0.0, %v3294
        %3296 = vmatprep.mubr.f32.mxu0 0.0
        %3297 = vmatmul.mubr.f32.gmra.mxu0 %v3074
        %v3298 = vpop.f32.mrf.mxu0
        %v3299 = vadd.f32 0.0, %v3298
        %v3300 = vpop.f32.mrf.mxu0
        %v3301 = vadd.f32 0.0, %v3300
        %3302 = vmatprep.mubr.f32.mxu0 0.0
        %3303 = vmatmul.mubr.f32.gmra.mxu0 %v3077
        %v3304 = vpop.f32.mrf.mxu0
        %v3305 = vadd.f32 0.0, %v3304
        %v3306 = vpop.f32.mrf.mxu0
        %v3307 = vadd.f32 0.0, %v3306
        %3308 = vmatprep.mubr.f32.mxu0 0.0
        %3309 = vmatmul.mubr.f32.gmra.mxu0 %v3080
        %v3310 = vpop.f32.mrf.mxu0
        %v3311 = vadd.f32 0.0, %v3310
        %v3312 = vpop.f32.mrf.mxu0
        %v3313 = vadd.f32 0.0, %v3312
        %3314 = vmatprep.mubr.f32.mxu0 0.0
        %3315 = vmatmul.mubr.f32.gmra.mxu0 %v3083
        %v3316 = vpop.f32.mrf.mxu0
        %v3317 = vadd.f32 0.0, %v3316
        %v3318 = vpop.f32.mrf.mxu0
        %v3319 = vadd.f32 0.0, %v3318
        %3320 = vmatprep.mubr.f32.mxu0 0.0
        %3321 = vmatmul.mubr.f32.gmra.mxu0 %v3086
        %v3322 = vpop.f32.mrf.mxu0
        %v3323 = vadd.f32 0.0, %v3322
        %v3324 = vpop.f32.mrf.mxu0
        %v3325 = vadd.f32 0.0, %v3324
        %3326 = vmatprep.mubr.f32.mxu0 0.0
        %3327 = vmatmul.mubr.f32.gmra.mxu0 %v3089
        %v3328 = vpop.f32.mrf.mxu0
        %v3329 = vadd.f32 0.0, %v3328
        %v3330 = vpop.f32.mrf.mxu0
        %v3331 = vadd.f32 0.0, %v3330
        %3332 = vmatprep.mubr.f32.mxu0 0.0
        %3333 = vmatmul.mubr.f32.gmra.mxu0 %v3092
        %v3334 = vpop.f32.mrf.mxu0
        %v3335 = vadd.f32 0.0, %v3334
        %v3336 = vpop.f32.mrf.mxu0
        %v3337 = vadd.f32 0.0, %v3336
        %3338 = vmatprep.mubr.f32.mxu0 0.0
        %3339 = vmatmul.mubr.f32.gmra.mxu0 %v3095
        %v3340 = vpop.f32.mrf.mxu0
        %v3341 = vadd.f32 0.0, %v3340
        %v3342 = vpop.f32.mrf.mxu0
        %v3343 = vadd.f32 0.0, %v3342
        %3344 = vmatprep.mubr.f32.mxu0 0.0
        %3345 = vmatmul.mubr.f32.gmra.mxu0 %v3098
        %v3346 = vpop.f32.mrf.mxu0
        %v3347 = vadd.f32 0.0, %v3346
        %v3348 = vpop.f32.mrf.mxu0
        %v3349 = vadd.f32 0.0, %v3348
        %3350 = vmatprep.mubr.f32.mxu0 0.0
        %3351 = vmatmul.mubr.f32.gmra.mxu0 %v3101
        %v3352 = vpop.f32.mrf.mxu0
        %v3353 = vadd.f32 0.0, %v3352
        %v3354 = vpop.f32.mrf.mxu0
        %v3355 = vadd.f32 0.0, %v3354
        %3356 = vmatprep.mubr.f32.mxu0 0.0
        %3357 = vmatmul.mubr.f32.gmra.mxu0 %v3104
        %v3358 = vpop.f32.mrf.mxu0
        %v3359 = vadd.f32 0.0, %v3358
        %v3360 = vpop.f32.mrf.mxu0
        %v3361 = vadd.f32 0.0, %v3360
        %3362 = vdwg.mxu0
        %v3363 = vmax.f32 %v3173, %v3185
        %v3364 = vmax.f32 %v3179, %v3191
        %v3365 = vmax.f32 %v3363, %v3197
        %v3366 = vmax.f32 %v3364, %v3203
        %v3367 = vmax.f32 %v3365, %v3209
        %v3368 = vmax.f32 %v3366, %v3215
        %v3369 = vmax.f32 %v3367, %v3221
        %v3370 = vmax.f32 %v3368, %v3227
        %v3371 = vmax.f32 %v3369, %v3233
        %v3372 = vmax.f32 %v3370, %v3239
        %v3373 = vmax.f32 %v3371, %v3245
        %v3374 = vmax.f32 %v3372, %v3251
        %v3375 = vmax.f32 %v3373, %v3257
        %v3376 = vmax.f32 %v3374, %v3263
        %v3377 = vmax.f32 %v3375, %v3269
        %v3378 = vmax.f32 %v3376, %v3275
        %v3379 = vmax.f32 %v3377, %v3281
        %v3380 = vmax.f32 %v3378, %v3287
        %v3381 = vmax.f32 %v3379, %v3293
        %v3382 = vmax.f32 %v3380, %v3299
        %v3383 = vmax.f32 %v3381, %v3305
        %v3384 = vmax.f32 %v3382, %v3311
        %v3385 = vmax.f32 %v3383, %v3317
        %v3386 = vmax.f32 %v3384, %v3323
        %v3387 = vmax.f32 %v3385, %v3329
        %v3388 = vmax.f32 %v3386, %v3335
        %v3389 = vmax.f32 %v3387, %v3341
        %v3390 = vmax.f32 %v3388, %v3347
        %v3391 = vmax.f32 %v3389, %v3353
        %v3392 = vmax.f32 %v3390, %v3359
        %v3393 = vmax.f32 %v3391, %v3392
        %v3394 = vrot.slane %v3393, 4
        %v3395 = vmax.f32 %v3393, %v3394
        %v3396 = vrot.slane %v3395, 2
        %v3397 = vmax.f32 %v3395, %v3396
        %v3398 = vrot.slane %v3397, 1
        %v3399 = vmax.f32 %v3397, %v3398
        %v3400 = vmax.f32 %v3175, %v3187
        %v3401 = vmax.f32 %v3181, %v3193
        %v3402 = vmax.f32 %v3400, %v3199
        %v3403 = vmax.f32 %v3401, %v3205
        %v3404 = vmax.f32 %v3402, %v3211
        %v3405 = vmax.f32 %v3403, %v3217
        %v3406 = vmax.f32 %v3404, %v3223
        %v3407 = vmax.f32 %v3405, %v3229
        %v3408 = vmax.f32 %v3406, %v3235
        %v3409 = vmax.f32 %v3407, %v3241
        %v3410 = vmax.f32 %v3408, %v3247
        %v3411 = vmax.f32 %v3409, %v3253
        %v3412 = vmax.f32 %v3410, %v3259
        %v3413 = vmax.f32 %v3411, %v3265
        %v3414 = vmax.f32 %v3412, %v3271
        %v3415 = vmax.f32 %v3413, %v3277
        %v3416 = vmax.f32 %v3414, %v3283
        %v3417 = vmax.f32 %v3415, %v3289
        %v3418 = vmax.f32 %v3416, %v3295
        %v3419 = vmax.f32 %v3417, %v3301
        %v3420 = vmax.f32 %v3418, %v3307
        %v3421 = vmax.f32 %v3419, %v3313
        %v3422 = vmax.f32 %v3420, %v3319
        %v3423 = vmax.f32 %v3421, %v3325
        %v3424 = vmax.f32 %v3422, %v3331
        %v3425 = vmax.f32 %v3423, %v3337
        %v3426 = vmax.f32 %v3424, %v3343
        %v3427 = vmax.f32 %v3425, %v3349
        %v3428 = vmax.f32 %v3426, %v3355
        %v3429 = vmax.f32 %v3427, %v3361
        %v3430 = vmax.f32 %v3428, %v3429
        %v3431 = vrot.slane %v3430, 4
        %v3432 = vmax.f32 %v3430, %v3431
        %v3433 = vrot.slane %v3432, 2
        %v3434 = vmax.f32 %v3432, %v3433
        %v3435 = vrot.slane %v3434, 1
        %v3436 = vmax.f32 %v3434, %v3435
        %v3437 = vsub.f32 %v3173, %v3399
        %v3438 = vsub.f32 %v3175, %v3436
        %v3439 = vsub.f32 %v3179, %v3399
        %v3440 = vsub.f32 %v3181, %v3436
        %v3441 = vsub.f32 %v3185, %v3399
        %v3442 = vsub.f32 %v3187, %v3436
        %v3443 = vsub.f32 %v3191, %v3399
        %v3444 = vsub.f32 %v3193, %v3436
        %v3445 = vsub.f32 %v3197, %v3399
        %v3446 = vsub.f32 %v3199, %v3436
        %v3447 = vsub.f32 %v3203, %v3399
        %v3448 = vsub.f32 %v3205, %v3436
        %v3449 = vsub.f32 %v3209, %v3399
        %v3450 = vsub.f32 %v3211, %v3436
        %v3451 = vsub.f32 %v3215, %v3399
        %v3452 = vsub.f32 %v3217, %v3436
        %v3453 = vsub.f32 %v3221, %v3399
        %v3454 = vsub.f32 %v3223, %v3436
        %v3455 = vsub.f32 %v3227, %v3399
        %v3456 = vsub.f32 %v3229, %v3436
        %v3457 = vsub.f32 %v3233, %v3399
        %v3458 = vsub.f32 %v3235, %v3436
        %v3459 = vsub.f32 %v3239, %v3399
        %v3460 = vsub.f32 %v3241, %v3436
        %v3461 = vsub.f32 %v3245, %v3399
        %v3462 = vsub.f32 %v3247, %v3436
        %v3463 = vsub.f32 %v3251, %v3399
        %v3464 = vsub.f32 %v3253, %v3436
        %v3465 = vsub.f32 %v3257, %v3399
        %v3466 = vsub.f32 %v3259, %v3436
        %v3467 = vsub.f32 %v3263, %v3399
        %v3468 = vsub.f32 %v3265, %v3436
        %v3469 = vsub.f32 %v3269, %v3399
        %v3470 = vsub.f32 %v3271, %v3436
        %v3471 = vsub.f32 %v3275, %v3399
        %v3472 = vsub.f32 %v3277, %v3436
        %v3473 = vsub.f32 %v3281, %v3399
        %v3474 = vsub.f32 %v3283, %v3436
        %v3475 = vsub.f32 %v3287, %v3399
        %v3476 = vsub.f32 %v3289, %v3436
        %v3477 = vsub.f32 %v3293, %v3399
        %v3478 = vsub.f32 %v3295, %v3436
        %v3479 = vsub.f32 %v3299, %v3399
        %v3480 = vsub.f32 %v3301, %v3436
        %v3481 = vsub.f32 %v3305, %v3399
        %v3482 = vsub.f32 %v3307, %v3436
        %v3483 = vsub.f32 %v3311, %v3399
        %v3484 = vsub.f32 %v3313, %v3436
        %v3485 = vsub.f32 %v3317, %v3399
        %v3486 = vsub.f32 %v3319, %v3436
        %v3487 = vsub.f32 %v3323, %v3399
        %v3488 = vsub.f32 %v3325, %v3436
        %v3489 = vsub.f32 %v3329, %v3399
        %v3490 = vsub.f32 %v3331, %v3436
        %v3491 = vsub.f32 %v3335, %v3399
        %v3492 = vsub.f32 %v3337, %v3436
        %v3493 = vsub.f32 %v3341, %v3399
        %v3494 = vsub.f32 %v3343, %v3436
        %v3495 = vsub.f32 %v3347, %v3399
        %v3496 = vsub.f32 %v3349, %v3436
        %v3497 = vsub.f32 %v3353, %v3399
        %v3498 = vsub.f32 %v3355, %v3436
        %v3499 = vsub.f32 %v3359, %v3399
        %v3500 = vsub.f32 %v3361, %v3436
        %v3501 = vmul.f32 %v3437, 1.442695
        %v3502 = vpow.pop %v3501
        %v3503 = vmul.f32 %v3438, 1.442695
        %v3504 = vpow.pop %v3503
        %v3505 = vmul.f32 %v3439, 1.442695
        %v3506 = vpow.pop %v3505
        %v3507 = vmul.f32 %v3440, 1.442695
        %v3508 = vpow.pop %v3507
        %v3509 = vmul.f32 %v3441, 1.442695
        %v3510 = vpow.pop %v3509
        %v3511 = vmul.f32 %v3442, 1.442695
        %v3512 = vpow.pop %v3511
        %v3513 = vmul.f32 %v3443, 1.442695
        %v3514 = vpow.pop %v3513
        %v3515 = vmul.f32 %v3444, 1.442695
        %v3516 = vpow.pop %v3515
        %v3517 = vmul.f32 %v3445, 1.442695
        %v3518 = vpow.pop %v3517
        %v3519 = vmul.f32 %v3446, 1.442695
        %v3520 = vpow.pop %v3519
        %v3521 = vmul.f32 %v3447, 1.442695
        %v3522 = vpow.pop %v3521
        %v3523 = vmul.f32 %v3448, 1.442695
        %v3524 = vpow.pop %v3523
        %v3525 = vmul.f32 %v3449, 1.442695
        %v3526 = vpow.pop %v3525
        %v3527 = vmul.f32 %v3450, 1.442695
        %v3528 = vpow.pop %v3527
        %v3529 = vmul.f32 %v3451, 1.442695
        %v3530 = vpow.pop %v3529
        %v3531 = vmul.f32 %v3452, 1.442695
        %v3532 = vpow.pop %v3531
        %v3533 = vmul.f32 %v3453, 1.442695
        %v3534 = vpow.pop %v3533
        %v3535 = vmul.f32 %v3454, 1.442695
        %v3536 = vpow.pop %v3535
        %v3537 = vmul.f32 %v3455, 1.442695
        %v3538 = vpow.pop %v3537
        %v3539 = vmul.f32 %v3456, 1.442695
        %v3540 = vpow.pop %v3539
        %v3541 = vmul.f32 %v3457, 1.442695
        %v3542 = vpow.pop %v3541
        %v3543 = vmul.f32 %v3458, 1.442695
        %v3544 = vpow.pop %v3543
        %v3545 = vmul.f32 %v3459, 1.442695
        %v3546 = vpow.pop %v3545
        %v3547 = vmul.f32 %v3460, 1.442695
        %v3548 = vpow.pop %v3547
        %v3549 = vmul.f32 %v3461, 1.442695
        %v3550 = vpow.pop %v3549
        %v3551 = vmul.f32 %v3462, 1.442695
        %v3552 = vpow.pop %v3551
        %v3553 = vmul.f32 %v3463, 1.442695
        %v3554 = vpow.pop %v3553
        %v3555 = vmul.f32 %v3464, 1.442695
        %v3556 = vpow.pop %v3555
        %v3557 = vmul.f32 %v3465, 1.442695
        %v3558 = vpow.pop %v3557
        %v3559 = vmul.f32 %v3466, 1.442695
        %v3560 = vpow.pop %v3559
        %v3561 = vmul.f32 %v3467, 1.442695
        %v3562 = vpow.pop %v3561
        %v3563 = vmul.f32 %v3468, 1.442695
        %v3564 = vpow.pop %v3563
        %v3565 = vmul.f32 %v3469, 1.442695
        %v3566 = vpow.pop %v3565
        %v3567 = vmul.f32 %v3470, 1.442695
        %v3568 = vpow.pop %v3567
        %v3569 = vmul.f32 %v3471, 1.442695
        %v3570 = vpow.pop %v3569
        %v3571 = vmul.f32 %v3472, 1.442695
        %v3572 = vpow.pop %v3571
        %v3573 = vmul.f32 %v3473, 1.442695
        %v3574 = vpow.pop %v3573
        %v3575 = vmul.f32 %v3474, 1.442695
        %v3576 = vpow.pop %v3575
        %v3577 = vmul.f32 %v3475, 1.442695
        %v3578 = vpow.pop %v3577
        %v3579 = vmul.f32 %v3476, 1.442695
        %v3580 = vpow.pop %v3579
        %v3581 = vmul.f32 %v3477, 1.442695
        %v3582 = vpow.pop %v3581
        %v3583 = vmul.f32 %v3478, 1.442695
        %v3584 = vpow.pop %v3583
        %v3585 = vmul.f32 %v3479, 1.442695
        %v3586 = vpow.pop %v3585
        %v3587 = vmul.f32 %v3480, 1.442695
        %v3588 = vpow.pop %v3587
        %v3589 = vmul.f32 %v3481, 1.442695
        %v3590 = vpow.pop %v3589
        %v3591 = vmul.f32 %v3482, 1.442695
        %v3592 = vpow.pop %v3591
        %v3593 = vmul.f32 %v3483, 1.442695
        %v3594 = vpow.pop %v3593
        %v3595 = vmul.f32 %v3484, 1.442695
        %v3596 = vpow.pop %v3595
        %v3597 = vmul.f32 %v3485, 1.442695
        %v3598 = vpow.pop %v3597
        %v3599 = vmul.f32 %v3486, 1.442695
        %v3600 = vpow.pop %v3599
        %v3601 = vmul.f32 %v3487, 1.442695
        %v3602 = vpow.pop %v3601
        %v3603 = vmul.f32 %v3488, 1.442695
        %v3604 = vpow.pop %v3603
        %v3605 = vmul.f32 %v3489, 1.442695
        %v3606 = vpow.pop %v3605
        %v3607 = vmul.f32 %v3490, 1.442695
        %v3608 = vpow.pop %v3607
        %v3609 = vmul.f32 %v3491, 1.442695
        %v3610 = vpow.pop %v3609
        %v3611 = vmul.f32 %v3492, 1.442695
        %v3612 = vpow.pop %v3611
        %v3613 = vmul.f32 %v3493, 1.442695
        %v3614 = vpow.pop %v3613
        %v3615 = vmul.f32 %v3494, 1.442695
        %v3616 = vpow.pop %v3615
        %v3617 = vmul.f32 %v3495, 1.442695
        %v3618 = vpow.pop %v3617
        %v3619 = vmul.f32 %v3496, 1.442695
        %v3620 = vpow.pop %v3619
        %v3621 = vmul.f32 %v3497, 1.442695
        %v3622 = vpow.pop %v3621
        %v3623 = vmul.f32 %v3498, 1.442695
        %v3624 = vpow.pop %v3623
        %v3625 = vmul.f32 %v3499, 1.442695
        %v3626 = vpow.pop %v3625
        %v3627 = vmul.f32 %v3500, 1.442695
        %v3628 = vpow.pop %v3627
        %v3629 = vadd.f32 %v3502, %v3506
        %v3630 = vadd.f32 %v3629, %v3510
        %v3631 = vadd.f32 %v3630, %v3514
        %v3632 = vadd.f32 %v3631, %v3518
        %v3633 = vadd.f32 %v3632, %v3522
        %v3634 = vadd.f32 %v3633, %v3526
        %v3635 = vadd.f32 %v3634, %v3530
        %v3636 = vadd.f32 %v3635, %v3534
        %v3637 = vadd.f32 %v3636, %v3538
        %v3638 = vadd.f32 %v3637, %v3542
        %v3639 = vadd.f32 %v3638, %v3546
        %v3640 = vadd.f32 %v3639, %v3550
        %v3641 = vadd.f32 %v3640, %v3554
        %v3642 = vadd.f32 %v3641, %v3558
        %v3643 = vadd.f32 %v3642, %v3562
        %v3644 = vadd.f32 %v3643, %v3566
        %v3645 = vadd.f32 %v3644, %v3570
        %v3646 = vadd.f32 %v3645, %v3574
        %v3647 = vadd.f32 %v3646, %v3578
        %v3648 = vadd.f32 %v3647, %v3582
        %v3649 = vadd.f32 %v3648, %v3586
        %v3650 = vadd.f32 %v3649, %v3590
        %v3651 = vadd.f32 %v3650, %v3594
        %v3652 = vadd.f32 %v3651, %v3598
        %v3653 = vadd.f32 %v3652, %v3602
        %v3654 = vadd.f32 %v3653, %v3606
        %v3655 = vadd.f32 %v3654, %v3610
        %v3656 = vadd.f32 %v3655, %v3614
        %v3657 = vadd.f32 %v3656, %v3618
        %v3658 = vadd.f32 %v3657, %v3622
        %v3659 = vadd.f32 %v3658, %v3626
        %v3660 = vrot.slane %v3659, 4
        %v3661 = vadd.f32 %v3659, %v3660
        %v3662 = vrot.slane %v3661, 2
        %v3663 = vadd.f32 %v3661, %v3662
        %v3664 = vrot.slane %v3663, 1
        %v3665 = vadd.f32 %v3663, %v3664
        %v3666 = vadd.f32 %v3504, %v3508
        %v3667 = vadd.f32 %v3666, %v3512
        %v3668 = vadd.f32 %v3667, %v3516
        %v3669 = vadd.f32 %v3668, %v3520
        %v3670 = vadd.f32 %v3669, %v3524
        %v3671 = vadd.f32 %v3670, %v3528
        %v3672 = vadd.f32 %v3671, %v3532
        %v3673 = vadd.f32 %v3672, %v3536
        %v3674 = vadd.f32 %v3673, %v3540
        %v3675 = vadd.f32 %v3674, %v3544
        %v3676 = vadd.f32 %v3675, %v3548
        %v3677 = vadd.f32 %v3676, %v3552
        %v3678 = vadd.f32 %v3677, %v3556
        %v3679 = vadd.f32 %v3678, %v3560
        %v3680 = vadd.f32 %v3679, %v3564
        %v3681 = vadd.f32 %v3680, %v3568
        %v3682 = vadd.f32 %v3681, %v3572
        %v3683 = vadd.f32 %v3682, %v3576
        %v3684 = vadd.f32 %v3683, %v3580
        %v3685 = vadd.f32 %v3684, %v3584
        %v3686 = vadd.f32 %v3685, %v3588
        %v3687 = vadd.f32 %v3686, %v3592
        %v3688 = vadd.f32 %v3687, %v3596
        %v3689 = vadd.f32 %v3688, %v3600
        %v3690 = vadd.f32 %v3689, %v3604
        %v3691 = vadd.f32 %v3690, %v3608
        %v3692 = vadd.f32 %v3691, %v3612
        %v3693 = vadd.f32 %v3692, %v3616
        %v3694 = vadd.f32 %v3693, %v3620
        %v3695 = vadd.f32 %v3694, %v3624
        %v3696 = vadd.f32 %v3695, %v3628
        %v3697 = vrot.slane %v3696, 4
        %v3698 = vadd.f32 %v3696, %v3697
        %v3699 = vrot.slane %v3698, 2
        %v3700 = vadd.f32 %v3698, %v3699
        %v3701 = vrot.slane %v3700, 1
        %v3702 = vadd.f32 %v3700, %v3701
        %v3703 = vrcp.pop %v3665
        %v3704 = vrcp.pop %v3702
        %v3705 = vmul.f32 %v3502, %v3703
        %v3706 = vmul.f32 %v3504, %v3704
        %v3707 = vmul.f32 %v3506, %v3703
        %v3708 = vmul.f32 %v3508, %v3704
        %v3709 = vmul.f32 %v3510, %v3703
        %v3710 = vmul.f32 %v3512, %v3704
        %v3711 = vmul.f32 %v3514, %v3703
        %v3712 = vmul.f32 %v3516, %v3704
        %v3713 = vmul.f32 %v3518, %v3703
        %v3714 = vmul.f32 %v3520, %v3704
        %v3715 = vmul.f32 %v3522, %v3703
        %v3716 = vmul.f32 %v3524, %v3704
        %v3717 = vmul.f32 %v3526, %v3703
        %v3718 = vmul.f32 %v3528, %v3704
        %v3719 = vmul.f32 %v3530, %v3703
        %v3720 = vmul.f32 %v3532, %v3704
        %v3721 = vmul.f32 %v3534, %v3703
        %v3722 = vmul.f32 %v3536, %v3704
        %v3723 = vmul.f32 %v3538, %v3703
        %v3724 = vmul.f32 %v3540, %v3704
        %v3725 = vmul.f32 %v3542, %v3703
        %v3726 = vmul.f32 %v3544, %v3704
        %v3727 = vmul.f32 %v3546, %v3703
        %v3728 = vmul.f32 %v3548, %v3704
        %v3729 = vmul.f32 %v3550, %v3703
        %v3730 = vmul.f32 %v3552, %v3704
        %v3731 = vmul.f32 %v3554, %v3703
        %v3732 = vmul.f32 %v3556, %v3704
        %v3733 = vmul.f32 %v3558, %v3703
        %v3734 = vmul.f32 %v3560, %v3704
        %v3735 = vmul.f32 %v3562, %v3703
        %v3736 = vmul.f32 %v3564, %v3704
        %v3737 = vmul.f32 %v3566, %v3703
        %v3738 = vmul.f32 %v3568, %v3704
        %v3739 = vmul.f32 %v3570, %v3703
        %v3740 = vmul.f32 %v3572, %v3704
        %v3741 = vmul.f32 %v3574, %v3703
        %v3742 = vmul.f32 %v3576, %v3704
        %v3743 = vmul.f32 %v3578, %v3703
        %v3744 = vmul.f32 %v3580, %v3704
        %v3745 = vmul.f32 %v3582, %v3703
        %v3746 = vmul.f32 %v3584, %v3704
        %v3747 = vmul.f32 %v3586, %v3703
        %v3748 = vmul.f32 %v3588, %v3704
        %v3749 = vmul.f32 %v3590, %v3703
        %v3750 = vmul.f32 %v3592, %v3704
        %v3751 = vmul.f32 %v3594, %v3703
        %v3752 = vmul.f32 %v3596, %v3704
        %v3753 = vmul.f32 %v3598, %v3703
        %v3754 = vmul.f32 %v3600, %v3704
        %v3755 = vmul.f32 %v3602, %v3703
        %v3756 = vmul.f32 %v3604, %v3704
        %v3757 = vmul.f32 %v3606, %v3703
        %v3758 = vmul.f32 %v3608, %v3704
        %v3759 = vmul.f32 %v3610, %v3703
        %v3760 = vmul.f32 %v3612, %v3704
        %v3761 = vmul.f32 %v3614, %v3703
        %v3762 = vmul.f32 %v3616, %v3704
        %v3763 = vmul.f32 %v3618, %v3703
        %v3764 = vmul.f32 %v3620, %v3704
        %v3765 = vmul.f32 %v3622, %v3703
        %v3766 = vmul.f32 %v3624, %v3704
        %v3767 = vmul.f32 %v3626, %v3703
        %v3768 = vmul.f32 %v3628, %v3704
        %3769 = vmatprep.subr.mxu0 %v3736
        %3770 = vmatpush1.msra.mxu0 %v3735
        %3771 = vmatprep.subr.mxu0 %v3734
        %3772 = vmatpush1.msra.mxu0 %v3733
        %3773 = vmatprep.subr.mxu0 %v3732
        %3774 = vmatpush1.msra.mxu0 %v3731
        %3775 = vmatprep.subr.mxu0 %v3730
        %3776 = vmatpush1.msra.mxu0 %v3729
        %3777 = vmatprep.subr.mxu0 %v3728
        %3778 = vmatpush1.msra.mxu0 %v3727
        %3779 = vmatprep.subr.mxu0 %v3726
        %3780 = vmatpush1.msra.mxu0 %v3725
        %3781 = vmatprep.subr.mxu0 %v3724
        %3782 = vmatpush1.msra.mxu0 %v3723
        %3783 = vmatprep.subr.mxu0 %v3722
        %3784 = vmatpush1.msra.mxu0 %v3721
        %3785 = vmatprep.subr.mxu0 %v3720
        %3786 = vmatpush1.msra.mxu0 %v3719
        %3787 = vmatprep.subr.mxu0 %v3718
        %3788 = vmatpush1.msra.mxu0 %v3717
        %3789 = vmatprep.subr.mxu0 %v3716
        %3790 = vmatpush1.msra.mxu0 %v3715
        %3791 = vmatprep.subr.mxu0 %v3714
        %3792 = vmatpush1.msra.mxu0 %v3713
        %3793 = vmatprep.subr.mxu0 %v3712
        %3794 = vmatpush1.msra.mxu0 %v3711
        %3795 = vmatprep.subr.mxu0 %v3710
        %3796 = vmatpush1.msra.mxu0 %v3709
        %3797 = vmatprep.subr.mxu0 %v3708
        %3798 = vmatpush1.msra.mxu0 %v3707
        %3799 = vmatprep.subr.mxu0 %v3706
        %3800 = vmatpush1.msra.mxu0 %v3705
        %3801 = vmatprep.subr.mxu0 %v3768
        %3802 = vmatpush2.msra.mxu0 %v3767
        %3803 = vmatprep.subr.mxu0 %v3766
        %3804 = vmatpush2.msra.mxu0 %v3765
        %3805 = vmatprep.subr.mxu0 %v3764
        %3806 = vmatpush2.msra.mxu0 %v3763
        %3807 = vmatprep.subr.mxu0 %v3762
        %3808 = vmatpush2.msra.mxu0 %v3761
        %3809 = vmatprep.subr.mxu0 %v3760
        %3810 = vmatpush2.msra.mxu0 %v3759
        %3811 = vmatprep.subr.mxu0 %v3758
        %3812 = vmatpush2.msra.mxu0 %v3757
        %3813 = vmatprep.subr.mxu0 %v3756
        %3814 = vmatpush2.msra.mxu0 %v3755
        %3815 = vmatprep.subr.mxu0 %v3754
        %3816 = vmatpush2.msra.mxu0 %v3753
        %3817 = vmatprep.subr.mxu0 %v3752
        %3818 = vmatpush2.msra.mxu0 %v3751
        %3819 = vmatprep.subr.mxu0 %v3750
        %3820 = vmatpush2.msra.mxu0 %v3749
        %3821 = vmatprep.subr.mxu0 %v3748
        %3822 = vmatpush2.msra.mxu0 %v3747
        %3823 = vmatprep.subr.mxu0 %v3746
        %3824 = vmatpush2.msra.mxu0 %v3745
        %3825 = vmatprep.subr.mxu0 %v3744
        %3826 = vmatpush2.msra.mxu0 %v3743
        %3827 = vmatprep.subr.mxu0 %v3742
        %3828 = vmatpush2.msra.mxu0 %v3741
        %3829 = vmatprep.subr.mxu0 %v3740
        %3830 = vmatpush2.msra.mxu0 %v3739
        %3831 = vmatprep.subr.mxu0 %v3738
        %3832 = vmatpush2.msra.mxu0 %v3737
        %3833 = vmatprep.mubr.f32.mxu0 %v1061
        %3834 = vmatmul.mubr.f32.gmra.mxu0 %v1059
        %v3835 = vpop.f32.mrf.mxu0
        %v3836 = vadd.f32 0.0, %v3835
        %v3837 = vpop.f32.mrf.mxu0
        %v3838 = vadd.f32 0.0, %v3837
        %3839 = vmatprep.mubr.f32.mxu0 %v1067
        %3840 = vmatmul.mubr.f32.gmra.mxu0 %v1065
        %v3841 = vpop.f32.mrf.mxu0
        %v3842 = vadd.f32 0.0, %v3841
        %v3843 = vpop.f32.mrf.mxu0
        %v3844 = vadd.f32 0.0, %v3843
        %3845 = vmatprep.mubr.f32.mxu0 %v1073
        %3846 = vmatmul.mubr.f32.gmra.mxu0 %v1071
        %v3847 = vpop.f32.mrf.mxu0
        %v3848 = vadd.f32 0.0, %v3847
        %v3849 = vpop.f32.mrf.mxu0
        %v3850 = vadd.f32 0.0, %v3849
        %3851 = vmatprep.mubr.f32.mxu0 %v1079
        %3852 = vmatmul.mubr.f32.gmra.mxu0 %v1077
        %v3853 = vpop.f32.mrf.mxu0
        %v3854 = vadd.f32 0.0, %v3853
        %v3855 = vpop.f32.mrf.mxu0
        %v3856 = vadd.f32 0.0, %v3855
        %3857 = vdwg.mxu0
        %3858 = vst [vmem:[#allocation2 + $0x80] sm:$0xff] %v3836
        %3859 = vst [vmem:[#allocation2 + $0x88] sm:$0xff] %v3838
        %3860 = vst [vmem:[#allocation2 + $0x90] sm:$0xff] %v3842
        %3861 = vst [vmem:[#allocation2 + $0x98] sm:$0xff] %v3844
        %3862 = vst [vmem:[#allocation2 + $0xa0] sm:$0xff] %v3848
        %3863 = vst [vmem:[#allocation2 + $0xa8] sm:$0xff] %v3850
        %3864 = vst [vmem:[#allocation2 + $0xb0] sm:$0xff] %v3854
        %3865 = vst [vmem:[#allocation2 + $0xb8] sm:$0xff] %v3856
        %3866 = vxpose.xlu0.b32.start [1/16] %v987, 128
        %3867 = vxpose.xlu0.b32.cont [2/16] %v993, 128
        %3868 = vxpose.xlu0.b32.cont [3/16] %v999, 128
        %3869 = vxpose.xlu0.b32.cont [4/16] %v1005, 128
        %3870 = vxpose.xlu0.b32.cont [5/16] 0.0, 128
        %3871 = vxpose.xlu0.b32.cont [6/16] 0.0, 128
        %3872 = vxpose.xlu0.b32.cont [7/16] 0.0, 128
        %3873 = vxpose.xlu0.b32.cont [8/16] 0.0, 128
        %3874 = vxpose.xlu0.b32.cont [9/16] 0.0, 128
        %3875 = vxpose.xlu0.b32.cont [10/16] 0.0, 128
        %3876 = vxpose.xlu0.b32.cont [11/16] 0.0, 128
        %3877 = vxpose.xlu0.b32.cont [12/16] 0.0, 128
        %3878 = vxpose.xlu0.b32.cont [13/16] 0.0, 128
        %3879 = vxpose.xlu0.b32.cont [14/16] 0.0, 128
        %3880 = vxpose.xlu0.b32.cont [15/16] 0.0, 128
        %3881 = vxpose.xlu0.b32.end [16/16] 0.0, 128
        %v3882 = vpop.trf.xlu0
        %v3883 = vpop.trf.xlu0
        %v3884 = vpop.trf.xlu0
        %v3885 = vpop.trf.xlu0
        %v3886 = vpop.trf.xlu0
        %v3887 = vpop.trf.xlu0
        %v3888 = vpop.trf.xlu0
        %v3889 = vpop.trf.xlu0
        %v3890 = vpop.trf.xlu0
        %v3891 = vpop.trf.xlu0
        %v3892 = vpop.trf.xlu0
        %v3893 = vpop.trf.xlu0
        %v3894 = vpop.trf.xlu0
        %v3895 = vpop.trf.xlu0
        %v3896 = vpop.trf.xlu0
        %v3897 = vpop.trf.xlu0
        %3898 = vxpose.xlu0.b32.start [1/16] %v989, 128
        %3899 = vxpose.xlu0.b32.cont [2/16] %v995, 128
        %3900 = vxpose.xlu0.b32.cont [3/16] %v1001, 128
        %3901 = vxpose.xlu0.b32.cont [4/16] %v1007, 128
        %3902 = vxpose.xlu0.b32.cont [5/16] 0.0, 128
        %3903 = vxpose.xlu0.b32.cont [6/16] 0.0, 128
        %3904 = vxpose.xlu0.b32.cont [7/16] 0.0, 128
        %3905 = vxpose.xlu0.b32.cont [8/16] 0.0, 128
        %3906 = vxpose.xlu0.b32.cont [9/16] 0.0, 128
        %3907 = vxpose.xlu0.b32.cont [10/16] 0.0, 128
        %3908 = vxpose.xlu0.b32.cont [11/16] 0.0, 128
        %3909 = vxpose.xlu0.b32.cont [12/16] 0.0, 128
        %3910 = vxpose.xlu0.b32.cont [13/16] 0.0, 128
        %3911 = vxpose.xlu0.b32.cont [14/16] 0.0, 128
        %3912 = vxpose.xlu0.b32.cont [15/16] 0.0, 128
        %3913 = vxpose.xlu0.b32.end [16/16] 0.0, 128
        %v3914 = vpop.trf.xlu0
        %v3915 = vpop.trf.xlu0
        %v3916 = vpop.trf.xlu0
        %v3917 = vpop.trf.xlu0
        %v3918 = vpop.trf.xlu0
        %v3919 = vpop.trf.xlu0
        %v3920 = vpop.trf.xlu0
        %v3921 = vpop.trf.xlu0
        %v3922 = vpop.trf.xlu0
        %v3923 = vpop.trf.xlu0
        %v3924 = vpop.trf.xlu0
        %v3925 = vpop.trf.xlu0
        %v3926 = vpop.trf.xlu0
        %v3927 = vpop.trf.xlu0
        %v3928 = vpop.trf.xlu0
        %v3929 = vpop.trf.xlu0
        %v3931 = vsel %vm1169, %v3882, 0
        %v3934 = vsel %vm1169, %v3883, 0
        %v3937 = vsel %vm1169, %v3884, 0
        %v3940 = vsel %vm1169, %v3885, 0
        %v3943 = vsel %vm1169, %v3886, 0
        %v3946 = vsel %vm1169, %v3887, 0
        %v3949 = vsel %vm1169, %v3888, 0
        %v3952 = vsel %vm1169, %v3889, 0
        %v3955 = vsel %vm1169, %v3890, 0
        %v3958 = vsel %vm1169, %v3891, 0
        %v3961 = vsel %vm1169, %v3892, 0
        %v3964 = vsel %vm1169, %v3893, 0
        %v3967 = vsel %vm1169, %v3894, 0
        %v3970 = vsel %vm1169, %v3895, 0
        %v3973 = vsel %vm1169, %v3896, 0
        %v3976 = vsel %vm1169, %v3897, 0
        %v3979 = vsel %vm1169, %v3914, 0
        %v3982 = vsel %vm1169, %v3915, 0
        %v3985 = vsel %vm1169, %v3916, 0
        %v3988 = vsel %vm1169, %v3917, 0
        %v3991 = vsel %vm1169, %v3918, 0
        %v3994 = vsel %vm1169, %v3919, 0
        %v3997 = vsel %vm1169, %v3920, 0
        %v4000 = vsel %vm1169, %v3921, 0
        %v4003 = vsel %vm1169, %v3922, 0
        %v4006 = vsel %vm1169, %v3923, 0
        %v4009 = vsel %vm1169, %v3924, 0
        %v4012 = vsel %vm1169, %v3925, 0
        %v4015 = vsel %vm1169, %v3926, 0
        %v4018 = vsel %vm1169, %v3927, 0
        %v4021 = vsel %vm1169, %v3928, 0
        %v4024 = vsel %vm1169, %v3929, 0
        %4026 = vmatprep.subr.mxu0 0.0
        %4027 = vmatpush1.msra.mxu0 0.0
        %4028 = vmatprep.subr.mxu0 0.0
        %4029 = vmatpush1.msra.mxu0 0.0
        %4030 = vmatprep.subr.mxu0 0.0
        %4031 = vmatpush1.msra.mxu0 0.0
        %4032 = vmatprep.subr.mxu0 0.0
        %4033 = vmatpush1.msra.mxu0 0.0
        %4034 = vmatprep.subr.mxu0 0.0
        %4035 = vmatpush1.msra.mxu0 0.0
        %4036 = vmatprep.subr.mxu0 0.0
        %4037 = vmatpush1.msra.mxu0 0.0
        %4038 = vmatprep.subr.mxu0 0.0
        %4039 = vmatpush1.msra.mxu0 0.0
        %4040 = vmatprep.subr.mxu0 0.0
        %4041 = vmatpush1.msra.mxu0 0.0
        %4042 = vmatprep.subr.mxu0 0.0
        %4043 = vmatpush1.msra.mxu0 0.0
        %4044 = vmatprep.subr.mxu0 0.0
        %4045 = vmatpush1.msra.mxu0 0.0
        %4046 = vmatprep.subr.mxu0 0.0
        %4047 = vmatpush1.msra.mxu0 0.0
        %4048 = vmatprep.subr.mxu0 0.0
        %4049 = vmatpush1.msra.mxu0 0.0
        %4050 = vmatprep.subr.mxu0 %v911
        %4051 = vmatpush1.msra.mxu0 %v909
        %4052 = vmatprep.subr.mxu0 %v905
        %4053 = vmatpush1.msra.mxu0 %v903
        %4054 = vmatprep.subr.mxu0 %v899
        %4055 = vmatpush1.msra.mxu0 %v897
        %4056 = vmatprep.subr.mxu0 %v893
        %4057 = vmatpush1.msra.mxu0 %v891
        %4058 = vmatprep.subr.mxu0 0.0
        %4059 = vmatpush2.msra.mxu0 0.0
        %4060 = vmatprep.subr.mxu0 0.0
        %4061 = vmatpush2.msra.mxu0 0.0
        %4062 = vmatprep.subr.mxu0 0.0
        %4063 = vmatpush2.msra.mxu0 0.0
        %4064 = vmatprep.subr.mxu0 0.0
        %4065 = vmatpush2.msra.mxu0 0.0
        %4066 = vmatprep.subr.mxu0 0.0
        %4067 = vmatpush2.msra.mxu0 0.0
        %4068 = vmatprep.subr.mxu0 0.0
        %4069 = vmatpush2.msra.mxu0 0.0
        %4070 = vmatprep.subr.mxu0 0.0
        %4071 = vmatpush2.msra.mxu0 0.0
        %4072 = vmatprep.subr.mxu0 0.0
        %4073 = vmatpush2.msra.mxu0 0.0
        %4074 = vmatprep.subr.mxu0 0.0
        %4075 = vmatpush2.msra.mxu0 0.0
        %4076 = vmatprep.subr.mxu0 0.0
        %4077 = vmatpush2.msra.mxu0 0.0
        %4078 = vmatprep.subr.mxu0 0.0
        %4079 = vmatpush2.msra.mxu0 0.0
        %4080 = vmatprep.subr.mxu0 0.0
        %4081 = vmatpush2.msra.mxu0 0.0
        %4082 = vmatprep.subr.mxu0 0.0
        %4083 = vmatpush2.msra.mxu0 0.0
        %4084 = vmatprep.subr.mxu0 0.0
        %4085 = vmatpush2.msra.mxu0 0.0
        %4086 = vmatprep.subr.mxu0 0.0
        %4087 = vmatpush2.msra.mxu0 0.0
        %4088 = vmatprep.subr.mxu0 0.0
        %4089 = vmatpush2.msra.mxu0 0.0
        %4090 = vmatprep.mubr.f32.mxu0 0.0
        %4091 = vmatmul.mubr.f32.gmra.mxu0 %v3931
        %v4092 = vpop.f32.mrf.mxu0
        %v4093 = vadd.f32 0.0, %v4092
        %v4094 = vpop.f32.mrf.mxu0
        %v4095 = vadd.f32 0.0, %v4094
        %4096 = vmatprep.mubr.f32.mxu0 0.0
        %4097 = vmatmul.mubr.f32.gmra.mxu0 %v3934
        %v4098 = vpop.f32.mrf.mxu0
        %v4099 = vadd.f32 0.0, %v4098
        %v4100 = vpop.f32.mrf.mxu0
        %v4101 = vadd.f32 0.0, %v4100
        %4102 = vmatprep.mubr.f32.mxu0 0.0
        %4103 = vmatmul.mubr.f32.gmra.mxu0 %v3937
        %v4104 = vpop.f32.mrf.mxu0
        %v4105 = vadd.f32 0.0, %v4104
        %v4106 = vpop.f32.mrf.mxu0
        %v4107 = vadd.f32 0.0, %v4106
        %4108 = vmatprep.mubr.f32.mxu0 0.0
        %4109 = vmatmul.mubr.f32.gmra.mxu0 %v3940
        %v4110 = vpop.f32.mrf.mxu0
        %v4111 = vadd.f32 0.0, %v4110
        %v4112 = vpop.f32.mrf.mxu0
        %v4113 = vadd.f32 0.0, %v4112
        %4114 = vmatprep.mubr.f32.mxu0 0.0
        %4115 = vmatmul.mubr.f32.gmra.mxu0 %v3943
        %v4116 = vpop.f32.mrf.mxu0
        %v4117 = vadd.f32 0.0, %v4116
        %v4118 = vpop.f32.mrf.mxu0
        %v4119 = vadd.f32 0.0, %v4118
        %4120 = vmatprep.mubr.f32.mxu0 0.0
        %4121 = vmatmul.mubr.f32.gmra.mxu0 %v3946
        %v4122 = vpop.f32.mrf.mxu0
        %v4123 = vadd.f32 0.0, %v4122
        %v4124 = vpop.f32.mrf.mxu0
        %v4125 = vadd.f32 0.0, %v4124
        %4126 = vmatprep.mubr.f32.mxu0 0.0
        %4127 = vmatmul.mubr.f32.gmra.mxu0 %v3949
        %v4128 = vpop.f32.mrf.mxu0
        %v4129 = vadd.f32 0.0, %v4128
        %v4130 = vpop.f32.mrf.mxu0
        %v4131 = vadd.f32 0.0, %v4130
        %4132 = vmatprep.mubr.f32.mxu0 0.0
        %4133 = vmatmul.mubr.f32.gmra.mxu0 %v3952
        %v4134 = vpop.f32.mrf.mxu0
        %v4135 = vadd.f32 0.0, %v4134
        %v4136 = vpop.f32.mrf.mxu0
        %v4137 = vadd.f32 0.0, %v4136
        %4138 = vmatprep.mubr.f32.mxu0 0.0
        %4139 = vmatmul.mubr.f32.gmra.mxu0 %v3955
        %v4140 = vpop.f32.mrf.mxu0
        %v4141 = vadd.f32 0.0, %v4140
        %v4142 = vpop.f32.mrf.mxu0
        %v4143 = vadd.f32 0.0, %v4142
        %4144 = vmatprep.mubr.f32.mxu0 0.0
        %4145 = vmatmul.mubr.f32.gmra.mxu0 %v3958
        %v4146 = vpop.f32.mrf.mxu0
        %v4147 = vadd.f32 0.0, %v4146
        %v4148 = vpop.f32.mrf.mxu0
        %v4149 = vadd.f32 0.0, %v4148
        %4150 = vmatprep.mubr.f32.mxu0 0.0
        %4151 = vmatmul.mubr.f32.gmra.mxu0 %v3961
        %v4152 = vpop.f32.mrf.mxu0
        %v4153 = vadd.f32 0.0, %v4152
        %v4154 = vpop.f32.mrf.mxu0
        %v4155 = vadd.f32 0.0, %v4154
        %4156 = vmatprep.mubr.f32.mxu0 0.0
        %4157 = vmatmul.mubr.f32.gmra.mxu0 %v3964
        %v4158 = vpop.f32.mrf.mxu0
        %v4159 = vadd.f32 0.0, %v4158
        %v4160 = vpop.f32.mrf.mxu0
        %v4161 = vadd.f32 0.0, %v4160
        %4162 = vmatprep.mubr.f32.mxu0 0.0
        %4163 = vmatmul.mubr.f32.gmra.mxu0 %v3967
        %v4164 = vpop.f32.mrf.mxu0
        %v4165 = vadd.f32 0.0, %v4164
        %v4166 = vpop.f32.mrf.mxu0
        %v4167 = vadd.f32 0.0, %v4166
        %4168 = vmatprep.mubr.f32.mxu0 0.0
        %4169 = vmatmul.mubr.f32.gmra.mxu0 %v3970
        %v4170 = vpop.f32.mrf.mxu0
        %v4171 = vadd.f32 0.0, %v4170
        %v4172 = vpop.f32.mrf.mxu0
        %v4173 = vadd.f32 0.0, %v4172
        %4174 = vmatprep.mubr.f32.mxu0 0.0
        %4175 = vmatmul.mubr.f32.gmra.mxu0 %v3973
        %v4176 = vpop.f32.mrf.mxu0
        %v4177 = vadd.f32 0.0, %v4176
        %v4178 = vpop.f32.mrf.mxu0
        %v4179 = vadd.f32 0.0, %v4178
        %4180 = vmatprep.mubr.f32.mxu0 0.0
        %4181 = vmatmul.mubr.f32.gmra.mxu0 %v3976
        %v4182 = vpop.f32.mrf.mxu0
        %v4183 = vadd.f32 0.0, %v4182
        %v4184 = vpop.f32.mrf.mxu0
        %v4185 = vadd.f32 0.0, %v4184
        %4186 = vmatprep.mubr.f32.mxu0 0.0
        %4187 = vmatmul.mubr.f32.gmra.mxu0 %v3979
        %v4188 = vpop.f32.mrf.mxu0
        %v4189 = vadd.f32 0.0, %v4188
        %v4190 = vpop.f32.mrf.mxu0
        %v4191 = vadd.f32 0.0, %v4190
        %4192 = vmatprep.mubr.f32.mxu0 0.0
        %4193 = vmatmul.mubr.f32.gmra.mxu0 %v3982
        %v4194 = vpop.f32.mrf.mxu0
        %v4195 = vadd.f32 0.0, %v4194
        %v4196 = vpop.f32.mrf.mxu0
        %v4197 = vadd.f32 0.0, %v4196
        %4198 = vmatprep.mubr.f32.mxu0 0.0
        %4199 = vmatmul.mubr.f32.gmra.mxu0 %v3985
        %v4200 = vpop.f32.mrf.mxu0
        %v4201 = vadd.f32 0.0, %v4200
        %v4202 = vpop.f32.mrf.mxu0
        %v4203 = vadd.f32 0.0, %v4202
        %4204 = vmatprep.mubr.f32.mxu0 0.0
        %4205 = vmatmul.mubr.f32.gmra.mxu0 %v3988
        %v4206 = vpop.f32.mrf.mxu0
        %v4207 = vadd.f32 0.0, %v4206
        %v4208 = vpop.f32.mrf.mxu0
        %v4209 = vadd.f32 0.0, %v4208
        %4210 = vmatprep.mubr.f32.mxu0 0.0
        %4211 = vmatmul.mubr.f32.gmra.mxu0 %v3991
        %v4212 = vpop.f32.mrf.mxu0
        %v4213 = vadd.f32 0.0, %v4212
        %v4214 = vpop.f32.mrf.mxu0
        %v4215 = vadd.f32 0.0, %v4214
        %4216 = vmatprep.mubr.f32.mxu0 0.0
        %4217 = vmatmul.mubr.f32.gmra.mxu0 %v3994
        %v4218 = vpop.f32.mrf.mxu0
        %v4219 = vadd.f32 0.0, %v4218
        %v4220 = vpop.f32.mrf.mxu0
        %v4221 = vadd.f32 0.0, %v4220
        %4222 = vmatprep.mubr.f32.mxu0 0.0
        %4223 = vmatmul.mubr.f32.gmra.mxu0 %v3997
        %v4224 = vpop.f32.mrf.mxu0
        %v4225 = vadd.f32 0.0, %v4224
        %v4226 = vpop.f32.mrf.mxu0
        %v4227 = vadd.f32 0.0, %v4226
        %4228 = vmatprep.mubr.f32.mxu0 0.0
        %4229 = vmatmul.mubr.f32.gmra.mxu0 %v4000
        %v4230 = vpop.f32.mrf.mxu0
        %v4231 = vadd.f32 0.0, %v4230
        %v4232 = vpop.f32.mrf.mxu0
        %v4233 = vadd.f32 0.0, %v4232
        %4234 = vmatprep.mubr.f32.mxu0 0.0
        %4235 = vmatmul.mubr.f32.gmra.mxu0 %v4003
        %v4236 = vpop.f32.mrf.mxu0
        %v4237 = vadd.f32 0.0, %v4236
        %v4238 = vpop.f32.mrf.mxu0
        %v4239 = vadd.f32 0.0, %v4238
        %4240 = vmatprep.mubr.f32.mxu0 0.0
        %4241 = vmatmul.mubr.f32.gmra.mxu0 %v4006
        %v4242 = vpop.f32.mrf.mxu0
        %v4243 = vadd.f32 0.0, %v4242
        %v4244 = vpop.f32.mrf.mxu0
        %v4245 = vadd.f32 0.0, %v4244
        %4246 = vmatprep.mubr.f32.mxu0 0.0
        %4247 = vmatmul.mubr.f32.gmra.mxu0 %v4009
        %v4248 = vpop.f32.mrf.mxu0
        %v4249 = vadd.f32 0.0, %v4248
        %v4250 = vpop.f32.mrf.mxu0
        %v4251 = vadd.f32 0.0, %v4250
        %4252 = vmatprep.mubr.f32.mxu0 0.0
        %4253 = vmatmul.mubr.f32.gmra.mxu0 %v4012
        %v4254 = vpop.f32.mrf.mxu0
        %v4255 = vadd.f32 0.0, %v4254
        %v4256 = vpop.f32.mrf.mxu0
        %v4257 = vadd.f32 0.0, %v4256
        %4258 = vmatprep.mubr.f32.mxu0 0.0
        %4259 = vmatmul.mubr.f32.gmra.mxu0 %v4015
        %v4260 = vpop.f32.mrf.mxu0
        %v4261 = vadd.f32 0.0, %v4260
        %v4262 = vpop.f32.mrf.mxu0
        %v4263 = vadd.f32 0.0, %v4262
        %4264 = vmatprep.mubr.f32.mxu0 0.0
        %4265 = vmatmul.mubr.f32.gmra.mxu0 %v4018
        %v4266 = vpop.f32.mrf.mxu0
        %v4267 = vadd.f32 0.0, %v4266
        %v4268 = vpop.f32.mrf.mxu0
        %v4269 = vadd.f32 0.0, %v4268
        %4270 = vmatprep.mubr.f32.mxu0 0.0
        %4271 = vmatmul.mubr.f32.gmra.mxu0 %v4021
        %v4272 = vpop.f32.mrf.mxu0
        %v4273 = vadd.f32 0.0, %v4272
        %v4274 = vpop.f32.mrf.mxu0
        %v4275 = vadd.f32 0.0, %v4274
        %4276 = vmatprep.mubr.f32.mxu0 0.0
        %4277 = vmatmul.mubr.f32.gmra.mxu0 %v4024
        %v4278 = vpop.f32.mrf.mxu0
        %v4279 = vadd.f32 0.0, %v4278
        %v4280 = vpop.f32.mrf.mxu0
        %v4281 = vadd.f32 0.0, %v4280
        %4282 = vdwg.mxu0
        %v4283 = vmax.f32 %v4093, %v4105
        %v4284 = vmax.f32 %v4099, %v4111
        %v4285 = vmax.f32 %v4283, %v4117
        %v4286 = vmax.f32 %v4284, %v4123
        %v4287 = vmax.f32 %v4285, %v4129
        %v4288 = vmax.f32 %v4286, %v4135
        %v4289 = vmax.f32 %v4287, %v4141
        %v4290 = vmax.f32 %v4288, %v4147
        %v4291 = vmax.f32 %v4289, %v4153
        %v4292 = vmax.f32 %v4290, %v4159
        %v4293 = vmax.f32 %v4291, %v4165
        %v4294 = vmax.f32 %v4292, %v4171
        %v4295 = vmax.f32 %v4293, %v4177
        %v4296 = vmax.f32 %v4294, %v4183
        %v4297 = vmax.f32 %v4295, %v4189
        %v4298 = vmax.f32 %v4296, %v4195
        %v4299 = vmax.f32 %v4297, %v4201
        %v4300 = vmax.f32 %v4298, %v4207
        %v4301 = vmax.f32 %v4299, %v4213
        %v4302 = vmax.f32 %v4300, %v4219
        %v4303 = vmax.f32 %v4301, %v4225
        %v4304 = vmax.f32 %v4302, %v4231
        %v4305 = vmax.f32 %v4303, %v4237
        %v4306 = vmax.f32 %v4304, %v4243
        %v4307 = vmax.f32 %v4305, %v4249
        %v4308 = vmax.f32 %v4306, %v4255
        %v4309 = vmax.f32 %v4307, %v4261
        %v4310 = vmax.f32 %v4308, %v4267
        %v4311 = vmax.f32 %v4309, %v4273
        %v4312 = vmax.f32 %v4310, %v4279
        %v4313 = vmax.f32 %v4311, %v4312
        %v4314 = vrot.slane %v4313, 4
        %v4315 = vmax.f32 %v4313, %v4314
        %v4316 = vrot.slane %v4315, 2
        %v4317 = vmax.f32 %v4315, %v4316
        %v4318 = vrot.slane %v4317, 1
        %v4319 = vmax.f32 %v4317, %v4318
        %v4320 = vmax.f32 %v4095, %v4107
        %v4321 = vmax.f32 %v4101, %v4113
        %v4322 = vmax.f32 %v4320, %v4119
        %v4323 = vmax.f32 %v4321, %v4125
        %v4324 = vmax.f32 %v4322, %v4131
        %v4325 = vmax.f32 %v4323, %v4137
        %v4326 = vmax.f32 %v4324, %v4143
        %v4327 = vmax.f32 %v4325, %v4149
        %v4328 = vmax.f32 %v4326, %v4155
        %v4329 = vmax.f32 %v4327, %v4161
        %v4330 = vmax.f32 %v4328, %v4167
        %v4331 = vmax.f32 %v4329, %v4173
        %v4332 = vmax.f32 %v4330, %v4179
        %v4333 = vmax.f32 %v4331, %v4185
        %v4334 = vmax.f32 %v4332, %v4191
        %v4335 = vmax.f32 %v4333, %v4197
        %v4336 = vmax.f32 %v4334, %v4203
        %v4337 = vmax.f32 %v4335, %v4209
        %v4338 = vmax.f32 %v4336, %v4215
        %v4339 = vmax.f32 %v4337, %v4221
        %v4340 = vmax.f32 %v4338, %v4227
        %v4341 = vmax.f32 %v4339, %v4233
        %v4342 = vmax.f32 %v4340, %v4239
        %v4343 = vmax.f32 %v4341, %v4245
        %v4344 = vmax.f32 %v4342, %v4251
        %v4345 = vmax.f32 %v4343, %v4257
        %v4346 = vmax.f32 %v4344, %v4263
        %v4347 = vmax.f32 %v4345, %v4269
        %v4348 = vmax.f32 %v4346, %v4275
        %v4349 = vmax.f32 %v4347, %v4281
        %v4350 = vmax.f32 %v4348, %v4349
        %v4351 = vrot.slane %v4350, 4
        %v4352 = vmax.f32 %v4350, %v4351
        %v4353 = vrot.slane %v4352, 2
        %v4354 = vmax.f32 %v4352, %v4353
        %v4355 = vrot.slane %v4354, 1
        %v4356 = vmax.f32 %v4354, %v4355
        %v4357 = vsub.f32 %v4093, %v4319
        %v4358 = vsub.f32 %v4095, %v4356
        %v4359 = vsub.f32 %v4099, %v4319
        %v4360 = vsub.f32 %v4101, %v4356
        %v4361 = vsub.f32 %v4105, %v4319
        %v4362 = vsub.f32 %v4107, %v4356
        %v4363 = vsub.f32 %v4111, %v4319
        %v4364 = vsub.f32 %v4113, %v4356
        %v4365 = vsub.f32 %v4117, %v4319
        %v4366 = vsub.f32 %v4119, %v4356
        %v4367 = vsub.f32 %v4123, %v4319
        %v4368 = vsub.f32 %v4125, %v4356
        %v4369 = vsub.f32 %v4129, %v4319
        %v4370 = vsub.f32 %v4131, %v4356
        %v4371 = vsub.f32 %v4135, %v4319
        %v4372 = vsub.f32 %v4137, %v4356
        %v4373 = vsub.f32 %v4141, %v4319
        %v4374 = vsub.f32 %v4143, %v4356
        %v4375 = vsub.f32 %v4147, %v4319
        %v4376 = vsub.f32 %v4149, %v4356
        %v4377 = vsub.f32 %v4153, %v4319
        %v4378 = vsub.f32 %v4155, %v4356
        %v4379 = vsub.f32 %v4159, %v4319
        %v4380 = vsub.f32 %v4161, %v4356
        %v4381 = vsub.f32 %v4165, %v4319
        %v4382 = vsub.f32 %v4167, %v4356
        %v4383 = vsub.f32 %v4171, %v4319
        %v4384 = vsub.f32 %v4173, %v4356
        %v4385 = vsub.f32 %v4177, %v4319
        %v4386 = vsub.f32 %v4179, %v4356
        %v4387 = vsub.f32 %v4183, %v4319
        %v4388 = vsub.f32 %v4185, %v4356
        %v4389 = vsub.f32 %v4189, %v4319
        %v4390 = vsub.f32 %v4191, %v4356
        %v4391 = vsub.f32 %v4195, %v4319
        %v4392 = vsub.f32 %v4197, %v4356
        %v4393 = vsub.f32 %v4201, %v4319
        %v4394 = vsub.f32 %v4203, %v4356
        %v4395 = vsub.f32 %v4207, %v4319
        %v4396 = vsub.f32 %v4209, %v4356
        %v4397 = vsub.f32 %v4213, %v4319
        %v4398 = vsub.f32 %v4215, %v4356
        %v4399 = vsub.f32 %v4219, %v4319
        %v4400 = vsub.f32 %v4221, %v4356
        %v4401 = vsub.f32 %v4225, %v4319
        %v4402 = vsub.f32 %v4227, %v4356
        %v4403 = vsub.f32 %v4231, %v4319
        %v4404 = vsub.f32 %v4233, %v4356
        %v4405 = vsub.f32 %v4237, %v4319
        %v4406 = vsub.f32 %v4239, %v4356
        %v4407 = vsub.f32 %v4243, %v4319
        %v4408 = vsub.f32 %v4245, %v4356
        %v4409 = vsub.f32 %v4249, %v4319
        %v4410 = vsub.f32 %v4251, %v4356
        %v4411 = vsub.f32 %v4255, %v4319
        %v4412 = vsub.f32 %v4257, %v4356
        %v4413 = vsub.f32 %v4261, %v4319
        %v4414 = vsub.f32 %v4263, %v4356
        %v4415 = vsub.f32 %v4267, %v4319
        %v4416 = vsub.f32 %v4269, %v4356
        %v4417 = vsub.f32 %v4273, %v4319
        %v4418 = vsub.f32 %v4275, %v4356
        %v4419 = vsub.f32 %v4279, %v4319
        %v4420 = vsub.f32 %v4281, %v4356
        %v4421 = vmul.f32 %v4357, 1.442695
        %v4422 = vpow.pop %v4421
        %v4423 = vmul.f32 %v4358, 1.442695
        %v4424 = vpow.pop %v4423
        %v4425 = vmul.f32 %v4359, 1.442695
        %v4426 = vpow.pop %v4425
        %v4427 = vmul.f32 %v4360, 1.442695
        %v4428 = vpow.pop %v4427
        %v4429 = vmul.f32 %v4361, 1.442695
        %v4430 = vpow.pop %v4429
        %v4431 = vmul.f32 %v4362, 1.442695
        %v4432 = vpow.pop %v4431
        %v4433 = vmul.f32 %v4363, 1.442695
        %v4434 = vpow.pop %v4433
        %v4435 = vmul.f32 %v4364, 1.442695
        %v4436 = vpow.pop %v4435
        %v4437 = vmul.f32 %v4365, 1.442695
        %v4438 = vpow.pop %v4437
        %v4439 = vmul.f32 %v4366, 1.442695
        %v4440 = vpow.pop %v4439
        %v4441 = vmul.f32 %v4367, 1.442695
        %v4442 = vpow.pop %v4441
        %v4443 = vmul.f32 %v4368, 1.442695
        %v4444 = vpow.pop %v4443
        %v4445 = vmul.f32 %v4369, 1.442695
        %v4446 = vpow.pop %v4445
        %v4447 = vmul.f32 %v4370, 1.442695
        %v4448 = vpow.pop %v4447
        %v4449 = vmul.f32 %v4371, 1.442695
        %v4450 = vpow.pop %v4449
        %v4451 = vmul.f32 %v4372, 1.442695
        %v4452 = vpow.pop %v4451
        %v4453 = vmul.f32 %v4373, 1.442695
        %v4454 = vpow.pop %v4453
        %v4455 = vmul.f32 %v4374, 1.442695
        %v4456 = vpow.pop %v4455
        %v4457 = vmul.f32 %v4375, 1.442695
        %v4458 = vpow.pop %v4457
        %v4459 = vmul.f32 %v4376, 1.442695
        %v4460 = vpow.pop %v4459
        %v4461 = vmul.f32 %v4377, 1.442695
        %v4462 = vpow.pop %v4461
        %v4463 = vmul.f32 %v4378, 1.442695
        %v4464 = vpow.pop %v4463
        %v4465 = vmul.f32 %v4379, 1.442695
        %v4466 = vpow.pop %v4465
        %v4467 = vmul.f32 %v4380, 1.442695
        %v4468 = vpow.pop %v4467
        %v4469 = vmul.f32 %v4381, 1.442695
        %v4470 = vpow.pop %v4469
        %v4471 = vmul.f32 %v4382, 1.442695
        %v4472 = vpow.pop %v4471
        %v4473 = vmul.f32 %v4383, 1.442695
        %v4474 = vpow.pop %v4473
        %v4475 = vmul.f32 %v4384, 1.442695
        %v4476 = vpow.pop %v4475
        %v4477 = vmul.f32 %v4385, 1.442695
        %v4478 = vpow.pop %v4477
        %v4479 = vmul.f32 %v4386, 1.442695
        %v4480 = vpow.pop %v4479
        %v4481 = vmul.f32 %v4387, 1.442695
        %v4482 = vpow.pop %v4481
        %v4483 = vmul.f32 %v4388, 1.442695
        %v4484 = vpow.pop %v4483
        %v4485 = vmul.f32 %v4389, 1.442695
        %v4486 = vpow.pop %v4485
        %v4487 = vmul.f32 %v4390, 1.442695
        %v4488 = vpow.pop %v4487
        %v4489 = vmul.f32 %v4391, 1.442695
        %v4490 = vpow.pop %v4489
        %v4491 = vmul.f32 %v4392, 1.442695
        %v4492 = vpow.pop %v4491
        %v4493 = vmul.f32 %v4393, 1.442695
        %v4494 = vpow.pop %v4493
        %v4495 = vmul.f32 %v4394, 1.442695
        %v4496 = vpow.pop %v4495
        %v4497 = vmul.f32 %v4395, 1.442695
        %v4498 = vpow.pop %v4497
        %v4499 = vmul.f32 %v4396, 1.442695
        %v4500 = vpow.pop %v4499
        %v4501 = vmul.f32 %v4397, 1.442695
        %v4502 = vpow.pop %v4501
        %v4503 = vmul.f32 %v4398, 1.442695
        %v4504 = vpow.pop %v4503
        %v4505 = vmul.f32 %v4399, 1.442695
        %v4506 = vpow.pop %v4505
        %v4507 = vmul.f32 %v4400, 1.442695
        %v4508 = vpow.pop %v4507
        %v4509 = vmul.f32 %v4401, 1.442695
        %v4510 = vpow.pop %v4509
        %v4511 = vmul.f32 %v4402, 1.442695
        %v4512 = vpow.pop %v4511
        %v4513 = vmul.f32 %v4403, 1.442695
        %v4514 = vpow.pop %v4513
        %v4515 = vmul.f32 %v4404, 1.442695
        %v4516 = vpow.pop %v4515
        %v4517 = vmul.f32 %v4405, 1.442695
        %v4518 = vpow.pop %v4517
        %v4519 = vmul.f32 %v4406, 1.442695
        %v4520 = vpow.pop %v4519
        %v4521 = vmul.f32 %v4407, 1.442695
        %v4522 = vpow.pop %v4521
        %v4523 = vmul.f32 %v4408, 1.442695
        %v4524 = vpow.pop %v4523
        %v4525 = vmul.f32 %v4409, 1.442695
        %v4526 = vpow.pop %v4525
        %v4527 = vmul.f32 %v4410, 1.442695
        %v4528 = vpow.pop %v4527
        %v4529 = vmul.f32 %v4411, 1.442695
        %v4530 = vpow.pop %v4529
        %v4531 = vmul.f32 %v4412, 1.442695
        %v4532 = vpow.pop %v4531
        %v4533 = vmul.f32 %v4413, 1.442695
        %v4534 = vpow.pop %v4533
        %v4535 = vmul.f32 %v4414, 1.442695
        %v4536 = vpow.pop %v4535
        %v4537 = vmul.f32 %v4415, 1.442695
        %v4538 = vpow.pop %v4537
        %v4539 = vmul.f32 %v4416, 1.442695
        %v4540 = vpow.pop %v4539
        %v4541 = vmul.f32 %v4417, 1.442695
        %v4542 = vpow.pop %v4541
        %v4543 = vmul.f32 %v4418, 1.442695
        %v4544 = vpow.pop %v4543
        %v4545 = vmul.f32 %v4419, 1.442695
        %v4546 = vpow.pop %v4545
        %v4547 = vmul.f32 %v4420, 1.442695
        %v4548 = vpow.pop %v4547
        %v4549 = vadd.f32 %v4422, %v4426
        %v4550 = vadd.f32 %v4549, %v4430
        %v4551 = vadd.f32 %v4550, %v4434
        %v4552 = vadd.f32 %v4551, %v4438
        %v4553 = vadd.f32 %v4552, %v4442
        %v4554 = vadd.f32 %v4553, %v4446
        %v4555 = vadd.f32 %v4554, %v4450
        %v4556 = vadd.f32 %v4555, %v4454
        %v4557 = vadd.f32 %v4556, %v4458
        %v4558 = vadd.f32 %v4557, %v4462
        %v4559 = vadd.f32 %v4558, %v4466
        %v4560 = vadd.f32 %v4559, %v4470
        %v4561 = vadd.f32 %v4560, %v4474
        %v4562 = vadd.f32 %v4561, %v4478
        %v4563 = vadd.f32 %v4562, %v4482
        %v4564 = vadd.f32 %v4563, %v4486
        %v4565 = vadd.f32 %v4564, %v4490
        %v4566 = vadd.f32 %v4565, %v4494
        %v4567 = vadd.f32 %v4566, %v4498
        %v4568 = vadd.f32 %v4567, %v4502
        %v4569 = vadd.f32 %v4568, %v4506
        %v4570 = vadd.f32 %v4569, %v4510
        %v4571 = vadd.f32 %v4570, %v4514
        %v4572 = vadd.f32 %v4571, %v4518
        %v4573 = vadd.f32 %v4572, %v4522
        %v4574 = vadd.f32 %v4573, %v4526
        %v4575 = vadd.f32 %v4574, %v4530
        %v4576 = vadd.f32 %v4575, %v4534
        %v4577 = vadd.f32 %v4576, %v4538
        %v4578 = vadd.f32 %v4577, %v4542
        %v4579 = vadd.f32 %v4578, %v4546
        %v4580 = vrot.slane %v4579, 4
        %v4581 = vadd.f32 %v4579, %v4580
        %v4582 = vrot.slane %v4581, 2
        %v4583 = vadd.f32 %v4581, %v4582
        %v4584 = vrot.slane %v4583, 1
        %v4585 = vadd.f32 %v4583, %v4584
        %v4586 = vadd.f32 %v4424, %v4428
        %v4587 = vadd.f32 %v4586, %v4432
        %v4588 = vadd.f32 %v4587, %v4436
        %v4589 = vadd.f32 %v4588, %v4440
        %v4590 = vadd.f32 %v4589, %v4444
        %v4591 = vadd.f32 %v4590, %v4448
        %v4592 = vadd.f32 %v4591, %v4452
        %v4593 = vadd.f32 %v4592, %v4456
        %v4594 = vadd.f32 %v4593, %v4460
        %v4595 = vadd.f32 %v4594, %v4464
        %v4596 = vadd.f32 %v4595, %v4468
        %v4597 = vadd.f32 %v4596, %v4472
        %v4598 = vadd.f32 %v4597, %v4476
        %v4599 = vadd.f32 %v4598, %v4480
        %v4600 = vadd.f32 %v4599, %v4484
        %v4601 = vadd.f32 %v4600, %v4488
        %v4602 = vadd.f32 %v4601, %v4492
        %v4603 = vadd.f32 %v4602, %v4496
        %v4604 = vadd.f32 %v4603, %v4500
        %v4605 = vadd.f32 %v4604, %v4504
        %v4606 = vadd.f32 %v4605, %v4508
        %v4607 = vadd.f32 %v4606, %v4512
        %v4608 = vadd.f32 %v4607, %v4516
        %v4609 = vadd.f32 %v4608, %v4520
        %v4610 = vadd.f32 %v4609, %v4524
        %v4611 = vadd.f32 %v4610, %v4528
        %v4612 = vadd.f32 %v4611, %v4532
        %v4613 = vadd.f32 %v4612, %v4536
        %v4614 = vadd.f32 %v4613, %v4540
        %v4615 = vadd.f32 %v4614, %v4544
        %v4616 = vadd.f32 %v4615, %v4548
        %v4617 = vrot.slane %v4616, 4
        %v4618 = vadd.f32 %v4616, %v4617
        %v4619 = vrot.slane %v4618, 2
        %v4620 = vadd.f32 %v4618, %v4619
        %v4621 = vrot.slane %v4620, 1
        %v4622 = vadd.f32 %v4620, %v4621
        %v4623 = vrcp.pop %v4585
        %v4624 = vrcp.pop %v4622
        %v4625 = vmul.f32 %v4422, %v4623
        %v4626 = vmul.f32 %v4424, %v4624
        %v4627 = vmul.f32 %v4426, %v4623
        %v4628 = vmul.f32 %v4428, %v4624
        %v4629 = vmul.f32 %v4430, %v4623
        %v4630 = vmul.f32 %v4432, %v4624
        %v4631 = vmul.f32 %v4434, %v4623
        %v4632 = vmul.f32 %v4436, %v4624
        %v4633 = vmul.f32 %v4438, %v4623
        %v4634 = vmul.f32 %v4440, %v4624
        %v4635 = vmul.f32 %v4442, %v4623
        %v4636 = vmul.f32 %v4444, %v4624
        %v4637 = vmul.f32 %v4446, %v4623
        %v4638 = vmul.f32 %v4448, %v4624
        %v4639 = vmul.f32 %v4450, %v4623
        %v4640 = vmul.f32 %v4452, %v4624
        %v4641 = vmul.f32 %v4454, %v4623
        %v4642 = vmul.f32 %v4456, %v4624
        %v4643 = vmul.f32 %v4458, %v4623
        %v4644 = vmul.f32 %v4460, %v4624
        %v4645 = vmul.f32 %v4462, %v4623
        %v4646 = vmul.f32 %v4464, %v4624
        %v4647 = vmul.f32 %v4466, %v4623
        %v4648 = vmul.f32 %v4468, %v4624
        %v4649 = vmul.f32 %v4470, %v4623
        %v4650 = vmul.f32 %v4472, %v4624
        %v4651 = vmul.f32 %v4474, %v4623
        %v4652 = vmul.f32 %v4476, %v4624
        %v4653 = vmul.f32 %v4478, %v4623
        %v4654 = vmul.f32 %v4480, %v4624
        %v4655 = vmul.f32 %v4482, %v4623
        %v4656 = vmul.f32 %v4484, %v4624
        %v4657 = vmul.f32 %v4486, %v4623
        %v4658 = vmul.f32 %v4488, %v4624
        %v4659 = vmul.f32 %v4490, %v4623
        %v4660 = vmul.f32 %v4492, %v4624
        %v4661 = vmul.f32 %v4494, %v4623
        %v4662 = vmul.f32 %v4496, %v4624
        %v4663 = vmul.f32 %v4498, %v4623
        %v4664 = vmul.f32 %v4500, %v4624
        %v4665 = vmul.f32 %v4502, %v4623
        %v4666 = vmul.f32 %v4504, %v4624
        %v4667 = vmul.f32 %v4506, %v4623
        %v4668 = vmul.f32 %v4508, %v4624
        %v4669 = vmul.f32 %v4510, %v4623
        %v4670 = vmul.f32 %v4512, %v4624
        %v4671 = vmul.f32 %v4514, %v4623
        %v4672 = vmul.f32 %v4516, %v4624
        %v4673 = vmul.f32 %v4518, %v4623
        %v4674 = vmul.f32 %v4520, %v4624
        %v4675 = vmul.f32 %v4522, %v4623
        %v4676 = vmul.f32 %v4524, %v4624
        %v4677 = vmul.f32 %v4526, %v4623
        %v4678 = vmul.f32 %v4528, %v4624
        %v4679 = vmul.f32 %v4530, %v4623
        %v4680 = vmul.f32 %v4532, %v4624
        %v4681 = vmul.f32 %v4534, %v4623
        %v4682 = vmul.f32 %v4536, %v4624
        %v4683 = vmul.f32 %v4538, %v4623
        %v4684 = vmul.f32 %v4540, %v4624
        %v4685 = vmul.f32 %v4542, %v4623
        %v4686 = vmul.f32 %v4544, %v4624
        %v4687 = vmul.f32 %v4546, %v4623
        %v4688 = vmul.f32 %v4548, %v4624
        %4689 = vmatprep.subr.mxu0 %v4656
        %4690 = vmatpush1.msra.mxu0 %v4655
        %4691 = vmatprep.subr.mxu0 %v4654
        %4692 = vmatpush1.msra.mxu0 %v4653
        %4693 = vmatprep.subr.mxu0 %v4652
        %4694 = vmatpush1.msra.mxu0 %v4651
        %4695 = vmatprep.subr.mxu0 %v4650
        %4696 = vmatpush1.msra.mxu0 %v4649
        %4697 = vmatprep.subr.mxu0 %v4648
        %4698 = vmatpush1.msra.mxu0 %v4647
        %4699 = vmatprep.subr.mxu0 %v4646
        %4700 = vmatpush1.msra.mxu0 %v4645
        %4701 = vmatprep.subr.mxu0 %v4644
        %4702 = vmatpush1.msra.mxu0 %v4643
        %4703 = vmatprep.subr.mxu0 %v4642
        %4704 = vmatpush1.msra.mxu0 %v4641
        %4705 = vmatprep.subr.mxu0 %v4640
        %4706 = vmatpush1.msra.mxu0 %v4639
        %4707 = vmatprep.subr.mxu0 %v4638
        %4708 = vmatpush1.msra.mxu0 %v4637
        %4709 = vmatprep.subr.mxu0 %v4636
        %4710 = vmatpush1.msra.mxu0 %v4635
        %4711 = vmatprep.subr.mxu0 %v4634
        %4712 = vmatpush1.msra.mxu0 %v4633
        %4713 = vmatprep.subr.mxu0 %v4632
        %4714 = vmatpush1.msra.mxu0 %v4631
        %4715 = vmatprep.subr.mxu0 %v4630
        %4716 = vmatpush1.msra.mxu0 %v4629
        %4717 = vmatprep.subr.mxu0 %v4628
        %4718 = vmatpush1.msra.mxu0 %v4627
        %4719 = vmatprep.subr.mxu0 %v4626
        %4720 = vmatpush1.msra.mxu0 %v4625
        %4721 = vmatprep.subr.mxu0 %v4688
        %4722 = vmatpush2.msra.mxu0 %v4687
        %4723 = vmatprep.subr.mxu0 %v4686
        %4724 = vmatpush2.msra.mxu0 %v4685
        %4725 = vmatprep.subr.mxu0 %v4684
        %4726 = vmatpush2.msra.mxu0 %v4683
        %4727 = vmatprep.subr.mxu0 %v4682
        %4728 = vmatpush2.msra.mxu0 %v4681
        %4729 = vmatprep.subr.mxu0 %v4680
        %4730 = vmatpush2.msra.mxu0 %v4679
        %4731 = vmatprep.subr.mxu0 %v4678
        %4732 = vmatpush2.msra.mxu0 %v4677
        %4733 = vmatprep.subr.mxu0 %v4676
        %4734 = vmatpush2.msra.mxu0 %v4675
        %4735 = vmatprep.subr.mxu0 %v4674
        %4736 = vmatpush2.msra.mxu0 %v4673
        %4737 = vmatprep.subr.mxu0 %v4672
        %4738 = vmatpush2.msra.mxu0 %v4671
        %4739 = vmatprep.subr.mxu0 %v4670
        %4740 = vmatpush2.msra.mxu0 %v4669
        %4741 = vmatprep.subr.mxu0 %v4668
        %4742 = vmatpush2.msra.mxu0 %v4667
        %4743 = vmatprep.subr.mxu0 %v4666
        %4744 = vmatpush2.msra.mxu0 %v4665
        %4745 = vmatprep.subr.mxu0 %v4664
        %4746 = vmatpush2.msra.mxu0 %v4663
        %4747 = vmatprep.subr.mxu0 %v4662
        %4748 = vmatpush2.msra.mxu0 %v4661
        %4749 = vmatprep.subr.mxu0 %v4660
        %4750 = vmatpush2.msra.mxu0 %v4659
        %4751 = vmatprep.subr.mxu0 %v4658
        %4752 = vmatpush2.msra.mxu0 %v4657
        %4753 = vmatprep.mubr.f32.mxu0 %v1085
        %4754 = vmatmul.mubr.f32.gmra.mxu0 %v1083
        %v4755 = vpop.f32.mrf.mxu0
        %v4756 = vadd.f32 0.0, %v4755
        %v4757 = vpop.f32.mrf.mxu0
        %v4758 = vadd.f32 0.0, %v4757
        %4759 = vmatprep.mubr.f32.mxu0 %v1091
        %4760 = vmatmul.mubr.f32.gmra.mxu0 %v1089
        %v4761 = vpop.f32.mrf.mxu0
        %v4762 = vadd.f32 0.0, %v4761
        %v4763 = vpop.f32.mrf.mxu0
        %v4764 = vadd.f32 0.0, %v4763
        %4765 = vmatprep.mubr.f32.mxu0 %v1097
        %4766 = vmatmul.mubr.f32.gmra.mxu0 %v1095
        %v4767 = vpop.f32.mrf.mxu0
        %v4768 = vadd.f32 0.0, %v4767
        %v4769 = vpop.f32.mrf.mxu0
        %v4770 = vadd.f32 0.0, %v4769
        %4771 = vmatprep.mubr.f32.mxu0 %v1103
        %4772 = vmatmul.mubr.f32.gmra.mxu0 %v1101
        %v4773 = vpop.f32.mrf.mxu0
        %v4774 = vadd.f32 0.0, %v4773
        %v4775 = vpop.f32.mrf.mxu0
        %v4776 = vadd.f32 0.0, %v4775
        %4777 = vdwg.mxu0
        %4778 = vst [vmem:[#allocation2 + $0xc0] sm:$0xff] %v4756
        %4779 = vst [vmem:[#allocation2 + $0xc8] sm:$0xff] %v4758
        %4780 = vst [vmem:[#allocation2 + $0xd0] sm:$0xff] %v4762
        %4781 = vst [vmem:[#allocation2 + $0xd8] sm:$0xff] %v4764
        %4782 = vst [vmem:[#allocation2 + $0xe0] sm:$0xff] %v4768
        %4783 = vst [vmem:[#allocation2 + $0xe8] sm:$0xff] %v4770
        %4784 = vst [vmem:[#allocation2 + $0xf0] sm:$0xff] %v4774
        %4785 = vst [vmem:[#allocation2 + $0xf8] sm:$0xff] %v4776
        %v4786 = vld [vmem:[%s3] sm:$0xf]
        %v4787 = vld [vmem:[#allocation2] sm:$0xff]
        %v4788 = vld [vmem:[#allocation2 + $0x8] sm:$0xff]
        %v4789 = vld [vmem:[#allocation2 + $0x10] sm:$0xff]
        %v4790 = vld [vmem:[#allocation2 + $0x18] sm:$0xff]
        %v4791 = vld [vmem:[#allocation2 + $0x20] sm:$0xff]
        %v4792 = vld [vmem:[#allocation2 + $0x28] sm:$0xff]
        %v4793 = vld [vmem:[#allocation2 + $0x30] sm:$0xff]
        %v4794 = vld [vmem:[#allocation2 + $0x38] sm:$0xff]
        %v4795 = vld [vmem:[#allocation2 + $0x40] sm:$0xff]
        %v4796 = vld [vmem:[#allocation2 + $0x48] sm:$0xff]
        %v4797 = vld [vmem:[#allocation2 + $0x50] sm:$0xff]
        %v4798 = vld [vmem:[#allocation2 + $0x58] sm:$0xff]
        %v4799 = vld [vmem:[#allocation2 + $0x60] sm:$0xff]
        %v4800 = vld [vmem:[#allocation2 + $0x68] sm:$0xff]
        %v4801 = vld [vmem:[#allocation2 + $0x70] sm:$0xff]
        %v4802 = vld [vmem:[#allocation2 + $0x78] sm:$0xff]
        %v4803 = vld [vmem:[#allocation2 + $0x80] sm:$0xff]
        %v4804 = vld [vmem:[#allocation2 + $0x88] sm:$0xff]
        %v4805 = vld [vmem:[#allocation2 + $0x90] sm:$0xff]
        %v4806 = vld [vmem:[#allocation2 + $0x98] sm:$0xff]
        %v4807 = vld [vmem:[#allocation2 + $0xa0] sm:$0xff]
        %v4808 = vld [vmem:[#allocation2 + $0xa8] sm:$0xff]
        %v4809 = vld [vmem:[#allocation2 + $0xb0] sm:$0xff]
        %v4810 = vld [vmem:[#allocation2 + $0xb8] sm:$0xff]
        %v4811 = vld [vmem:[#allocation2 + $0xc0] sm:$0xff]
        %v4812 = vld [vmem:[#allocation2 + $0xc8] sm:$0xff]
        %v4813 = vld [vmem:[#allocation2 + $0xd0] sm:$0xff]
        %v4814 = vld [vmem:[#allocation2 + $0xd8] sm:$0xff]
        %v4815 = vld [vmem:[#allocation2 + $0xe0] sm:$0xff]
        %v4816 = vld [vmem:[#allocation2 + $0xe8] sm:$0xff]
        %v4817 = vld [vmem:[#allocation2 + $0xf0] sm:$0xff]
        %v4818 = vld [vmem:[#allocation2 + $0xf8] sm:$0xff]
        %v4819 = vld [vmem:[%s4] sm:$0xf]
        %4821 = vset.pattern.permute.xlu0 0
        %4822 = vperm.xlu0 %4821, %v4819
        %v4823 = vpop.permute.xlu0 %4822
        %4825 = vmatprep.subr.mxu0 %v4818
        %4826 = vmatpush1.msra.mxu0 %v4817
        %4827 = vmatprep.subr.mxu0 %v4816
        %4828 = vmatpush1.msra.mxu0 %v4815
        %4829 = vmatprep.subr.mxu0 %v4814
        %4830 = vmatpush1.msra.mxu0 %v4813
        %4831 = vmatprep.subr.mxu0 %v4812
        %4832 = vmatpush1.msra.mxu0 %v4811
        %4833 = vmatprep.subr.mxu0 %v4810
        %4834 = vmatpush1.msra.mxu0 %v4809
        %4835 = vmatprep.subr.mxu0 %v4808
        %4836 = vmatpush1.msra.mxu0 %v4807
        %4837 = vmatprep.subr.mxu0 %v4806
        %4838 = vmatpush1.msra.mxu0 %v4805
        %4839 = vmatprep.subr.mxu0 %v4804
        %4840 = vmatpush1.msra.mxu0 %v4803
        %4841 = vmatprep.subr.mxu0 %v4802
        %4842 = vmatpush1.msra.mxu0 %v4801
        %4843 = vmatprep.subr.mxu0 %v4800
        %4844 = vmatpush1.msra.mxu0 %v4799
        %4845 = vmatprep.subr.mxu0 %v4798
        %4846 = vmatpush1.msra.mxu0 %v4797
        %4847 = vmatprep.subr.mxu0 %v4796
        %4848 = vmatpush1.msra.mxu0 %v4795
        %4849 = vmatprep.subr.mxu0 %v4794
        %4850 = vmatpush1.msra.mxu0 %v4793
        %4851 = vmatprep.subr.mxu0 %v4792
        %4852 = vmatpush1.msra.mxu0 %v4791
        %4853 = vmatprep.subr.mxu0 %v4790
        %4854 = vmatpush1.msra.mxu0 %v4789
        %4855 = vmatprep.subr.mxu0 %v4788
        %4856 = vmatpush1.msra.mxu0 %v4787
        %4857 = vmatprep.subr.mxu0 0.0
        %4858 = vmatpush2.msra.mxu0 0.0
        %4859 = vmatprep.subr.mxu0 0.0
        %4860 = vmatpush2.msra.mxu0 0.0
        %4861 = vmatprep.subr.mxu0 0.0
        %4862 = vmatpush2.msra.mxu0 0.0
        %4863 = vmatprep.subr.mxu0 0.0
        %4864 = vmatpush2.msra.mxu0 0.0
        %4865 = vmatprep.subr.mxu0 0.0
        %4866 = vmatpush2.msra.mxu0 0.0
        %4867 = vmatprep.subr.mxu0 0.0
        %4868 = vmatpush2.msra.mxu0 0.0
        %4869 = vmatprep.subr.mxu0 0.0
        %4870 = vmatpush2.msra.mxu0 0.0
        %4871 = vmatprep.subr.mxu0 0.0
        %4872 = vmatpush2.msra.mxu0 0.0
        %4873 = vmatprep.subr.mxu0 0.0
        %4874 = vmatpush2.msra.mxu0 0.0
        %4875 = vmatprep.subr.mxu0 0.0
        %4876 = vmatpush2.msra.mxu0 0.0
        %4877 = vmatprep.subr.mxu0 0.0
        %4878 = vmatpush2.msra.mxu0 0.0
        %4879 = vmatprep.subr.mxu0 0.0
        %4880 = vmatpush2.msra.mxu0 0.0
        %4881 = vmatprep.subr.mxu0 0.0
        %4882 = vmatpush2.msra.mxu0 0.0
        %4883 = vmatprep.subr.mxu0 0.0
        %4884 = vmatpush2.msra.mxu0 0.0
        %4885 = vmatprep.subr.mxu0 0.0
        %4886 = vmatpush2.msra.mxu0 0.0
        %4887 = vmatprep.subr.mxu0 0.0
        %4888 = vmatpush2.msra.mxu0 0.0
        %4889 = vmatprep.mubr.f32.mxu0 0.0
        %4890 = vmatmul.mubr.f32.gmra.mxu0 %v4786
        %v4891 = vpop.f32.mrf.mxu0
        %v4892 = vadd.f32 %v4823, %v4891
        %v4893 = vpop.f32.mrf.mxu0
        %v4894 = vadd.f32 %v4823, %v4893
        %4895 = vdwg.mxu0
        %v4898 = vcombine.low %v4892, %v4894
        %4900 = vst [vmem:[%s217] sm:$0xff] %v4898
        %s4901 = sand.u32 %s137, 1
        %s4902 = scalar_lea.sflag [#allocation4], %s4901
        %s4903 = sand.u32 %s137, 1
        %s4904 = smul.addr %s4903, 8
        %s4905 = scalar_lea.vmem [#allocation3], %s4904
        // Predicated region
        $region41: #{tpu_custom_call.1} parent=39 // pred_check
          %p4906 = pneg %p147
        $region42: #{tpu_custom_call.1} parent=39 // pred_check_branch
          %4908 = sbr.rel (%p4906) target = $region44
        $region43: #{tpu_custom_call.1} parent=39 // pred_region
          %s4910 = ssub.s32 128, 128
          %4911 = vsyncadd %s4902, %s4910
          %s4912 = smul.addr %s19, 2
          %s4913 = smul.addr %s4912, 64
          %s4914 = scalar_lea.hbm %s5, %s4913
          %s4916 = sshll.u32 %s4905, 4
          %s4917 = int_to_ptr.vmem [resolvable:$true] %s4916
          %4919 = dma.vmem_to_hbm [thread:$0]  %s4917, 128, %s4914, %s4902
        $region44: #{tpu_custom_call.1} parent=39 // pred_fallthru
          _
      $region40: #{tpu_custom_call.1} parent=5 // pred_fallthru
        _
      %p4920 = scmp.le.s32.totalorder 2, %s14
      // Predicated region
      $region45: #{tpu_custom_call.1} parent=5 // pred_check
        %p4921 = pneg %p4920
      $region46: #{tpu_custom_call.1} parent=5 // pred_check_branch
        %4923 = sbr.rel (%p4921) target = $region48
      $region47: #{tpu_custom_call.1} parent=5 // pred_region
        %s4924 = ssub.s32 %s14, 2
        // Predicated region
        $region49: #{tpu_custom_call.1} parent=47 // pred_check
          %p4925 = pneg %p153
        $region50: #{tpu_custom_call.1} parent=47 // pred_check_branch
          %4927 = sbr.rel (%p4925) target = $region52
        $region51: #{tpu_custom_call.1} parent=47 // pred_region
          %s4928 = sand.u32 %s138, 1
          %s4929 = scalar_lea.sflag [#allocation4], %s4928
          %s4930 = sand.u32 %s138, 1
          %s4931 = smul.addr %s4930, 8
          %s4932 = scalar_lea.vmem [#allocation3], %s4931
          %4933 = dma.done %s4929, 128
        $region52: #{tpu_custom_call.1} parent=47 // pred_fallthru
          _
      $region48: #{tpu_custom_call.1} parent=5 // pred_fallthru
        _
    $region6: #{tpu_custom_call.1} parent=1 // loop_footer
      %s18 = sadd.s32 1, %s14
    $region7: #{tpu_custom_call.1} parent=1 // loop_footer_branch
      %13 = sbr.rel target = $region3
    $region8: #{tpu_custom_call.1} parent=1 // loop_exit
      _
    %4934 = vsyncpa [#allocation4], 1
    %s4935 = scalar_lea.sflag [#allocation4], 1
    %4936 = vsyncpa %s4935, 1

</llo_original>
